<compile_context>
chip_gen: v7x
topology: tpu7x:2x2x1
jax: 0.10.0
libtpu: 0.0.40
codegen_flags: <defaults>
</compile_context>

<pallas_src>
import math

import jax
import jax.numpy as jnp
from jax.experimental import pallas as pl
from jax.experimental.pallas import tpu as pltpu


def _window_size(dim, size):
    ws = int(math.ceil(math.sqrt(dim)))
    ws = ws + 1 if ws % 2 == 0 else ws
    if ws > 2 * size - 1:
        ws = 2 * size - 1
    return ws


def _round_up(x, m):
    return ((x + m - 1) // m) * m


def unfold_nchw(x, ws):
    """PyTorch-style F.unfold (stride 1, no extra padding). Reference checker only."""
    B, C, Hp, Wp = x.shape
    Ho, Wo = Hp - ws + 1, Wp - ws + 1
    patches = []
    for i in range(ws):
        for j in range(ws):
            patches.append(x[:, :, i:i + Ho, j:j + Wo])
    p = jnp.stack(patches, axis=2)                       # (B, C, ws*ws, Ho, Wo)
    return p.reshape(B, C * ws * ws, Ho * Wo)


# --------------------------- Pallas kernel ----------------------------------

def make_dwa_kernel(C, kk, kkp, heads, lanes, pad_left, offsets):
    kkC = kk * C
    ext_len = lanes + 2 * pad_left
    bf16 = jnp.bfloat16
    f32 = jnp.float32

    def kernel(x_ref, wbig_ref, a_ref, at_ref, maskpad_ref, inbexp_ref,
               wproj_ref, o_ref, ext_k, ext_v, rows_buf, mask_rows, p_sc):
        # Fused qkv projection; scale, '(n1 c)' row gather and the qkv bias are all
        # folded into the bf16 weights (bias rides the ones row of x_aug).  MXU,
        # f32 accumulation.
        qkv = jnp.dot(wbig_ref[...], x_ref[...],
                      preferred_element_type=f32)               # (kkC+2C, lanes)

        # Refresh only the halo of the flat k/v token buffers; the interior is
        # overwritten every grid step.  (Full-buffer zeroing per step is wasted
        # stores; a program_id==0 guard is unsafe under megacore scratch copies.)
        halo = jnp.zeros((C, pad_left), f32)
        ext_k[:, 0:pad_left] = halo
        ext_k[:, pad_left + lanes:ext_len] = halo
        ext_v[:, 0:pad_left] = halo
        ext_v[:, pad_left + lanes:ext_len] = halo
        ext_k[:, pad_left:pad_left + lanes] = qkv[kkC:kkC + C, :]
        ext_v[:, pad_left:pad_left + lanes] = qkv[kkC + C:kkC + 2 * C, :]

        # Ones row shared by both augmented matmuls: it carries the -1e9 pad-row
        # column of A_aug and the proj_out bias column of Wproj_aug.
        rows_buf[kkC:kkC + 1, :] = jnp.ones((1, lanes), bf16)

        # True-window-position (zero-padding equivalence) mask applied ONCE to the
        # scrambled q rows instead of per window slab.
        mask_rows[...] = qkv[:kkC, :] * inbexp_ref[...]

        # Window gather: every shifted view is a static lane slice of the
        # zero-haloed flat buffer; wrap-around / cross-batch reads are killed by
        # mask_rows.  e rows stored as bf16 for the MXU.
        # TODO(synk): at production sizes where W % 128 == 0, keep ws column-shifted
        # copies so these slices become lane-aligned (XLU-rotate relief).
        for wp, off in enumerate(offsets):
            prod = mask_rows[wp * C:(wp + 1) * C, :] * ext_k[:, off:off + lanes]
            rows_buf[wp * C:(wp + 1) * C, :] = prod.astype(bf16)

        # Per-(head, slot) logits in one MXU matmul; A_aug encodes the literal
        # '(n1 c)' row scramble, the head split and the pad-row -1e9 bias.
        logits = jnp.dot(a_ref[...], rows_buf[...],
                         preferred_element_type=f32)            # (heads*kkp, lanes)

        # Numerically safe per-head softmax (per-head max, not a global max), with
        # the reference's post-softmax padding mask.  Head blocks are kkp-aligned so
        # every slice / store below is tile aligned.
        for h in range(heads):
            blk = logits[h * kkp:(h + 1) * kkp, :]
            m_h = jnp.max(blk, axis=0, keepdims=True)
            e_h = jnp.exp(blk - m_h)                            # pad rows -> exp(-1e9) = 0
            d_h = jnp.sum(e_h, axis=0, keepdims=True)           # >= 1, never ~0
            p_h = e_h * pl.reciprocal(d_h, approx=True)
            p_h = p_h * maskpad_ref[h * kkp:(h + 1) * kkp, :]   # mask AFTER softmax
            p_sc[h * kkp:(h + 1) * kkp, :] = p_h.astype(bf16)

        # Probabilities back to natural window-row order (MXU), masked once, then
        # weighted against the shifted v views (rows_buf is safely reused: its e
        # contents were fully consumed by the logits matmul above).
        pexp = jnp.dot(at_ref[...], p_sc[...],
                       preferred_element_type=f32)              # (kkC, lanes)
        mask_rows[...] = pexp * inbexp_ref[...]
        for wp, off in enumerate(offsets):
            prod = mask_rows[wp * C:(wp + 1) * C, :] * ext_v[:, off:off + lanes]
            rows_buf[wp * C:(wp + 1) * C, :] = prod.astype(bf16)

        # Head merge + proj_out (+bias via the ones row) in one (C, kkC+1) matmul.
        # Output stays f32 here; switch out_shape/o_ref to bf16 if the consumer
        # tolerates it (halves HBM writeback).
        o_ref[...] = jnp.dot(wproj_ref[...], rows_buf[...],
                             preferred_element_type=f32)        # (C, lanes)

    return kernel


# --------------------------- Module wrapper ---------------------------------

class DeformableWindowAttentionPallas:
    def __init__(self, size, dim, num_heads, key, batch_block=2):
        assert dim % num_heads == 0
        self.dim = dim
        self.size = size
        self.heads = num_heads
        self.window_size = _window_size(dim, size)
        self.padding_size = self.window_size // 2
        self.head_dim = dim // num_heads
        self.scale = self.head_dim ** (-0.5)
        self.batch_block = batch_block        # batch elements packed into lanes per step

        C, H, W = dim, size, size
        N = H * W
        ws, p = self.window_size, self.padding_size
        kk = ws * ws
        kkC = kk * C
        heads, hd = self.heads, self.head_dim
        self.kk = kk
        self.N = N
        # Padded slots-per-head so every per-head row block (slice + bf16 store) is
        # aligned to the 16-row bf16 sublane tile.
        self.kkp = _round_up(kk, 16)
        kkp = self.kkp
        self.R = heads * kkp
        R = self.R
        lanes = batch_block * N
        self.lanes = lanes

        # Deterministic synthetic parameters (f32 masters; also used by the pure-JAX
        # reference).  reset_parameters() is a no-op in the reference, the
        # relative_position_bias_table is never used in forward, dropouts are p=0.
        k1, k2, k3, k4 = jax.random.split(key, 4)
        self.w_qkv = 0.05 * jax.random.normal(k1, (dim, 3 * dim), jnp.float32)
        self.b_qkv = 0.05 * jax.random.normal(k2, (1, 3 * dim), jnp.float32)
        self.w_proj = 0.05 * jax.random.normal(k3, (dim, dim), jnp.float32)
        self.b_proj = 0.05 * jax.random.normal(k4, (1, dim), jnp.float32)

        # ---- static structural bookkeeping (host side, built once) ----------
        # Natural window-row order r_nat = wp*C + c_src (wp = TRUE window position,
        # c_src = source channel).  The PyTorch module reinterprets torch-unfold rows
        # r_true = c_src*kk + wp as (slot = r_true // C, channel cc = r_true % C);
        # the head of that row is cc // hd.  Logit rows are head-major & padded.
        r_nat = jnp.arange(kkC)
        wp_nat = r_nat // C
        c_src = r_nat % C
        r_true = c_src * kk + wp_nat
        slot_scr = r_true // C                 # reference's softmax slot index l
        cc = r_true % C                        # query / output channel per window row
        head_of = cc // hd
        s_of = head_of * kkp + slot_scr        # logit row for each natural row

        G = (cc[:, None] == jnp.arange(C)[None, :]).astype(jnp.float32)        # (kkC, C)
        A = (jnp.arange(R)[:, None] == s_of[None, :]).astype(jnp.float32)      # (R, kkC)
        # Augmented -1e9 column: padded logit rows never win the per-head max and
        # contribute exp(...)=0 to the denominator.
        negcol = jnp.where((jnp.arange(R) % kkp) < kk, 0.0, -1e9)[:, None]
        self.A_aug = jnp.concatenate([A, negcol], axis=1).astype(jnp.bfloat16)  # (R, kkC+1)
        self.A_T = A.T.astype(jnp.bfloat16)                                     # (kkC, R)

        # In-bounds mask per TRUE window position (== the zero padding of k/v).
        wp_idx = jnp.arange(kk)
        di = (wp_idx // ws - p)[:, None]
        dj = (wp_idx % ws - p)[:, None]
        yy = (jnp.arange(N) // W)[None, :]
        xx = (jnp.arange(N) % W)[None, :]
        inb = ((yy + di >= 0) & (yy + di < H) &
               (xx + dj >= 0) & (xx + dj < W)).astype(jnp.float32)              # (kk, N)

        # Pre-expanded masks, tiled across the batch-packed lane dimension.
        # Kept f32 on purpose: they multiply f32 operands elementwise.
        self.inb_expanded = jnp.tile(jnp.repeat(inb, C, axis=0),
                                     (1, batch_block))                          # (kkC, lanes)
        rows = jnp.arange(R)
        w_of_row = rows % kkp
        maskpad = jnp.where((w_of_row < kk)[:, None],
                            inb[jnp.clip(w_of_row, 0, kk - 1)], 0.0)            # (R, N)
        self.mask_pad = jnp.tile(maskpad, (1, batch_block))                     # (R, lanes)

        # Static lane offsets of the shifted window views in the zero-haloed flat
        # token buffer of length lanes + 2*pad_left.
        self.pad_left = p * W + p
        self.ext_len = lanes + 2 * self.pad_left
        self.offsets = tuple(int(i * W + j) for i in range(ws) for j in range(ws))

        # ---- folded bf16 weights (channel-major; biases folded via augmentation) --
        w_q_t = self.w_qkv[:, :C].T * self.scale
        w_k_t = self.w_qkv[:, C:2 * C].T
        w_v_t = self.w_qkv[:, 2 * C:].T
        b_q = (self.b_qkv[0, :C] * self.scale)[:, None]
        b_k = self.b_qkv[0, C:2 * C][:, None]
        b_v = self.b_qkv[0, 2 * C:][:, None]
        q_blk = jnp.concatenate([G @ w_q_t, G @ b_q], axis=1)                   # (kkC, C+1)
        k_blk = jnp.concatenate([w_k_t, b_k], axis=1)                           # (C,   C+1)
        v_blk = jnp.concatenate([w_v_t, b_v], axis=1)                           # (C,   C+1)
        self.W_big_aug = jnp.concatenate([q_blk, k_blk, v_blk],
                                         axis=0).astype(jnp.bfloat16)           # (kkC+2C, C+1)
        self.Wproj_aug = jnp.concatenate([self.w_proj.T @ G.T,
                                          self.b_proj[0][:, None]],
                                         axis=1).astype(jnp.bfloat16)           # (C, kkC+1)

    def __call__(self, x):
        B, C, H, W = x.shape
        assert H == self.size and W == self.size and C == self.dim
        N = self.N
        bb = self.batch_block
        assert B % bb == 0, "batch must be divisible by batch_block (lane packing)"
        lanes = self.lanes
        kk, kkp, R = self.kk, self.kkp, self.R
        kkC = kk * C

        # Pack batch into the lane dimension: (C, B*N), batch-major lanes, plus the
        # ones row that carries the qkv bias through the augmented matmul.
        x_p = jnp.transpose(x.reshape(B, C, N), (1, 0, 2)).reshape(C, B * N)
        x_aug = jnp.concatenate([x_p, jnp.ones((1, B * N), x_p.dtype)],
                                axis=0).astype(jnp.bfloat16)                    # (C+1, B*N)

        kernel = make_dwa_kernel(C, kk, kkp, self.heads, lanes,
                                 self.pad_left, self.offsets)
        # TODO(synk): for production sizes, add a token-tile grid axis with a
        # +/- pad_left lane halo, set vmem_limit_bytes explicitly, and mark the
        # grid-invariant constant inputs pipeline_mode=pl.Buffered(1) so they are
        # not double-buffered against v7x's 64 MiB VMEM.
        out_p = pl.pallas_call(
            kernel,
            out_shape=jax.ShapeDtypeStruct((C, B * N), jnp.float32),
            grid=(B // bb,),
            in_specs=[
                pl.BlockSpec((C + 1, lanes), lambda g: (0, g)),            # packed tokens
                pl.BlockSpec(self.W_big_aug.shape, lambda g: (0, 0)),      # qkv weights+bias
                pl.BlockSpec(self.A_aug.shape, lambda g: (0, 0)),          # head/slot grouping
                pl.BlockSpec(self.A_T.shape, lambda g: (0, 0)),            # inverse grouping
                pl.BlockSpec(self.mask_pad.shape, lambda g: (0, 0)),       # post-softmax mask
                pl.BlockSpec(self.inb_expanded.shape, lambda g: (0, 0)),   # true-window mask
                pl.BlockSpec(self.Wproj_aug.shape, lambda g: (0, 0)),      # proj weights+bias
            ],
            out_specs=pl.BlockSpec((C, lanes), lambda g: (0, g)),
            scratch_shapes=[
                pltpu.VMEM((C, self.ext_len), jnp.float32),       # zero-haloed k tokens
                pltpu.VMEM((C, self.ext_len), jnp.float32),       # zero-haloed v tokens
                pltpu.VMEM((kkC + 1, lanes), jnp.bfloat16),       # e rows / p*v rows (+ones)
                pltpu.VMEM((kkC, lanes), jnp.float32),            # masked q rows / prob rows
                pltpu.VMEM((R, lanes), jnp.bfloat16),             # per-head probabilities
            ],
            compiler_params=pltpu.CompilerParams(
                dimension_semantics=("parallel",)),
        )(x_aug, self.W_big_aug, self.A_aug, self.A_T,
          self.mask_pad, self.inb_expanded, self.Wproj_aug)

        # Reference's final 'b (w h) c -> b c w h' equals this unpack for square inputs.
        out = out_p.reshape(C, B, N).transpose(1, 0, 2).reshape(B, C, H, W)
        return out, None, None


# --------------------------- pure-JAX reference ------------------------------

def reference_forward(mod, x):
    B, C, H, W = x.shape
    ws, p, heads, hd = mod.window_size, mod.padding_size, mod.heads, mod.head_dim
    kk = ws * ws
    N = H * W

    attn_mask = jnp.ones((1, 1, H, W), jnp.float32)
    attn_mask = jnp.pad(attn_mask, ((0, 0), (0, 0), (p, p), (p, p)))
    attn_mask_w = jnp.transpose(unfold_nchw(attn_mask, ws), (0, 2, 1))  # (1, N, kk)

    x_total = jnp.transpose(x, (0, 2, 3, 1)).reshape(B, N, C)
    qkv = x_total @ mod.w_qkv + mod.b_qkv[0]
    q, k, v = jnp.split(qkv, 3, axis=2)
    q = (q * mod.scale).reshape(B, N, heads, hd).transpose(0, 2, 1, 3)  # (B,h,N,hd)

    def rearr(t):
        img = t.transpose(0, 2, 1).reshape(B, C, H, W)
        img = jnp.pad(img, ((0, 0), (0, 0), (p, p), (p, p)))
        uf = unfold_nchw(img, ws)                                 # (B, C*kk, N)
        t_w = uf.reshape(B, kk, C, N).transpose(0, 3, 1, 2)       # 'b (n1 c) n2 -> b n2 n1 c'
        return t_w.reshape(B, N, kk, heads, hd).transpose(0, 3, 1, 2, 4)  # (B,h,N,kk,hd)

    k_w = rearr(k)
    v_w = rearr(v)

    attn = jnp.sum(q[:, :, :, None, :] * k_w, axis=-1)            # (B,h,N,kk)
    attn = jax.nn.softmax(attn, axis=-1)
    attn = attn * attn_mask_w[:, None, :, :]                      # mask AFTER softmax
    out = jnp.sum(attn[..., None] * v_w, axis=-2)                 # (B,h,N,hd)
    out = out.transpose(0, 2, 1, 3).reshape(B, N, C)
    out = out @ mod.w_proj + mod.b_proj[0]
    return out.reshape(B, H, W, C).transpose(0, 3, 1, 2)


# ----------------------------------- main ------------------------------------

if __name__ == "__main__":
    key = jax.random.PRNGKey(0)
    kparam, kx = jax.random.split(key)

    # dim=16, size=8 -> window_size=5, padding=2, K2=25, N=64.  batch_block=2 packs
    # two batch elements into the lane dim (128 lanes per tile) while keeping
    # grid=(2,) parallel steps (v7x megacore).
    B, dim, size, heads = 4, 16, 8, 4
    mod = DeformableWindowAttentionPallas(size, dim, heads, kparam, batch_block=2)
    x = jax.random.normal(kx, (B, dim, size, size), jnp.float32)

    out, _, _ = mod(x)
    out = jax.block_until_ready(out)
    assert out.shape == (B, dim, size, size)

    ref = reference_forward(mod, x)
    max_err = float(jnp.max(jnp.abs(out - ref)))
    if not bool(jnp.allclose(out, ref, atol=1e-2, rtol=1e-2)):
        raise AssertionError(f"Pallas output mismatch vs reference, max_err={max_err}")

    print("KERNEL_OK")
</pallas_src>

<mosaic_0001>
module attributes {stable_mosaic.version = 11 : i64} {
  func.func @kernel(%arg0: i32, %arg1: memref<17x128xbf16, #tpu.memory_space<vmem>>, %arg2: memref<432x17xbf16, #tpu.memory_space<vmem>>, %arg3: memref<128x401xbf16, #tpu.memory_space<vmem>>, %arg4: memref<400x128xbf16, #tpu.memory_space<vmem>>, %arg5: memref<128x128xf32, #tpu.memory_space<vmem>>, %arg6: memref<400x128xf32, #tpu.memory_space<vmem>>, %arg7: memref<16x401xbf16, #tpu.memory_space<vmem>>, %arg8: memref<16x128xf32, #tpu.memory_space<vmem>>, %arg9: memref<16x164xf32, #tpu.memory_space<vmem>>, %arg10: memref<16x164xf32, #tpu.memory_space<vmem>>, %arg11: memref<401x128xbf16, #tpu.memory_space<vmem>>, %arg12: memref<400x128xf32, #tpu.memory_space<vmem>>, %arg13: memref<128x128xbf16, #tpu.memory_space<vmem>>) attributes {dimension_semantics = [#tpu.dimension_semantics<parallel>], iteration_bounds = array<i64: 2>, scalar_prefetch = 0 : i64, scratch_operands = 5 : i64, tpu.core_type = #tpu.core_type<tc>, window_params = [{transform_indices = @transform_0, window_bounds = array<i64: 17, 128>}, {pipeline_mode = #tpu.pipeline_mode<synchronous>, transform_indices = @transform_1, window_bounds = array<i64: 432, 17>}, {pipeline_mode = #tpu.pipeline_mode<synchronous>, transform_indices = @transform_2, window_bounds = array<i64: 128, 401>}, {pipeline_mode = #tpu.pipeline_mode<synchronous>, transform_indices = @transform_3, window_bounds = array<i64: 400, 128>}, {pipeline_mode = #tpu.pipeline_mode<synchronous>, transform_indices = @transform_4, window_bounds = array<i64: 128, 128>}, {pipeline_mode = #tpu.pipeline_mode<synchronous>, transform_indices = @transform_5, window_bounds = array<i64: 400, 128>}, {pipeline_mode = #tpu.pipeline_mode<synchronous>, transform_indices = @transform_6, window_bounds = array<i64: 16, 401>}, {transform_indices = @transform_7, window_bounds = array<i64: 16, 128>}]} {
    %c0 = arith.constant 0 : index
    %c0_0 = arith.constant 0 : index
    %0 = vector.load %arg2[%c0, %c0_0] : memref<432x17xbf16, #tpu.memory_space<vmem>>, vector<432x17xbf16>
    %c0_1 = arith.constant 0 : index
    %c0_2 = arith.constant 0 : index
    %1 = vector.load %arg1[%c0_1, %c0_2] : memref<17x128xbf16, #tpu.memory_space<vmem>>, vector<17x128xbf16>
    %cst = arith.constant dense<0.000000e+00> : vector<432x128xf32>
    %2 = tpu.matmul %0, %1, %cst {dimension_numbers = #tpu.dot_dimension_numbers<[1], [0], [0], [1], [0, 0, 1, 1], [], []>} : vector<432x17xbf16>, vector<17x128xbf16>, vector<432x128xf32> -> vector<432x128xf32>
    %cst_3 = arith.constant 0.000000e+00 : f32
    %3 = vector.broadcast %cst_3 : f32 to vector<16x18xf32>
    %c0_4 = arith.constant 0 : index
    %c0_5 = arith.constant 0 : index
    %4 = vector.load %arg9[%c0_4, %c0_5] : memref<16x164xf32, #tpu.memory_space<vmem>>, vector<16x18xf32>
    tpu.vector_store %arg9[%c0_4, %c0_5], %3 {strides = array<i32>} : memref<16x164xf32, #tpu.memory_space<vmem>>, vector<16x18xf32>,
    %c0_6 = arith.constant 0 : index
    %c146 = arith.constant 146 : index
    %5 = vector.load %arg9[%c0_6, %c146] : memref<16x164xf32, #tpu.memory_space<vmem>>, vector<16x18xf32>
    tpu.vector_store %arg9[%c0_6, %c146], %3 {strides = array<i32>} : memref<16x164xf32, #tpu.memory_space<vmem>>, vector<16x18xf32>,
    %c0_7 = arith.constant 0 : index
    %c0_8 = arith.constant 0 : index
    %6 = vector.load %arg10[%c0_7, %c0_8] : memref<16x164xf32, #tpu.memory_space<vmem>>, vector<16x18xf32>
    tpu.vector_store %arg10[%c0_7, %c0_8], %3 {strides = array<i32>} : memref<16x164xf32, #tpu.memory_space<vmem>>, vector<16x18xf32>,
    %c0_9 = arith.constant 0 : index
    %c146_10 = arith.constant 146 : index
    %7 = vector.load %arg10[%c0_9, %c146_10] : memref<16x164xf32, #tpu.memory_space<vmem>>, vector<16x18xf32>
    tpu.vector_store %arg10[%c0_9, %c146_10], %3 {strides = array<i32>} : memref<16x164xf32, #tpu.memory_space<vmem>>, vector<16x18xf32>,
    %8 = vector.extract_strided_slice %2 {offsets = [400, 0], sizes = [16, 128], strides = [1, 1]} : vector<432x128xf32> to vector<16x128xf32>
    %c0_11 = arith.constant 0 : index
    %c18 = arith.constant 18 : index
    %9 = vector.load %arg9[%c0_11, %c18] : memref<16x164xf32, #tpu.memory_space<vmem>>, vector<16x128xf32>
    tpu.vector_store %arg9[%c0_11, %c18], %8 {strides = array<i32>} : memref<16x164xf32, #tpu.memory_space<vmem>>, vector<16x128xf32>,
    %10 = vector.extract_strided_slice %2 {offsets = [416, 0], sizes = [16, 128], strides = [1, 1]} : vector<432x128xf32> to vector<16x128xf32>
    %c0_12 = arith.constant 0 : index
    %c18_13 = arith.constant 18 : index
    %11 = vector.load %arg10[%c0_12, %c18_13] : memref<16x164xf32, #tpu.memory_space<vmem>>, vector<16x128xf32>
    tpu.vector_store %arg10[%c0_12, %c18_13], %10 {strides = array<i32>} : memref<16x164xf32, #tpu.memory_space<vmem>>, vector<16x128xf32>,
    %cst_14 = arith.constant 1.000000e+00 : bf16
    %12 = vector.broadcast %cst_14 : bf16 to vector<1x128xbf16>
    %c400 = arith.constant 400 : index
    %c0_15 = arith.constant 0 : index
    %13 = vector.load %arg11[%c400, %c0_15] : memref<401x128xbf16, #tpu.memory_space<vmem>>, vector<1x128xbf16>
    tpu.vector_store %arg11[%c400, %c0_15], %12 {strides = array<i32>} : memref<401x128xbf16, #tpu.memory_space<vmem>>, vector<1x128xbf16>,
    %14 = vector.extract_strided_slice %2 {offsets = [0, 0], sizes = [400, 128], strides = [1, 1]} : vector<432x128xf32> to vector<400x128xf32>
    %c0_16 = arith.constant 0 : index
    %c0_17 = arith.constant 0 : index
    %15 = vector.load %arg6[%c0_16, %c0_17] : memref<400x128xf32, #tpu.memory_space<vmem>>, vector<400x128xf32>
    %16 = arith.mulf %14, %15 : vector<400x128xf32>
    %c0_18 = arith.constant 0 : index
    %c0_19 = arith.constant 0 : index
    %17 = vector.load %arg12[%c0_18, %c0_19] : memref<400x128xf32, #tpu.memory_space<vmem>>, vector<400x128xf32>
    tpu.vector_store %arg12[%c0_18, %c0_19], %16 {strides = array<i32>} : memref<400x128xf32, #tpu.memory_space<vmem>>, vector<400x128xf32>,
    %c0_20 = arith.constant 0 : index
    %c0_21 = arith.constant 0 : index
    %18 = vector.load %arg12[%c0_20, %c0_21] : memref<400x128xf32, #tpu.memory_space<vmem>>, vector<16x128xf32>
    %c0_22 = arith.constant 0 : index
    %c0_23 = arith.constant 0 : index
    %19 = vector.load %arg9[%c0_22, %c0_23] : memref<16x164xf32, #tpu.memory_space<vmem>>, vector<16x128xf32>
    %20 = arith.mulf %18, %19 : vector<16x128xf32>
    %21 = arith.truncf %20 : vector<16x128xf32> to vector<16x128xbf16>
    %c0_24 = arith.constant 0 : index
    %c0_25 = arith.constant 0 : index
    %22 = vector.load %arg11[%c0_24, %c0_25] : memref<401x128xbf16, #tpu.memory_space<vmem>>, vector<16x128xbf16>
    tpu.vector_store %arg11[%c0_24, %c0_25], %21 {strides = array<i32>} : memref<401x128xbf16, #tpu.memory_space<vmem>>, vector<16x128xbf16>,
    %c16 = arith.constant 16 : index
    %c0_26 = arith.constant 0 : index
    %23 = vector.load %arg12[%c16, %c0_26] : memref<400x128xf32, #tpu.memory_space<vmem>>, vector<16x128xf32>
    %c0_27 = arith.constant 0 : index
    %c1 = arith.constant 1 : index
    %24 = vector.load %arg9[%c0_27, %c1] : memref<16x164xf32, #tpu.memory_space<vmem>>, vector<16x128xf32>
    %25 = arith.mulf %23, %24 : vector<16x128xf32>
    %26 = arith.truncf %25 : vector<16x128xf32> to vector<16x128xbf16>
    %c16_28 = arith.constant 16 : index
    %c0_29 = arith.constant 0 : index
    %27 = vector.load %arg11[%c16_28, %c0_29] : memref<401x128xbf16, #tpu.memory_space<vmem>>, vector<16x128xbf16>
    tpu.vector_store %arg11[%c16_28, %c0_29], %26 {strides = array<i32>} : memref<401x128xbf16, #tpu.memory_space<vmem>>, vector<16x128xbf16>,
    %c32 = arith.constant 32 : index
    %c0_30 = arith.constant 0 : index
    %28 = vector.load %arg12[%c32, %c0_30] : memref<400x128xf32, #tpu.memory_space<vmem>>, vector<16x128xf32>
    %c0_31 = arith.constant 0 : index
    %c2 = arith.constant 2 : index
    %29 = vector.load %arg9[%c0_31, %c2] : memref<16x164xf32, #tpu.memory_space<vmem>>, vector<16x128xf32>
    %30 = arith.mulf %28, %29 : vector<16x128xf32>
    %31 = arith.truncf %30 : vector<16x128xf32> to vector<16x128xbf16>
    %c32_32 = arith.constant 32 : index
    %c0_33 = arith.constant 0 : index
    %32 = vector.load %arg11[%c32_32, %c0_33] : memref<401x128xbf16, #tpu.memory_space<vmem>>, vector<16x128xbf16>
    tpu.vector_store %arg11[%c32_32, %c0_33], %31 {strides = array<i32>} : memref<401x128xbf16, #tpu.memory_space<vmem>>, vector<16x128xbf16>,
    %c48 = arith.constant 48 : index
    %c0_34 = arith.constant 0 : index
    %33 = vector.load %arg12[%c48, %c0_34] : memref<400x128xf32, #tpu.memory_space<vmem>>, vector<16x128xf32>
    %c0_35 = arith.constant 0 : index
    %c3 = arith.constant 3 : index
    %34 = vector.load %arg9[%c0_35, %c3] : memref<16x164xf32, #tpu.memory_space<vmem>>, vector<16x128xf32>
    %35 = arith.mulf %33, %34 : vector<16x128xf32>
    %36 = arith.truncf %35 : vector<16x128xf32> to vector<16x128xbf16>
    %c48_36 = arith.constant 48 : index
    %c0_37 = arith.constant 0 : index
    %37 = vector.load %arg11[%c48_36, %c0_37] : memref<401x128xbf16, #tpu.memory_space<vmem>>, vector<16x128xbf16>
    tpu.vector_store %arg11[%c48_36, %c0_37], %36 {strides = array<i32>} : memref<401x128xbf16, #tpu.memory_space<vmem>>, vector<16x128xbf16>,
    %c64 = arith.constant 64 : index
    %c0_38 = arith.constant 0 : index
    %38 = vector.load %arg12[%c64, %c0_38] : memref<400x128xf32, #tpu.memory_space<vmem>>, vector<16x128xf32>
    %c0_39 = arith.constant 0 : index
    %c4 = arith.constant 4 : index
    %39 = vector.load %arg9[%c0_39, %c4] : memref<16x164xf32, #tpu.memory_space<vmem>>, vector<16x128xf32>
    %40 = arith.mulf %38, %39 : vector<16x128xf32>
    %41 = arith.truncf %40 : vector<16x128xf32> to vector<16x128xbf16>
    %c64_40 = arith.constant 64 : index
    %c0_41 = arith.constant 0 : index
    %42 = vector.load %arg11[%c64_40, %c0_41] : memref<401x128xbf16, #tpu.memory_space<vmem>>, vector<16x128xbf16>
    tpu.vector_store %arg11[%c64_40, %c0_41], %41 {strides = array<i32>} : memref<401x128xbf16, #tpu.memory_space<vmem>>, vector<16x128xbf16>,
    %c80 = arith.constant 80 : index
    %c0_42 = arith.constant 0 : index
    %43 = vector.load %arg12[%c80, %c0_42] : memref<400x128xf32, #tpu.memory_space<vmem>>, vector<16x128xf32>
    %c0_43 = arith.constant 0 : index
    %c8 = arith.constant 8 : index
    %44 = vector.load %arg9[%c0_43, %c8] : memref<16x164xf32, #tpu.memory_space<vmem>>, vector<16x128xf32>
    %45 = arith.mulf %43, %44 : vector<16x128xf32>
    %46 = arith.truncf %45 : vector<16x128xf32> to vector<16x128xbf16>
    %c80_44 = arith.constant 80 : index
    %c0_45 = arith.constant 0 : index
    %47 = vector.load %arg11[%c80_44, %c0_45] : memref<401x128xbf16, #tpu.memory_space<vmem>>, vector<16x128xbf16>
    tpu.vector_store %arg11[%c80_44, %c0_45], %46 {strides = array<i32>} : memref<401x128xbf16, #tpu.memory_space<vmem>>, vector<16x128xbf16>,
    %c96 = arith.constant 96 : index
    %c0_46 = arith.constant 0 : index
    %48 = vector.load %arg12[%c96, %c0_46] : memref<400x128xf32, #tpu.memory_space<vmem>>, vector<16x128xf32>
    %c0_47 = arith.constant 0 : index
    %c9 = arith.constant 9 : index
    %49 = vector.load %arg9[%c0_47, %c9] : memref<16x164xf32, #tpu.memory_space<vmem>>, vector<16x128xf32>
    %50 = arith.mulf %48, %49 : vector<16x128xf32>
    %51 = arith.truncf %50 : vector<16x128xf32> to vector<16x128xbf16>
    %c96_48 = arith.constant 96 : index
    %c0_49 = arith.constant 0 : index
    %52 = vector.load %arg11[%c96_48, %c0_49] : memref<401x128xbf16, #tpu.memory_space<vmem>>, vector<16x128xbf16>
    tpu.vector_store %arg11[%c96_48, %c0_49], %51 {strides = array<i32>} : memref<401x128xbf16, #tpu.memory_space<vmem>>, vector<16x128xbf16>,
    %c112 = arith.constant 112 : index
    %c0_50 = arith.constant 0 : index
    %53 = vector.load %arg12[%c112, %c0_50] : memref<400x128xf32, #tpu.memory_space<vmem>>, vector<16x128xf32>
    %c0_51 = arith.constant 0 : index
    %c10 = arith.constant 10 : index
    %54 = vector.load %arg9[%c0_51, %c10] : memref<16x164xf32, #tpu.memory_space<vmem>>, vector<16x128xf32>
    %55 = arith.mulf %53, %54 : vector<16x128xf32>
    %56 = arith.truncf %55 : vector<16x128xf32> to vector<16x128xbf16>
    %c112_52 = arith.constant 112 : index
    %c0_53 = arith.constant 0 : index
    %57 = vector.load %arg11[%c112_52, %c0_53] : memref<401x128xbf16, #tpu.memory_space<vmem>>, vector<16x128xbf16>
    tpu.vector_store %arg11[%c112_52, %c0_53], %56 {strides = array<i32>} : memref<401x128xbf16, #tpu.memory_space<vmem>>, vector<16x128xbf16>,
    %c128 = arith.constant 128 : index
    %c0_54 = arith.constant 0 : index
    %58 = vector.load %arg12[%c128, %c0_54] : memref<400x128xf32, #tpu.memory_space<vmem>>, vector<16x128xf32>
    %c0_55 = arith.constant 0 : index
    %c11 = arith.constant 11 : index
    %59 = vector.load %arg9[%c0_55, %c11] : memref<16x164xf32, #tpu.memory_space<vmem>>, vector<16x128xf32>
    %60 = arith.mulf %58, %59 : vector<16x128xf32>
    %61 = arith.truncf %60 : vector<16x128xf32> to vector<16x128xbf16>
    %c128_56 = arith.constant 128 : index
    %c0_57 = arith.constant 0 : index
    %62 = vector.load %arg11[%c128_56, %c0_57] : memref<401x128xbf16, #tpu.memory_space<vmem>>, vector<16x128xbf16>
    tpu.vector_store %arg11[%c128_56, %c0_57], %61 {strides = array<i32>} : memref<401x128xbf16, #tpu.memory_space<vmem>>, vector<16x128xbf16>,
    %c144 = arith.constant 144 : index
    %c0_58 = arith.constant 0 : index
    %63 = vector.load %arg12[%c144, %c0_58] : memref<400x128xf32, #tpu.memory_space<vmem>>, vector<16x128xf32>
    %c0_59 = arith.constant 0 : index
    %c12 = arith.constant 12 : index
    %64 = vector.load %arg9[%c0_59, %c12] : memref<16x164xf32, #tpu.memory_space<vmem>>, vector<16x128xf32>
    %65 = arith.mulf %63, %64 : vector<16x128xf32>
    %66 = arith.truncf %65 : vector<16x128xf32> to vector<16x128xbf16>
    %c144_60 = arith.constant 144 : index
    %c0_61 = arith.constant 0 : index
    %67 = vector.load %arg11[%c144_60, %c0_61] : memref<401x128xbf16, #tpu.memory_space<vmem>>, vector<16x128xbf16>
    tpu.vector_store %arg11[%c144_60, %c0_61], %66 {strides = array<i32>} : memref<401x128xbf16, #tpu.memory_space<vmem>>, vector<16x128xbf16>,
    %c160 = arith.constant 160 : index
    %c0_62 = arith.constant 0 : index
    %68 = vector.load %arg12[%c160, %c0_62] : memref<400x128xf32, #tpu.memory_space<vmem>>, vector<16x128xf32>
    %c0_63 = arith.constant 0 : index
    %c16_64 = arith.constant 16 : index
    %69 = vector.load %arg9[%c0_63, %c16_64] : memref<16x164xf32, #tpu.memory_space<vmem>>, vector<16x128xf32>
    %70 = arith.mulf %68, %69 : vector<16x128xf32>
    %71 = arith.truncf %70 : vector<16x128xf32> to vector<16x128xbf16>
    %c160_65 = arith.constant 160 : index
    %c0_66 = arith.constant 0 : index
    %72 = vector.load %arg11[%c160_65, %c0_66] : memref<401x128xbf16, #tpu.memory_space<vmem>>, vector<16x128xbf16>
    tpu.vector_store %arg11[%c160_65, %c0_66], %71 {strides = array<i32>} : memref<401x128xbf16, #tpu.memory_space<vmem>>, vector<16x128xbf16>,
    %c176 = arith.constant 176 : index
    %c0_67 = arith.constant 0 : index
    %73 = vector.load %arg12[%c176, %c0_67] : memref<400x128xf32, #tpu.memory_space<vmem>>, vector<16x128xf32>
    %c0_68 = arith.constant 0 : index
    %c17 = arith.constant 17 : index
    %74 = vector.load %arg9[%c0_68, %c17] : memref<16x164xf32, #tpu.memory_space<vmem>>, vector<16x128xf32>
    %75 = arith.mulf %73, %74 : vector<16x128xf32>
    %76 = arith.truncf %75 : vector<16x128xf32> to vector<16x128xbf16>
    %c176_69 = arith.constant 176 : index
    %c0_70 = arith.constant 0 : index
    %77 = vector.load %arg11[%c176_69, %c0_70] : memref<401x128xbf16, #tpu.memory_space<vmem>>, vector<16x128xbf16>
    tpu.vector_store %arg11[%c176_69, %c0_70], %76 {strides = array<i32>} : memref<401x128xbf16, #tpu.memory_space<vmem>>, vector<16x128xbf16>,
    %c192 = arith.constant 192 : index
    %c0_71 = arith.constant 0 : index
    %78 = vector.load %arg12[%c192, %c0_71] : memref<400x128xf32, #tpu.memory_space<vmem>>, vector<16x128xf32>
    %c0_72 = arith.constant 0 : index
    %c18_73 = arith.constant 18 : index
    %79 = vector.load %arg9[%c0_72, %c18_73] : memref<16x164xf32, #tpu.memory_space<vmem>>, vector<16x128xf32>
    %80 = arith.mulf %78, %79 : vector<16x128xf32>
    %81 = arith.truncf %80 : vector<16x128xf32> to vector<16x128xbf16>
    %c192_74 = arith.constant 192 : index
    %c0_75 = arith.constant 0 : index
    %82 = vector.load %arg11[%c192_74, %c0_75] : memref<401x128xbf16, #tpu.memory_space<vmem>>, vector<16x128xbf16>
    tpu.vector_store %arg11[%c192_74, %c0_75], %81 {strides = array<i32>} : memref<401x128xbf16, #tpu.memory_space<vmem>>, vector<16x128xbf16>,
    %c208 = arith.constant 208 : index
    %c0_76 = arith.constant 0 : index
    %83 = vector.load %arg12[%c208, %c0_76] : memref<400x128xf32, #tpu.memory_space<vmem>>, vector<16x128xf32>
    %c0_77 = arith.constant 0 : index
    %c19 = arith.constant 19 : index
    %84 = vector.load %arg9[%c0_77, %c19] : memref<16x164xf32, #tpu.memory_space<vmem>>, vector<16x128xf32>
    %85 = arith.mulf %83, %84 : vector<16x128xf32>
    %86 = arith.truncf %85 : vector<16x128xf32> to vector<16x128xbf16>
    %c208_78 = arith.constant 208 : index
    %c0_79 = arith.constant 0 : index
    %87 = vector.load %arg11[%c208_78, %c0_79] : memref<401x128xbf16, #tpu.memory_space<vmem>>, vector<16x128xbf16>
    tpu.vector_store %arg11[%c208_78, %c0_79], %86 {strides = array<i32>} : memref<401x128xbf16, #tpu.memory_space<vmem>>, vector<16x128xbf16>,
    %c224 = arith.constant 224 : index
    %c0_80 = arith.constant 0 : index
    %88 = vector.load %arg12[%c224, %c0_80] : memref<400x128xf32, #tpu.memory_space<vmem>>, vector<16x128xf32>
    %c0_81 = arith.constant 0 : index
    %c20 = arith.constant 20 : index
    %89 = vector.load %arg9[%c0_81, %c20] : memref<16x164xf32, #tpu.memory_space<vmem>>, vector<16x128xf32>
    %90 = arith.mulf %88, %89 : vector<16x128xf32>
    %91 = arith.truncf %90 : vector<16x128xf32> to vector<16x128xbf16>
    %c224_82 = arith.constant 224 : index
    %c0_83 = arith.constant 0 : index
    %92 = vector.load %arg11[%c224_82, %c0_83] : memref<401x128xbf16, #tpu.memory_space<vmem>>, vector<16x128xbf16>
    tpu.vector_store %arg11[%c224_82, %c0_83], %91 {strides = array<i32>} : memref<401x128xbf16, #tpu.memory_space<vmem>>, vector<16x128xbf16>,
    %c240 = arith.constant 240 : index
    %c0_84 = arith.constant 0 : index
    %93 = vector.load %arg12[%c240, %c0_84] : memref<400x128xf32, #tpu.memory_space<vmem>>, vector<16x128xf32>
    %c0_85 = arith.constant 0 : index
    %c24 = arith.constant 24 : index
    %94 = vector.load %arg9[%c0_85, %c24] : memref<16x164xf32, #tpu.memory_space<vmem>>, vector<16x128xf32>
    %95 = arith.mulf %93, %94 : vector<16x128xf32>
    %96 = arith.truncf %95 : vector<16x128xf32> to vector<16x128xbf16>
    %c240_86 = arith.constant 240 : index
    %c0_87 = arith.constant 0 : index
    %97 = vector.load %arg11[%c240_86, %c0_87] : memref<401x128xbf16, #tpu.memory_space<vmem>>, vector<16x128xbf16>
    tpu.vector_store %arg11[%c240_86, %c0_87], %96 {strides = array<i32>} : memref<401x128xbf16, #tpu.memory_space<vmem>>, vector<16x128xbf16>,
    %c256 = arith.constant 256 : index
    %c0_88 = arith.constant 0 : index
    %98 = vector.load %arg12[%c256, %c0_88] : memref<400x128xf32, #tpu.memory_space<vmem>>, vector<16x128xf32>
    %c0_89 = arith.constant 0 : index
    %c25 = arith.constant 25 : index
    %99 = vector.load %arg9[%c0_89, %c25] : memref<16x164xf32, #tpu.memory_space<vmem>>, vector<16x128xf32>
    %100 = arith.mulf %98, %99 : vector<16x128xf32>
    %101 = arith.truncf %100 : vector<16x128xf32> to vector<16x128xbf16>
    %c256_90 = arith.constant 256 : index
    %c0_91 = arith.constant 0 : index
    %102 = vector.load %arg11[%c256_90, %c0_91] : memref<401x128xbf16, #tpu.memory_space<vmem>>, vector<16x128xbf16>
    tpu.vector_store %arg11[%c256_90, %c0_91], %101 {strides = array<i32>} : memref<401x128xbf16, #tpu.memory_space<vmem>>, vector<16x128xbf16>,
    %c272 = arith.constant 272 : index
    %c0_92 = arith.constant 0 : index
    %103 = vector.load %arg12[%c272, %c0_92] : memref<400x128xf32, #tpu.memory_space<vmem>>, vector<16x128xf32>
    %c0_93 = arith.constant 0 : index
    %c26 = arith.constant 26 : index
    %104 = vector.load %arg9[%c0_93, %c26] : memref<16x164xf32, #tpu.memory_space<vmem>>, vector<16x128xf32>
    %105 = arith.mulf %103, %104 : vector<16x128xf32>
    %106 = arith.truncf %105 : vector<16x128xf32> to vector<16x128xbf16>
    %c272_94 = arith.constant 272 : index
    %c0_95 = arith.constant 0 : index
    %107 = vector.load %arg11[%c272_94, %c0_95] : memref<401x128xbf16, #tpu.memory_space<vmem>>, vector<16x128xbf16>
    tpu.vector_store %arg11[%c272_94, %c0_95], %106 {strides = array<i32>} : memref<401x128xbf16, #tpu.memory_space<vmem>>, vector<16x128xbf16>,
    %c288 = arith.constant 288 : index
    %c0_96 = arith.constant 0 : index
    %108 = vector.load %arg12[%c288, %c0_96] : memref<400x128xf32, #tpu.memory_space<vmem>>, vector<16x128xf32>
    %c0_97 = arith.constant 0 : index
    %c27 = arith.constant 27 : index
    %109 = vector.load %arg9[%c0_97, %c27] : memref<16x164xf32, #tpu.memory_space<vmem>>, vector<16x128xf32>
    %110 = arith.mulf %108, %109 : vector<16x128xf32>
    %111 = arith.truncf %110 : vector<16x128xf32> to vector<16x128xbf16>
    %c288_98 = arith.constant 288 : index
    %c0_99 = arith.constant 0 : index
    %112 = vector.load %arg11[%c288_98, %c0_99] : memref<401x128xbf16, #tpu.memory_space<vmem>>, vector<16x128xbf16>
    tpu.vector_store %arg11[%c288_98, %c0_99], %111 {strides = array<i32>} : memref<401x128xbf16, #tpu.memory_space<vmem>>, vector<16x128xbf16>,
    %c304 = arith.constant 304 : index
    %c0_100 = arith.constant 0 : index
    %113 = vector.load %arg12[%c304, %c0_100] : memref<400x128xf32, #tpu.memory_space<vmem>>, vector<16x128xf32>
    %c0_101 = arith.constant 0 : index
    %c28 = arith.constant 28 : index
    %114 = vector.load %arg9[%c0_101, %c28] : memref<16x164xf32, #tpu.memory_space<vmem>>, vector<16x128xf32>
    %115 = arith.mulf %113, %114 : vector<16x128xf32>
    %116 = arith.truncf %115 : vector<16x128xf32> to vector<16x128xbf16>
    %c304_102 = arith.constant 304 : index
    %c0_103 = arith.constant 0 : index
    %117 = vector.load %arg11[%c304_102, %c0_103] : memref<401x128xbf16, #tpu.memory_space<vmem>>, vector<16x128xbf16>
    tpu.vector_store %arg11[%c304_102, %c0_103], %116 {strides = array<i32>} : memref<401x128xbf16, #tpu.memory_space<vmem>>, vector<16x128xbf16>,
    %c320 = arith.constant 320 : index
    %c0_104 = arith.constant 0 : index
    %118 = vector.load %arg12[%c320, %c0_104] : memref<400x128xf32, #tpu.memory_space<vmem>>, vector<16x128xf32>
    %c0_105 = arith.constant 0 : index
    %c32_106 = arith.constant 32 : index
    %119 = vector.load %arg9[%c0_105, %c32_106] : memref<16x164xf32, #tpu.memory_space<vmem>>, vector<16x128xf32>
    %120 = arith.mulf %118, %119 : vector<16x128xf32>
    %121 = arith.truncf %120 : vector<16x128xf32> to vector<16x128xbf16>
    %c320_107 = arith.constant 320 : index
    %c0_108 = arith.constant 0 : index
    %122 = vector.load %arg11[%c320_107, %c0_108] : memref<401x128xbf16, #tpu.memory_space<vmem>>, vector<16x128xbf16>
    tpu.vector_store %arg11[%c320_107, %c0_108], %121 {strides = array<i32>} : memref<401x128xbf16, #tpu.memory_space<vmem>>, vector<16x128xbf16>,
    %c336 = arith.constant 336 : index
    %c0_109 = arith.constant 0 : index
    %123 = vector.load %arg12[%c336, %c0_109] : memref<400x128xf32, #tpu.memory_space<vmem>>, vector<16x128xf32>
    %c0_110 = arith.constant 0 : index
    %c33 = arith.constant 33 : index
    %124 = vector.load %arg9[%c0_110, %c33] : memref<16x164xf32, #tpu.memory_space<vmem>>, vector<16x128xf32>
    %125 = arith.mulf %123, %124 : vector<16x128xf32>
    %126 = arith.truncf %125 : vector<16x128xf32> to vector<16x128xbf16>
    %c336_111 = arith.constant 336 : index
    %c0_112 = arith.constant 0 : index
    %127 = vector.load %arg11[%c336_111, %c0_112] : memref<401x128xbf16, #tpu.memory_space<vmem>>, vector<16x128xbf16>
    tpu.vector_store %arg11[%c336_111, %c0_112], %126 {strides = array<i32>} : memref<401x128xbf16, #tpu.memory_space<vmem>>, vector<16x128xbf16>,
    %c352 = arith.constant 352 : index
    %c0_113 = arith.constant 0 : index
    %128 = vector.load %arg12[%c352, %c0_113] : memref<400x128xf32, #tpu.memory_space<vmem>>, vector<16x128xf32>
    %c0_114 = arith.constant 0 : index
    %c34 = arith.constant 34 : index
    %129 = vector.load %arg9[%c0_114, %c34] : memref<16x164xf32, #tpu.memory_space<vmem>>, vector<16x128xf32>
    %130 = arith.mulf %128, %129 : vector<16x128xf32>
    %131 = arith.truncf %130 : vector<16x128xf32> to vector<16x128xbf16>
    %c352_115 = arith.constant 352 : index
    %c0_116 = arith.constant 0 : index
    %132 = vector.load %arg11[%c352_115, %c0_116] : memref<401x128xbf16, #tpu.memory_space<vmem>>, vector<16x128xbf16>
    tpu.vector_store %arg11[%c352_115, %c0_116], %131 {strides = array<i32>} : memref<401x128xbf16, #tpu.memory_space<vmem>>, vector<16x128xbf16>,
    %c368 = arith.constant 368 : index
    %c0_117 = arith.constant 0 : index
    %133 = vector.load %arg12[%c368, %c0_117] : memref<400x128xf32, #tpu.memory_space<vmem>>, vector<16x128xf32>
    %c0_118 = arith.constant 0 : index
    %c35 = arith.constant 35 : index
    %134 = vector.load %arg9[%c0_118, %c35] : memref<16x164xf32, #tpu.memory_space<vmem>>, vector<16x128xf32>
    %135 = arith.mulf %133, %134 : vector<16x128xf32>
    %136 = arith.truncf %135 : vector<16x128xf32> to vector<16x128xbf16>
    %c368_119 = arith.constant 368 : index
    %c0_120 = arith.constant 0 : index
    %137 = vector.load %arg11[%c368_119, %c0_120] : memref<401x128xbf16, #tpu.memory_space<vmem>>, vector<16x128xbf16>
    tpu.vector_store %arg11[%c368_119, %c0_120], %136 {strides = array<i32>} : memref<401x128xbf16, #tpu.memory_space<vmem>>, vector<16x128xbf16>,
    %c384 = arith.constant 384 : index
    %c0_121 = arith.constant 0 : index
    %138 = vector.load %arg12[%c384, %c0_121] : memref<400x128xf32, #tpu.memory_space<vmem>>, vector<16x128xf32>
    %c0_122 = arith.constant 0 : index
    %c36 = arith.constant 36 : index
    %139 = vector.load %arg9[%c0_122, %c36] : memref<16x164xf32, #tpu.memory_space<vmem>>, vector<16x128xf32>
    %140 = arith.mulf %138, %139 : vector<16x128xf32>
    %141 = arith.truncf %140 : vector<16x128xf32> to vector<16x128xbf16>
    %c384_123 = arith.constant 384 : index
    %c0_124 = arith.constant 0 : index
    %142 = vector.load %arg11[%c384_123, %c0_124] : memref<401x128xbf16, #tpu.memory_space<vmem>>, vector<16x128xbf16>
    tpu.vector_store %arg11[%c384_123, %c0_124], %141 {strides = array<i32>} : memref<401x128xbf16, #tpu.memory_space<vmem>>, vector<16x128xbf16>,
    %c0_125 = arith.constant 0 : index
    %c0_126 = arith.constant 0 : index
    %143 = vector.load %arg3[%c0_125, %c0_126] : memref<128x401xbf16, #tpu.memory_space<vmem>>, vector<128x401xbf16>
    %c0_127 = arith.constant 0 : index
    %c0_128 = arith.constant 0 : index
    %144 = vector.load %arg11[%c0_127, %c0_128] : memref<401x128xbf16, #tpu.memory_space<vmem>>, vector<401x128xbf16>
    %cst_129 = arith.constant dense<0.000000e+00> : vector<128x128xf32>
    %145 = tpu.matmul %143, %144, %cst_129 {dimension_numbers = #tpu.dot_dimension_numbers<[1], [0], [0], [1], [0, 0, 1, 1], [], []>} : vector<128x401xbf16>, vector<401x128xbf16>, vector<128x128xf32> -> vector<128x128xf32>
    %146 = vector.extract_strided_slice %145 {offsets = [0, 0], sizes = [32, 128], strides = [1, 1]} : vector<128x128xf32> to vector<32x128xf32>
    %cst_130 = arith.constant dense<0xFF800000> : vector<128xf32>
    %147 = vector.multi_reduction <maximumf>, %146, %cst_130 [0] : vector<32x128xf32> to vector<128xf32>
    %148 = vector.shape_cast %147 : vector<128xf32> to vector<1x128xf32>
    %149 = vector.broadcast %148 : vector<1x128xf32> to vector<32x128xf32>
    %150 = arith.subf %146, %149 : vector<32x128xf32>
    %151 = math.exp %150 : vector<32x128xf32>
    %cst_131 = arith.constant dense<0.000000e+00> : vector<128xf32>
    %152 = vector.multi_reduction <add>, %151, %cst_131 [0] : vector<32x128xf32> to vector<128xf32>
    %153 = vector.shape_cast %152 : vector<128xf32> to vector<1x128xf32>
    %154 = tpu.reciprocal %153 {approx = true} : vector<1x128xf32> -> vector<1x128xf32>
    %155 = vector.broadcast %154 : vector<1x128xf32> to vector<32x128xf32>
    %156 = arith.mulf %151, %155 : vector<32x128xf32>
    %c0_132 = arith.constant 0 : index
    %c0_133 = arith.constant 0 : index
    %157 = vector.load %arg5[%c0_132, %c0_133] : memref<128x128xf32, #tpu.memory_space<vmem>>, vector<32x128xf32>
    %158 = arith.mulf %156, %157 : vector<32x128xf32>
    %159 = arith.truncf %158 : vector<32x128xf32> to vector<32x128xbf16>
    %c0_134 = arith.constant 0 : index
    %c0_135 = arith.constant 0 : index
    %160 = vector.load %arg13[%c0_134, %c0_135] : memref<128x128xbf16, #tpu.memory_space<vmem>>, vector<32x128xbf16>
    tpu.vector_store %arg13[%c0_134, %c0_135], %159 {strides = array<i32>} : memref<128x128xbf16, #tpu.memory_space<vmem>>, vector<32x128xbf16>,
    %161 = vector.extract_strided_slice %145 {offsets = [32, 0], sizes = [32, 128], strides = [1, 1]} : vector<128x128xf32> to vector<32x128xf32>
    %cst_136 = arith.constant dense<0xFF800000> : vector<128xf32>
    %162 = vector.multi_reduction <maximumf>, %161, %cst_136 [0] : vector<32x128xf32> to vector<128xf32>
    %163 = vector.shape_cast %162 : vector<128xf32> to vector<1x128xf32>
    %164 = vector.broadcast %163 : vector<1x128xf32> to vector<32x128xf32>
    %165 = arith.subf %161, %164 : vector<32x128xf32>
    %166 = math.exp %165 : vector<32x128xf32>
    %cst_137 = arith.constant dense<0.000000e+00> : vector<128xf32>
    %167 = vector.multi_reduction <add>, %166, %cst_137 [0] : vector<32x128xf32> to vector<128xf32>
    %168 = vector.shape_cast %167 : vector<128xf32> to vector<1x128xf32>
    %169 = tpu.reciprocal %168 {approx = true} : vector<1x128xf32> -> vector<1x128xf32>
    %170 = vector.broadcast %169 : vector<1x128xf32> to vector<32x128xf32>
    %171 = arith.mulf %166, %170 : vector<32x128xf32>
    %c32_138 = arith.constant 32 : index
    %c0_139 = arith.constant 0 : index
    %172 = vector.load %arg5[%c32_138, %c0_139] : memref<128x128xf32, #tpu.memory_space<vmem>>, vector<32x128xf32>
    %173 = arith.mulf %171, %172 : vector<32x128xf32>
    %174 = arith.truncf %173 : vector<32x128xf32> to vector<32x128xbf16>
    %c32_140 = arith.constant 32 : index
    %c0_141 = arith.constant 0 : index
    %175 = vector.load %arg13[%c32_140, %c0_141] : memref<128x128xbf16, #tpu.memory_space<vmem>>, vector<32x128xbf16>
    tpu.vector_store %arg13[%c32_140, %c0_141], %174 {strides = array<i32>} : memref<128x128xbf16, #tpu.memory_space<vmem>>, vector<32x128xbf16>,
    %176 = vector.extract_strided_slice %145 {offsets = [64, 0], sizes = [32, 128], strides = [1, 1]} : vector<128x128xf32> to vector<32x128xf32>
    %cst_142 = arith.constant dense<0xFF800000> : vector<128xf32>
    %177 = vector.multi_reduction <maximumf>, %176, %cst_142 [0] : vector<32x128xf32> to vector<128xf32>
    %178 = vector.shape_cast %177 : vector<128xf32> to vector<1x128xf32>
    %179 = vector.broadcast %178 : vector<1x128xf32> to vector<32x128xf32>
    %180 = arith.subf %176, %179 : vector<32x128xf32>
    %181 = math.exp %180 : vector<32x128xf32>
    %cst_143 = arith.constant dense<0.000000e+00> : vector<128xf32>
    %182 = vector.multi_reduction <add>, %181, %cst_143 [0] : vector<32x128xf32> to vector<128xf32>
    %183 = vector.shape_cast %182 : vector<128xf32> to vector<1x128xf32>
    %184 = tpu.reciprocal %183 {approx = true} : vector<1x128xf32> -> vector<1x128xf32>
    %185 = vector.broadcast %184 : vector<1x128xf32> to vector<32x128xf32>
    %186 = arith.mulf %181, %185 : vector<32x128xf32>
    %c64_144 = arith.constant 64 : index
    %c0_145 = arith.constant 0 : index
    %187 = vector.load %arg5[%c64_144, %c0_145] : memref<128x128xf32, #tpu.memory_space<vmem>>, vector<32x128xf32>
    %188 = arith.mulf %186, %187 : vector<32x128xf32>
    %189 = arith.truncf %188 : vector<32x128xf32> to vector<32x128xbf16>
    %c64_146 = arith.constant 64 : index
    %c0_147 = arith.constant 0 : index
    %190 = vector.load %arg13[%c64_146, %c0_147] : memref<128x128xbf16, #tpu.memory_space<vmem>>, vector<32x128xbf16>
    tpu.vector_store %arg13[%c64_146, %c0_147], %189 {strides = array<i32>} : memref<128x128xbf16, #tpu.memory_space<vmem>>, vector<32x128xbf16>,
    %191 = vector.extract_strided_slice %145 {offsets = [96, 0], sizes = [32, 128], strides = [1, 1]} : vector<128x128xf32> to vector<32x128xf32>
    %cst_148 = arith.constant dense<0xFF800000> : vector<128xf32>
    %192 = vector.multi_reduction <maximumf>, %191, %cst_148 [0] : vector<32x128xf32> to vector<128xf32>
    %193 = vector.shape_cast %192 : vector<128xf32> to vector<1x128xf32>
    %194 = vector.broadcast %193 : vector<1x128xf32> to vector<32x128xf32>
    %195 = arith.subf %191, %194 : vector<32x128xf32>
    %196 = math.exp %195 : vector<32x128xf32>
    %cst_149 = arith.constant dense<0.000000e+00> : vector<128xf32>
    %197 = vector.multi_reduction <add>, %196, %cst_149 [0] : vector<32x128xf32> to vector<128xf32>
    %198 = vector.shape_cast %197 : vector<128xf32> to vector<1x128xf32>
    %199 = tpu.reciprocal %198 {approx = true} : vector<1x128xf32> -> vector<1x128xf32>
    %200 = vector.broadcast %199 : vector<1x128xf32> to vector<32x128xf32>
    %201 = arith.mulf %196, %200 : vector<32x128xf32>
    %c96_150 = arith.constant 96 : index
    %c0_151 = arith.constant 0 : index
    %202 = vector.load %arg5[%c96_150, %c0_151] : memref<128x128xf32, #tpu.memory_space<vmem>>, vector<32x128xf32>
    %203 = arith.mulf %201, %202 : vector<32x128xf32>
    %204 = arith.truncf %203 : vector<32x128xf32> to vector<32x128xbf16>
    %c96_152 = arith.constant 96 : index
    %c0_153 = arith.constant 0 : index
    %205 = vector.load %arg13[%c96_152, %c0_153] : memref<128x128xbf16, #tpu.memory_space<vmem>>, vector<32x128xbf16>
    tpu.vector_store %arg13[%c96_152, %c0_153], %204 {strides = array<i32>} : memref<128x128xbf16, #tpu.memory_space<vmem>>, vector<32x128xbf16>,
    %c0_154 = arith.constant 0 : index
    %c0_155 = arith.constant 0 : index
    %206 = vector.load %arg4[%c0_154, %c0_155] : memref<400x128xbf16, #tpu.memory_space<vmem>>, vector<400x128xbf16>
    %c0_156 = arith.constant 0 : index
    %c0_157 = arith.constant 0 : index
    %207 = vector.load %arg13[%c0_156, %c0_157] : memref<128x128xbf16, #tpu.memory_space<vmem>>, vector<128x128xbf16>
    %cst_158 = arith.constant dense<0.000000e+00> : vector<400x128xf32>
    %208 = tpu.matmul %206, %207, %cst_158 {dimension_numbers = #tpu.dot_dimension_numbers<[1], [0], [0], [1], [0, 0, 1, 1], [], []>} : vector<400x128xbf16>, vector<128x128xbf16>, vector<400x128xf32> -> vector<400x128xf32>
    %c0_159 = arith.constant 0 : index
    %c0_160 = arith.constant 0 : index
    %209 = vector.load %arg6[%c0_159, %c0_160] : memref<400x128xf32, #tpu.memory_space<vmem>>, vector<400x128xf32>
    %210 = arith.mulf %208, %209 : vector<400x128xf32>
    %c0_161 = arith.constant 0 : index
    %c0_162 = arith.constant 0 : index
    %211 = vector.load %arg12[%c0_161, %c0_162] : memref<400x128xf32, #tpu.memory_space<vmem>>, vector<400x128xf32>
    tpu.vector_store %arg12[%c0_161, %c0_162], %210 {strides = array<i32>} : memref<400x128xf32, #tpu.memory_space<vmem>>, vector<400x128xf32>,
    %c0_163 = arith.constant 0 : index
    %c0_164 = arith.constant 0 : index
    %212 = vector.load %arg12[%c0_163, %c0_164] : memref<400x128xf32, #tpu.memory_space<vmem>>, vector<16x128xf32>
    %c0_165 = arith.constant 0 : index
    %c0_166 = arith.constant 0 : index
    %213 = vector.load %arg10[%c0_165, %c0_166] : memref<16x164xf32, #tpu.memory_space<vmem>>, vector<16x128xf32>
    %214 = arith.mulf %212, %213 : vector<16x128xf32>
    %215 = arith.truncf %214 : vector<16x128xf32> to vector<16x128xbf16>
    %c0_167 = arith.constant 0 : index
    %c0_168 = arith.constant 0 : index
    %216 = vector.load %arg11[%c0_167, %c0_168] : memref<401x128xbf16, #tpu.memory_space<vmem>>, vector<16x128xbf16>
    tpu.vector_store %arg11[%c0_167, %c0_168], %215 {strides = array<i32>} : memref<401x128xbf16, #tpu.memory_space<vmem>>, vector<16x128xbf16>,
    %c16_169 = arith.constant 16 : index
    %c0_170 = arith.constant 0 : index
    %217 = vector.load %arg12[%c16_169, %c0_170] : memref<400x128xf32, #tpu.memory_space<vmem>>, vector<16x128xf32>
    %c0_171 = arith.constant 0 : index
    %c1_172 = arith.constant 1 : index
    %218 = vector.load %arg10[%c0_171, %c1_172] : memref<16x164xf32, #tpu.memory_space<vmem>>, vector<16x128xf32>
    %219 = arith.mulf %217, %218 : vector<16x128xf32>
    %220 = arith.truncf %219 : vector<16x128xf32> to vector<16x128xbf16>
    %c16_173 = arith.constant 16 : index
    %c0_174 = arith.constant 0 : index
    %221 = vector.load %arg11[%c16_173, %c0_174] : memref<401x128xbf16, #tpu.memory_space<vmem>>, vector<16x128xbf16>
    tpu.vector_store %arg11[%c16_173, %c0_174], %220 {strides = array<i32>} : memref<401x128xbf16, #tpu.memory_space<vmem>>, vector<16x128xbf16>,
    %c32_175 = arith.constant 32 : index
    %c0_176 = arith.constant 0 : index
    %222 = vector.load %arg12[%c32_175, %c0_176] : memref<400x128xf32, #tpu.memory_space<vmem>>, vector<16x128xf32>
    %c0_177 = arith.constant 0 : index
    %c2_178 = arith.constant 2 : index
    %223 = vector.load %arg10[%c0_177, %c2_178] : memref<16x164xf32, #tpu.memory_space<vmem>>, vector<16x128xf32>
    %224 = arith.mulf %222, %223 : vector<16x128xf32>
    %225 = arith.truncf %224 : vector<16x128xf32> to vector<16x128xbf16>
    %c32_179 = arith.constant 32 : index
    %c0_180 = arith.constant 0 : index
    %226 = vector.load %arg11[%c32_179, %c0_180] : memref<401x128xbf16, #tpu.memory_space<vmem>>, vector<16x128xbf16>
    tpu.vector_store %arg11[%c32_179, %c0_180], %225 {strides = array<i32>} : memref<401x128xbf16, #tpu.memory_space<vmem>>, vector<16x128xbf16>,
    %c48_181 = arith.constant 48 : index
    %c0_182 = arith.constant 0 : index
    %227 = vector.load %arg12[%c48_181, %c0_182] : memref<400x128xf32, #tpu.memory_space<vmem>>, vector<16x128xf32>
    %c0_183 = arith.constant 0 : index
    %c3_184 = arith.constant 3 : index
    %228 = vector.load %arg10[%c0_183, %c3_184] : memref<16x164xf32, #tpu.memory_space<vmem>>, vector<16x128xf32>
    %229 = arith.mulf %227, %228 : vector<16x128xf32>
    %230 = arith.truncf %229 : vector<16x128xf32> to vector<16x128xbf16>
    %c48_185 = arith.constant 48 : index
    %c0_186 = arith.constant 0 : index
    %231 = vector.load %arg11[%c48_185, %c0_186] : memref<401x128xbf16, #tpu.memory_space<vmem>>, vector<16x128xbf16>
    tpu.vector_store %arg11[%c48_185, %c0_186], %230 {strides = array<i32>} : memref<401x128xbf16, #tpu.memory_space<vmem>>, vector<16x128xbf16>,
    %c64_187 = arith.constant 64 : index
    %c0_188 = arith.constant 0 : index
    %232 = vector.load %arg12[%c64_187, %c0_188] : memref<400x128xf32, #tpu.memory_space<vmem>>, vector<16x128xf32>
    %c0_189 = arith.constant 0 : index
    %c4_190 = arith.constant 4 : index
    %233 = vector.load %arg10[%c0_189, %c4_190] : memref<16x164xf32, #tpu.memory_space<vmem>>, vector<16x128xf32>
    %234 = arith.mulf %232, %233 : vector<16x128xf32>
    %235 = arith.truncf %234 : vector<16x128xf32> to vector<16x128xbf16>
    %c64_191 = arith.constant 64 : index
    %c0_192 = arith.constant 0 : index
    %236 = vector.load %arg11[%c64_191, %c0_192] : memref<401x128xbf16, #tpu.memory_space<vmem>>, vector<16x128xbf16>
    tpu.vector_store %arg11[%c64_191, %c0_192], %235 {strides = array<i32>} : memref<401x128xbf16, #tpu.memory_space<vmem>>, vector<16x128xbf16>,
    %c80_193 = arith.constant 80 : index
    %c0_194 = arith.constant 0 : index
    %237 = vector.load %arg12[%c80_193, %c0_194] : memref<400x128xf32, #tpu.memory_space<vmem>>, vector<16x128xf32>
    %c0_195 = arith.constant 0 : index
    %c8_196 = arith.constant 8 : index
    %238 = vector.load %arg10[%c0_195, %c8_196] : memref<16x164xf32, #tpu.memory_space<vmem>>, vector<16x128xf32>
    %239 = arith.mulf %237, %238 : vector<16x128xf32>
    %240 = arith.truncf %239 : vector<16x128xf32> to vector<16x128xbf16>
    %c80_197 = arith.constant 80 : index
    %c0_198 = arith.constant 0 : index
    %241 = vector.load %arg11[%c80_197, %c0_198] : memref<401x128xbf16, #tpu.memory_space<vmem>>, vector<16x128xbf16>
    tpu.vector_store %arg11[%c80_197, %c0_198], %240 {strides = array<i32>} : memref<401x128xbf16, #tpu.memory_space<vmem>>, vector<16x128xbf16>,
    %c96_199 = arith.constant 96 : index
    %c0_200 = arith.constant 0 : index
    %242 = vector.load %arg12[%c96_199, %c0_200] : memref<400x128xf32, #tpu.memory_space<vmem>>, vector<16x128xf32>
    %c0_201 = arith.constant 0 : index
    %c9_202 = arith.constant 9 : index
    %243 = vector.load %arg10[%c0_201, %c9_202] : memref<16x164xf32, #tpu.memory_space<vmem>>, vector<16x128xf32>
    %244 = arith.mulf %242, %243 : vector<16x128xf32>
    %245 = arith.truncf %244 : vector<16x128xf32> to vector<16x128xbf16>
    %c96_203 = arith.constant 96 : index
    %c0_204 = arith.constant 0 : index
    %246 = vector.load %arg11[%c96_203, %c0_204] : memref<401x128xbf16, #tpu.memory_space<vmem>>, vector<16x128xbf16>
    tpu.vector_store %arg11[%c96_203, %c0_204], %245 {strides = array<i32>} : memref<401x128xbf16, #tpu.memory_space<vmem>>, vector<16x128xbf16>,
    %c112_205 = arith.constant 112 : index
    %c0_206 = arith.constant 0 : index
    %247 = vector.load %arg12[%c112_205, %c0_206] : memref<400x128xf32, #tpu.memory_space<vmem>>, vector<16x128xf32>
    %c0_207 = arith.constant 0 : index
    %c10_208 = arith.constant 10 : index
    %248 = vector.load %arg10[%c0_207, %c10_208] : memref<16x164xf32, #tpu.memory_space<vmem>>, vector<16x128xf32>
    %249 = arith.mulf %247, %248 : vector<16x128xf32>
    %250 = arith.truncf %249 : vector<16x128xf32> to vector<16x128xbf16>
    %c112_209 = arith.constant 112 : index
    %c0_210 = arith.constant 0 : index
    %251 = vector.load %arg11[%c112_209, %c0_210] : memref<401x128xbf16, #tpu.memory_space<vmem>>, vector<16x128xbf16>
    tpu.vector_store %arg11[%c112_209, %c0_210], %250 {strides = array<i32>} : memref<401x128xbf16, #tpu.memory_space<vmem>>, vector<16x128xbf16>,
    %c128_211 = arith.constant 128 : index
    %c0_212 = arith.constant 0 : index
    %252 = vector.load %arg12[%c128_211, %c0_212] : memref<400x128xf32, #tpu.memory_space<vmem>>, vector<16x128xf32>
    %c0_213 = arith.constant 0 : index
    %c11_214 = arith.constant 11 : index
    %253 = vector.load %arg10[%c0_213, %c11_214] : memref<16x164xf32, #tpu.memory_space<vmem>>, vector<16x128xf32>
    %254 = arith.mulf %252, %253 : vector<16x128xf32>
    %255 = arith.truncf %254 : vector<16x128xf32> to vector<16x128xbf16>
    %c128_215 = arith.constant 128 : index
    %c0_216 = arith.constant 0 : index
    %256 = vector.load %arg11[%c128_215, %c0_216] : memref<401x128xbf16, #tpu.memory_space<vmem>>, vector<16x128xbf16>
    tpu.vector_store %arg11[%c128_215, %c0_216], %255 {strides = array<i32>} : memref<401x128xbf16, #tpu.memory_space<vmem>>, vector<16x128xbf16>,
    %c144_217 = arith.constant 144 : index
    %c0_218 = arith.constant 0 : index
    %257 = vector.load %arg12[%c144_217, %c0_218] : memref<400x128xf32, #tpu.memory_space<vmem>>, vector<16x128xf32>
    %c0_219 = arith.constant 0 : index
    %c12_220 = arith.constant 12 : index
    %258 = vector.load %arg10[%c0_219, %c12_220] : memref<16x164xf32, #tpu.memory_space<vmem>>, vector<16x128xf32>
    %259 = arith.mulf %257, %258 : vector<16x128xf32>
    %260 = arith.truncf %259 : vector<16x128xf32> to vector<16x128xbf16>
    %c144_221 = arith.constant 144 : index
    %c0_222 = arith.constant 0 : index
    %261 = vector.load %arg11[%c144_221, %c0_222] : memref<401x128xbf16, #tpu.memory_space<vmem>>, vector<16x128xbf16>
    tpu.vector_store %arg11[%c144_221, %c0_222], %260 {strides = array<i32>} : memref<401x128xbf16, #tpu.memory_space<vmem>>, vector<16x128xbf16>,
    %c160_223 = arith.constant 160 : index
    %c0_224 = arith.constant 0 : index
    %262 = vector.load %arg12[%c160_223, %c0_224] : memref<400x128xf32, #tpu.memory_space<vmem>>, vector<16x128xf32>
    %c0_225 = arith.constant 0 : index
    %c16_226 = arith.constant 16 : index
    %263 = vector.load %arg10[%c0_225, %c16_226] : memref<16x164xf32, #tpu.memory_space<vmem>>, vector<16x128xf32>
    %264 = arith.mulf %262, %263 : vector<16x128xf32>
    %265 = arith.truncf %264 : vector<16x128xf32> to vector<16x128xbf16>
    %c160_227 = arith.constant 160 : index
    %c0_228 = arith.constant 0 : index
    %266 = vector.load %arg11[%c160_227, %c0_228] : memref<401x128xbf16, #tpu.memory_space<vmem>>, vector<16x128xbf16>
    tpu.vector_store %arg11[%c160_227, %c0_228], %265 {strides = array<i32>} : memref<401x128xbf16, #tpu.memory_space<vmem>>, vector<16x128xbf16>,
    %c176_229 = arith.constant 176 : index
    %c0_230 = arith.constant 0 : index
    %267 = vector.load %arg12[%c176_229, %c0_230] : memref<400x128xf32, #tpu.memory_space<vmem>>, vector<16x128xf32>
    %c0_231 = arith.constant 0 : index
    %c17_232 = arith.constant 17 : index
    %268 = vector.load %arg10[%c0_231, %c17_232] : memref<16x164xf32, #tpu.memory_space<vmem>>, vector<16x128xf32>
    %269 = arith.mulf %267, %268 : vector<16x128xf32>
    %270 = arith.truncf %269 : vector<16x128xf32> to vector<16x128xbf16>
    %c176_233 = arith.constant 176 : index
    %c0_234 = arith.constant 0 : index
    %271 = vector.load %arg11[%c176_233, %c0_234] : memref<401x128xbf16, #tpu.memory_space<vmem>>, vector<16x128xbf16>
    tpu.vector_store %arg11[%c176_233, %c0_234], %270 {strides = array<i32>} : memref<401x128xbf16, #tpu.memory_space<vmem>>, vector<16x128xbf16>,
    %c192_235 = arith.constant 192 : index
    %c0_236 = arith.constant 0 : index
    %272 = vector.load %arg12[%c192_235, %c0_236] : memref<400x128xf32, #tpu.memory_space<vmem>>, vector<16x128xf32>
    %c0_237 = arith.constant 0 : index
    %c18_238 = arith.constant 18 : index
    %273 = vector.load %arg10[%c0_237, %c18_238] : memref<16x164xf32, #tpu.memory_space<vmem>>, vector<16x128xf32>
    %274 = arith.mulf %272, %273 : vector<16x128xf32>
    %275 = arith.truncf %274 : vector<16x128xf32> to vector<16x128xbf16>
    %c192_239 = arith.constant 192 : index
    %c0_240 = arith.constant 0 : index
    %276 = vector.load %arg11[%c192_239, %c0_240] : memref<401x128xbf16, #tpu.memory_space<vmem>>, vector<16x128xbf16>
    tpu.vector_store %arg11[%c192_239, %c0_240], %275 {strides = array<i32>} : memref<401x128xbf16, #tpu.memory_space<vmem>>, vector<16x128xbf16>,
    %c208_241 = arith.constant 208 : index
    %c0_242 = arith.constant 0 : index
    %277 = vector.load %arg12[%c208_241, %c0_242] : memref<400x128xf32, #tpu.memory_space<vmem>>, vector<16x128xf32>
    %c0_243 = arith.constant 0 : index
    %c19_244 = arith.constant 19 : index
    %278 = vector.load %arg10[%c0_243, %c19_244] : memref<16x164xf32, #tpu.memory_space<vmem>>, vector<16x128xf32>
    %279 = arith.mulf %277, %278 : vector<16x128xf32>
    %280 = arith.truncf %279 : vector<16x128xf32> to vector<16x128xbf16>
    %c208_245 = arith.constant 208 : index
    %c0_246 = arith.constant 0 : index
    %281 = vector.load %arg11[%c208_245, %c0_246] : memref<401x128xbf16, #tpu.memory_space<vmem>>, vector<16x128xbf16>
    tpu.vector_store %arg11[%c208_245, %c0_246], %280 {strides = array<i32>} : memref<401x128xbf16, #tpu.memory_space<vmem>>, vector<16x128xbf16>,
    %c224_247 = arith.constant 224 : index
    %c0_248 = arith.constant 0 : index
    %282 = vector.load %arg12[%c224_247, %c0_248] : memref<400x128xf32, #tpu.memory_space<vmem>>, vector<16x128xf32>
    %c0_249 = arith.constant 0 : index
    %c20_250 = arith.constant 20 : index
    %283 = vector.load %arg10[%c0_249, %c20_250] : memref<16x164xf32, #tpu.memory_space<vmem>>, vector<16x128xf32>
    %284 = arith.mulf %282, %283 : vector<16x128xf32>
    %285 = arith.truncf %284 : vector<16x128xf32> to vector<16x128xbf16>
    %c224_251 = arith.constant 224 : index
    %c0_252 = arith.constant 0 : index
    %286 = vector.load %arg11[%c224_251, %c0_252] : memref<401x128xbf16, #tpu.memory_space<vmem>>, vector<16x128xbf16>
    tpu.vector_store %arg11[%c224_251, %c0_252], %285 {strides = array<i32>} : memref<401x128xbf16, #tpu.memory_space<vmem>>, vector<16x128xbf16>,
    %c240_253 = arith.constant 240 : index
    %c0_254 = arith.constant 0 : index
    %287 = vector.load %arg12[%c240_253, %c0_254] : memref<400x128xf32, #tpu.memory_space<vmem>>, vector<16x128xf32>
    %c0_255 = arith.constant 0 : index
    %c24_256 = arith.constant 24 : index
    %288 = vector.load %arg10[%c0_255, %c24_256] : memref<16x164xf32, #tpu.memory_space<vmem>>, vector<16x128xf32>
    %289 = arith.mulf %287, %288 : vector<16x128xf32>
    %290 = arith.truncf %289 : vector<16x128xf32> to vector<16x128xbf16>
    %c240_257 = arith.constant 240 : index
    %c0_258 = arith.constant 0 : index
    %291 = vector.load %arg11[%c240_257, %c0_258] : memref<401x128xbf16, #tpu.memory_space<vmem>>, vector<16x128xbf16>
    tpu.vector_store %arg11[%c240_257, %c0_258], %290 {strides = array<i32>} : memref<401x128xbf16, #tpu.memory_space<vmem>>, vector<16x128xbf16>,
    %c256_259 = arith.constant 256 : index
    %c0_260 = arith.constant 0 : index
    %292 = vector.load %arg12[%c256_259, %c0_260] : memref<400x128xf32, #tpu.memory_space<vmem>>, vector<16x128xf32>
    %c0_261 = arith.constant 0 : index
    %c25_262 = arith.constant 25 : index
    %293 = vector.load %arg10[%c0_261, %c25_262] : memref<16x164xf32, #tpu.memory_space<vmem>>, vector<16x128xf32>
    %294 = arith.mulf %292, %293 : vector<16x128xf32>
    %295 = arith.truncf %294 : vector<16x128xf32> to vector<16x128xbf16>
    %c256_263 = arith.constant 256 : index
    %c0_264 = arith.constant 0 : index
    %296 = vector.load %arg11[%c256_263, %c0_264] : memref<401x128xbf16, #tpu.memory_space<vmem>>, vector<16x128xbf16>
    tpu.vector_store %arg11[%c256_263, %c0_264], %295 {strides = array<i32>} : memref<401x128xbf16, #tpu.memory_space<vmem>>, vector<16x128xbf16>,
    %c272_265 = arith.constant 272 : index
    %c0_266 = arith.constant 0 : index
    %297 = vector.load %arg12[%c272_265, %c0_266] : memref<400x128xf32, #tpu.memory_space<vmem>>, vector<16x128xf32>
    %c0_267 = arith.constant 0 : index
    %c26_268 = arith.constant 26 : index
    %298 = vector.load %arg10[%c0_267, %c26_268] : memref<16x164xf32, #tpu.memory_space<vmem>>, vector<16x128xf32>
    %299 = arith.mulf %297, %298 : vector<16x128xf32>
    %300 = arith.truncf %299 : vector<16x128xf32> to vector<16x128xbf16>
    %c272_269 = arith.constant 272 : index
    %c0_270 = arith.constant 0 : index
    %301 = vector.load %arg11[%c272_269, %c0_270] : memref<401x128xbf16, #tpu.memory_space<vmem>>, vector<16x128xbf16>
    tpu.vector_store %arg11[%c272_269, %c0_270], %300 {strides = array<i32>} : memref<401x128xbf16, #tpu.memory_space<vmem>>, vector<16x128xbf16>,
    %c288_271 = arith.constant 288 : index
    %c0_272 = arith.constant 0 : index
    %302 = vector.load %arg12[%c288_271, %c0_272] : memref<400x128xf32, #tpu.memory_space<vmem>>, vector<16x128xf32>
    %c0_273 = arith.constant 0 : index
    %c27_274 = arith.constant 27 : index
    %303 = vector.load %arg10[%c0_273, %c27_274] : memref<16x164xf32, #tpu.memory_space<vmem>>, vector<16x128xf32>
    %304 = arith.mulf %302, %303 : vector<16x128xf32>
    %305 = arith.truncf %304 : vector<16x128xf32> to vector<16x128xbf16>
    %c288_275 = arith.constant 288 : index
    %c0_276 = arith.constant 0 : index
    %306 = vector.load %arg11[%c288_275, %c0_276] : memref<401x128xbf16, #tpu.memory_space<vmem>>, vector<16x128xbf16>
    tpu.vector_store %arg11[%c288_275, %c0_276], %305 {strides = array<i32>} : memref<401x128xbf16, #tpu.memory_space<vmem>>, vector<16x128xbf16>,
    %c304_277 = arith.constant 304 : index
    %c0_278 = arith.constant 0 : index
    %307 = vector.load %arg12[%c304_277, %c0_278] : memref<400x128xf32, #tpu.memory_space<vmem>>, vector<16x128xf32>
    %c0_279 = arith.constant 0 : index
    %c28_280 = arith.constant 28 : index
    %308 = vector.load %arg10[%c0_279, %c28_280] : memref<16x164xf32, #tpu.memory_space<vmem>>, vector<16x128xf32>
    %309 = arith.mulf %307, %308 : vector<16x128xf32>
    %310 = arith.truncf %309 : vector<16x128xf32> to vector<16x128xbf16>
    %c304_281 = arith.constant 304 : index
    %c0_282 = arith.constant 0 : index
    %311 = vector.load %arg11[%c304_281, %c0_282] : memref<401x128xbf16, #tpu.memory_space<vmem>>, vector<16x128xbf16>
    tpu.vector_store %arg11[%c304_281, %c0_282], %310 {strides = array<i32>} : memref<401x128xbf16, #tpu.memory_space<vmem>>, vector<16x128xbf16>,
    %c320_283 = arith.constant 320 : index
    %c0_284 = arith.constant 0 : index
    %312 = vector.load %arg12[%c320_283, %c0_284] : memref<400x128xf32, #tpu.memory_space<vmem>>, vector<16x128xf32>
    %c0_285 = arith.constant 0 : index
    %c32_286 = arith.constant 32 : index
    %313 = vector.load %arg10[%c0_285, %c32_286] : memref<16x164xf32, #tpu.memory_space<vmem>>, vector<16x128xf32>
    %314 = arith.mulf %312, %313 : vector<16x128xf32>
    %315 = arith.truncf %314 : vector<16x128xf32> to vector<16x128xbf16>
    %c320_287 = arith.constant 320 : index
    %c0_288 = arith.constant 0 : index
    %316 = vector.load %arg11[%c320_287, %c0_288] : memref<401x128xbf16, #tpu.memory_space<vmem>>, vector<16x128xbf16>
    tpu.vector_store %arg11[%c320_287, %c0_288], %315 {strides = array<i32>} : memref<401x128xbf16, #tpu.memory_space<vmem>>, vector<16x128xbf16>,
    %c336_289 = arith.constant 336 : index
    %c0_290 = arith.constant 0 : index
    %317 = vector.load %arg12[%c336_289, %c0_290] : memref<400x128xf32, #tpu.memory_space<vmem>>, vector<16x128xf32>
    %c0_291 = arith.constant 0 : index
    %c33_292 = arith.constant 33 : index
    %318 = vector.load %arg10[%c0_291, %c33_292] : memref<16x164xf32, #tpu.memory_space<vmem>>, vector<16x128xf32>
    %319 = arith.mulf %317, %318 : vector<16x128xf32>
    %320 = arith.truncf %319 : vector<16x128xf32> to vector<16x128xbf16>
    %c336_293 = arith.constant 336 : index
    %c0_294 = arith.constant 0 : index
    %321 = vector.load %arg11[%c336_293, %c0_294] : memref<401x128xbf16, #tpu.memory_space<vmem>>, vector<16x128xbf16>
    tpu.vector_store %arg11[%c336_293, %c0_294], %320 {strides = array<i32>} : memref<401x128xbf16, #tpu.memory_space<vmem>>, vector<16x128xbf16>,
    %c352_295 = arith.constant 352 : index
    %c0_296 = arith.constant 0 : index
    %322 = vector.load %arg12[%c352_295, %c0_296] : memref<400x128xf32, #tpu.memory_space<vmem>>, vector<16x128xf32>
    %c0_297 = arith.constant 0 : index
    %c34_298 = arith.constant 34 : index
    %323 = vector.load %arg10[%c0_297, %c34_298] : memref<16x164xf32, #tpu.memory_space<vmem>>, vector<16x128xf32>
    %324 = arith.mulf %322, %323 : vector<16x128xf32>
    %325 = arith.truncf %324 : vector<16x128xf32> to vector<16x128xbf16>
    %c352_299 = arith.constant 352 : index
    %c0_300 = arith.constant 0 : index
    %326 = vector.load %arg11[%c352_299, %c0_300] : memref<401x128xbf16, #tpu.memory_space<vmem>>, vector<16x128xbf16>
    tpu.vector_store %arg11[%c352_299, %c0_300], %325 {strides = array<i32>} : memref<401x128xbf16, #tpu.memory_space<vmem>>, vector<16x128xbf16>,
    %c368_301 = arith.constant 368 : index
    %c0_302 = arith.constant 0 : index
    %327 = vector.load %arg12[%c368_301, %c0_302] : memref<400x128xf32, #tpu.memory_space<vmem>>, vector<16x128xf32>
    %c0_303 = arith.constant 0 : index
    %c35_304 = arith.constant 35 : index
    %328 = vector.load %arg10[%c0_303, %c35_304] : memref<16x164xf32, #tpu.memory_space<vmem>>, vector<16x128xf32>
    %329 = arith.mulf %327, %328 : vector<16x128xf32>
    %330 = arith.truncf %329 : vector<16x128xf32> to vector<16x128xbf16>
    %c368_305 = arith.constant 368 : index
    %c0_306 = arith.constant 0 : index
    %331 = vector.load %arg11[%c368_305, %c0_306] : memref<401x128xbf16, #tpu.memory_space<vmem>>, vector<16x128xbf16>
    tpu.vector_store %arg11[%c368_305, %c0_306], %330 {strides = array<i32>} : memref<401x128xbf16, #tpu.memory_space<vmem>>, vector<16x128xbf16>,
    %c384_307 = arith.constant 384 : index
    %c0_308 = arith.constant 0 : index
    %332 = vector.load %arg12[%c384_307, %c0_308] : memref<400x128xf32, #tpu.memory_space<vmem>>, vector<16x128xf32>
    %c0_309 = arith.constant 0 : index
    %c36_310 = arith.constant 36 : index
    %333 = vector.load %arg10[%c0_309, %c36_310] : memref<16x164xf32, #tpu.memory_space<vmem>>, vector<16x128xf32>
    %334 = arith.mulf %332, %333 : vector<16x128xf32>
    %335 = arith.truncf %334 : vector<16x128xf32> to vector<16x128xbf16>
    %c384_311 = arith.constant 384 : index
    %c0_312 = arith.constant 0 : index
    %336 = vector.load %arg11[%c384_311, %c0_312] : memref<401x128xbf16, #tpu.memory_space<vmem>>, vector<16x128xbf16>
    tpu.vector_store %arg11[%c384_311, %c0_312], %335 {strides = array<i32>} : memref<401x128xbf16, #tpu.memory_space<vmem>>, vector<16x128xbf16>,
    %c0_313 = arith.constant 0 : index
    %c0_314 = arith.constant 0 : index
    %337 = vector.load %arg7[%c0_313, %c0_314] : memref<16x401xbf16, #tpu.memory_space<vmem>>, vector<16x401xbf16>
    %c0_315 = arith.constant 0 : index
    %c0_316 = arith.constant 0 : index
    %338 = vector.load %arg11[%c0_315, %c0_316] : memref<401x128xbf16, #tpu.memory_space<vmem>>, vector<401x128xbf16>
    %cst_317 = arith.constant dense<0.000000e+00> : vector<16x128xf32>
    %339 = tpu.matmul %337, %338, %cst_317 {dimension_numbers = #tpu.dot_dimension_numbers<[1], [0], [0], [1], [0, 0, 1, 1], [], []>} : vector<16x401xbf16>, vector<401x128xbf16>, vector<16x128xf32> -> vector<16x128xf32>
    %c0_318 = arith.constant 0 : index
    %c0_319 = arith.constant 0 : index
    %340 = vector.load %arg8[%c0_318, %c0_319] : memref<16x128xf32, #tpu.memory_space<vmem>>, vector<16x128xf32>
    tpu.vector_store %arg8[%c0_318, %c0_319], %339 {strides = array<i32>} : memref<16x128xf32, #tpu.memory_space<vmem>>, vector<16x128xf32>,
    return
  }
  func.func @transform_0(%arg0: i32) -> (i32, i32) {
    %c0_i32 = arith.constant 0 : i32
    %c0_i32_0 = arith.constant 0 : i32
    return %c0_i32, %arg0 : i32, i32
  }
  func.func @transform_1(%arg0: i32) -> (i32, i32) {
    %c0_i32 = arith.constant 0 : i32
    %c0_i32_0 = arith.constant 0 : i32
    %c0_i32_1 = arith.constant 0 : i32
    return %c0_i32, %c0_i32_0 : i32, i32
  }
  func.func @transform_2(%arg0: i32) -> (i32, i32) {
    %c0_i32 = arith.constant 0 : i32
    %c0_i32_0 = arith.constant 0 : i32
    %c0_i32_1 = arith.constant 0 : i32
    return %c0_i32, %c0_i32_0 : i32, i32
  }
  func.func @transform_3(%arg0: i32) -> (i32, i32) {
    %c0_i32 = arith.constant 0 : i32
    %c0_i32_0 = arith.constant 0 : i32
    %c0_i32_1 = arith.constant 0 : i32
    return %c0_i32, %c0_i32_0 : i32, i32
  }
  func.func @transform_4(%arg0: i32) -> (i32, i32) {
    %c0_i32 = arith.constant 0 : i32
    %c0_i32_0 = arith.constant 0 : i32
    %c0_i32_1 = arith.constant 0 : i32
    return %c0_i32, %c0_i32_0 : i32, i32
  }
  func.func @transform_5(%arg0: i32) -> (i32, i32) {
    %c0_i32 = arith.constant 0 : i32
    %c0_i32_0 = arith.constant 0 : i32
    %c0_i32_1 = arith.constant 0 : i32
    return %c0_i32, %c0_i32_0 : i32, i32
  }
  func.func @transform_6(%arg0: i32) -> (i32, i32) {
    %c0_i32 = arith.constant 0 : i32
    %c0_i32_0 = arith.constant 0 : i32
    %c0_i32_1 = arith.constant 0 : i32
    return %c0_i32, %c0_i32_0 : i32, i32
  }
  func.func @transform_7(%arg0: i32) -> (i32, i32) {
    %c0_i32 = arith.constant 0 : i32
    %c0_i32_0 = arith.constant 0 : i32
    return %c0_i32, %arg0 : i32, i32
  }
}

</mosaic_0001>

<llo_original>
// kernel: tpu_custom_call.1
$region0: #{tpu_custom_call.1}
  #allocation0 [shape = 'u32[]', space=smem, size = 0x4, offset = 0x4, fixed_abs, tag = 'smem constant byte address 0x4 - core index']
  #allocation1 [shape = 'u32[144,128]{1,0:T(1,128)}', space=vmem, size = 0x12000, scoped, tag = 'internal scratch']
  #allocation2 [shape = 'f32[16,164]{1,0:T(8,128)}', space=vmem, size = 0x4000, scoped, tag = 'scratch operand']
  #allocation3 [shape = 'f32[16,164]{1,0:T(8,128)}', space=vmem, size = 0x4000, scoped, tag = 'scratch operand']
  #allocation4 [shape = 'bf16[401,128]{1,0:T(8,128)(2,1)}', space=vmem, size = 0x19800, scoped, tag = 'scratch operand']
  #allocation5 [shape = 'f32[400,128]{1,0:T(8,128)}', space=vmem, size = 0x32000, scoped, tag = 'scratch operand']
  #allocation6 [shape = 'bf16[128,128]{1,0:T(16,128)(2,1)}', space=vmem, size = 0x8000, scoped, tag = 'scratch operand']
  %s0 = inlined_call_operand.hbm [shape: bf16[17,256], index: 0, kind: input, shape index: {}]
  %s1 = inlined_call_operand.vmem [shape: bf16[432,17], index: 1, kind: input, shape index: {}]
  %s2 = inlined_call_operand.vmem [shape: bf16[128,401], index: 2, kind: input, shape index: {}]
  %s3 = inlined_call_operand.vmem [shape: bf16[400,128], index: 3, kind: input, shape index: {}]
  %s4 = inlined_call_operand.vmem [shape: f32[128,128], index: 4, kind: input, shape index: {}]
  %s5 = inlined_call_operand.vmem [shape: f32[400,128], index: 5, kind: input, shape index: {}]
  %s6 = inlined_call_operand.hbm [shape: bf16[16,401], index: 6, kind: input, shape index: {}]
  %s7 = inlined_call_operand.hbm [shape: f32[16,256], index: 7, kind: output, shape index: {}]
  %s8 = sld [smem:[#allocation0]]
  $region69: #{tpu_custom_call.1} parent=0
    _
  %s10 = ssub.s32 1, %s8
  %s11 = scalar_select 0, %s10, %s8
  $region1: #{tpu_custom_call.1} parent=0
    #allocation7 [shape = 'u8[12288]{0}', space=vmem, size = 0x3000, scoped, tag = 'input window, operand 0']
    #allocation8 [shape = 's32[2]{0}', space=sflag, size = 0x8, scoped, tag = 'scoped memory for tpu_custom_call.1']
    #allocation9 [shape = 's32[2]{0}', space=sflag, size = 0x8, scoped, tag = 'scoped memory for tpu_custom_call.1']
    #allocation10 [shape = 'u8[16384]{0}', space=vmem, size = 0x4000, scoped, tag = 'input window, operand 6, single buffered']
    #allocation11 [shape = 's32[1]{0}', space=sflag, size = 0x4, scoped, tag = 'scoped memory for tpu_custom_call.1']
    #allocation12 [shape = 'u8[16384]{0}', space=vmem, size = 0x4000, scoped, tag = 'output window, operand 0']
    %12 = vsyncpa [#allocation8], 0
    %s13 = scalar_lea.sflag [#allocation8], 1
    %14 = vsyncpa %s13, 0
    %15 = vsyncpa [#allocation11], 0
    %16 = vsyncpa [#allocation9], 0
    %s17 = scalar_lea.sflag [#allocation9], 1
    %18 = vsyncpa %s17, 0
    loop: start=0, step=1, limit=4
    $region2: #{tpu_custom_call.1} parent=1 // loop_pre_header
      _
    $region3: #{tpu_custom_call.1} parent=1 // loop_header
      %s20 = sphi 0, %s24
      %p21 = scmp.ge.s32.totalorder %s20, 4
      %s30 = sphi 0, %s32
      %s33 = sphi 0, %s30
      %s34 = sphi 0, %s33
      %s50 = sphi 0, %s34
      %s54 = sphi 0, %s54
      %s56 = sphi 0, %s54
      %s57 = sphi 0, %s56
      %s71 = sphi 0, %s57
      %s75 = sphi 0, %s75
      %s77 = sphi 0, %s75
      %s78 = sphi 0, %s77
      %s92 = sphi 0, %s78
      %s96 = sphi 0, %s96
      %s98 = sphi 0, %s96
      %s99 = sphi 0, %s98
      %s113 = sphi 0, %s99
      %s117 = sphi 0, %s117
      %s119 = sphi 0, %s117
      %s120 = sphi 0, %s119
      %s134 = sphi 0, %s120
      %s138 = sphi 0, %s138
      %s140 = sphi 0, %s138
      %s141 = sphi 0, %s140
      %s155 = sphi 0, %s141
      %s159 = sphi 0, %s159
      %s161 = sphi 0, %s159
      %s162 = sphi 0, %s161
      %s176 = sphi 0, %s162
      %s182 = sphi 0, %s184
      %s185 = sphi 0, %s182
      %s186 = sphi 0, %s185
      %s202 = sphi 0, %s186
    $region4: #{tpu_custom_call.1} parent=1 // loop_header_branch
      %23 = sbr.rel (%p21) target = $region8
    $region5: #{tpu_custom_call.1} parent=1 // loop_body
      %s25 = ssub.s32 %s20, 1
      %s26 = ssub.s32 %s20, 2
      %s27 = sadd.s32 %s20, 1
      %s28 = ssub.s32 %s20, %s27
      %p29 = scmp.eq.s32.totalorder %s28, 0
      %s31 = sadd.s32 %s30, 1
      %s32 = scalar_select %p29, %s30, %s31
      %p35 = pneg %p29
      %p36 = scmp.eq.s32.totalorder %s20, 1
      %p37 = por %p35, %p36
      %p38 = scmp.ne.s32.totalorder %s30, %s33
      %p39 = scmp.eq.s32.totalorder %s20, 0
      %p40 = por %p38, %p39
      %p41 = scmp.ne.s32.totalorder %s30, %s33
      %p42 = scmp.eq.s32.totalorder %s25, 1
      %p43 = por %p41, %p42
      %p44 = scmp.ne.s32.totalorder %s33, %s34
      %p45 = scmp.eq.s32.totalorder %s25, 0
      %p46 = por %p44, %p45
      %p47 = scmp.ne.s32.totalorder %s33, %s34
      %p48 = scmp.eq.s32.totalorder %s26, 1
      %p49 = por %p47, %p48
      %p51 = scmp.ne.s32.totalorder %s34, %s50
      %p52 = scmp.eq.s32.totalorder %s26, 0
      %p53 = por %p51, %p52
      %s55 = sadd.s32 %s54, 1
      %p58 = scmp.eq.s32.totalorder %s20, 1
      %p59 = scmp.ne.s32.totalorder %s54, %s56
      %p60 = scmp.eq.s32.totalorder %s20, 0
      %p61 = por %p59, %p60
      %p62 = scmp.ne.s32.totalorder %s54, %s56
      %p63 = scmp.eq.s32.totalorder %s25, 1
      %p64 = por %p62, %p63
      %p65 = scmp.ne.s32.totalorder %s56, %s57
      %p66 = scmp.eq.s32.totalorder %s25, 0
      %p67 = por %p65, %p66
      %p68 = scmp.ne.s32.totalorder %s56, %s57
      %p69 = scmp.eq.s32.totalorder %s26, 1
      %p70 = por %p68, %p69
      %p72 = scmp.ne.s32.totalorder %s57, %s71
      %p73 = scmp.eq.s32.totalorder %s26, 0
      %p74 = por %p72, %p73
      %s76 = sadd.s32 %s75, 1
      %p79 = scmp.eq.s32.totalorder %s20, 1
      %p80 = scmp.ne.s32.totalorder %s75, %s77
      %p81 = scmp.eq.s32.totalorder %s20, 0
      %p82 = por %p80, %p81
      %p83 = scmp.ne.s32.totalorder %s75, %s77
      %p84 = scmp.eq.s32.totalorder %s25, 1
      %p85 = por %p83, %p84
      %p86 = scmp.ne.s32.totalorder %s77, %s78
      %p87 = scmp.eq.s32.totalorder %s25, 0
      %p88 = por %p86, %p87
      %p89 = scmp.ne.s32.totalorder %s77, %s78
      %p90 = scmp.eq.s32.totalorder %s26, 1
      %p91 = por %p89, %p90
      %p93 = scmp.ne.s32.totalorder %s78, %s92
      %p94 = scmp.eq.s32.totalorder %s26, 0
      %p95 = por %p93, %p94
      %s97 = sadd.s32 %s96, 1
      %p100 = scmp.eq.s32.totalorder %s20, 1
      %p101 = scmp.ne.s32.totalorder %s96, %s98
      %p102 = scmp.eq.s32.totalorder %s20, 0
      %p103 = por %p101, %p102
      %p104 = scmp.ne.s32.totalorder %s96, %s98
      %p105 = scmp.eq.s32.totalorder %s25, 1
      %p106 = por %p104, %p105
      %p107 = scmp.ne.s32.totalorder %s98, %s99
      %p108 = scmp.eq.s32.totalorder %s25, 0
      %p109 = por %p107, %p108
      %p110 = scmp.ne.s32.totalorder %s98, %s99
      %p111 = scmp.eq.s32.totalorder %s26, 1
      %p112 = por %p110, %p111
      %p114 = scmp.ne.s32.totalorder %s99, %s113
      %p115 = scmp.eq.s32.totalorder %s26, 0
      %p116 = por %p114, %p115
      %s118 = sadd.s32 %s117, 1
      %p121 = scmp.eq.s32.totalorder %s20, 1
      %p122 = scmp.ne.s32.totalorder %s117, %s119
      %p123 = scmp.eq.s32.totalorder %s20, 0
      %p124 = por %p122, %p123
      %p125 = scmp.ne.s32.totalorder %s117, %s119
      %p126 = scmp.eq.s32.totalorder %s25, 1
      %p127 = por %p125, %p126
      %p128 = scmp.ne.s32.totalorder %s119, %s120
      %p129 = scmp.eq.s32.totalorder %s25, 0
      %p130 = por %p128, %p129
      %p131 = scmp.ne.s32.totalorder %s119, %s120
      %p132 = scmp.eq.s32.totalorder %s26, 1
      %p133 = por %p131, %p132
      %p135 = scmp.ne.s32.totalorder %s120, %s134
      %p136 = scmp.eq.s32.totalorder %s26, 0
      %p137 = por %p135, %p136
      %s139 = sadd.s32 %s138, 1
      %p142 = scmp.eq.s32.totalorder %s20, 1
      %p143 = scmp.ne.s32.totalorder %s138, %s140
      %p144 = scmp.eq.s32.totalorder %s20, 0
      %p145 = por %p143, %p144
      %p146 = scmp.ne.s32.totalorder %s138, %s140
      %p147 = scmp.eq.s32.totalorder %s25, 1
      %p148 = por %p146, %p147
      %p149 = scmp.ne.s32.totalorder %s140, %s141
      %p150 = scmp.eq.s32.totalorder %s25, 0
      %p151 = por %p149, %p150
      %p152 = scmp.ne.s32.totalorder %s140, %s141
      %p153 = scmp.eq.s32.totalorder %s26, 1
      %p154 = por %p152, %p153
      %p156 = scmp.ne.s32.totalorder %s141, %s155
      %p157 = scmp.eq.s32.totalorder %s26, 0
      %p158 = por %p156, %p157
      %s160 = sadd.s32 %s159, 1
      %p163 = scmp.eq.s32.totalorder %s20, 1
      %p164 = scmp.ne.s32.totalorder %s159, %s161
      %p165 = scmp.eq.s32.totalorder %s20, 0
      %p166 = por %p164, %p165
      %p167 = scmp.ne.s32.totalorder %s159, %s161
      %p168 = scmp.eq.s32.totalorder %s25, 1
      %p169 = por %p167, %p168
      %p170 = scmp.ne.s32.totalorder %s161, %s162
      %p171 = scmp.eq.s32.totalorder %s25, 0
      %p172 = por %p170, %p171
      %p173 = scmp.ne.s32.totalorder %s161, %s162
      %p174 = scmp.eq.s32.totalorder %s26, 1
      %p175 = por %p173, %p174
      %p177 = scmp.ne.s32.totalorder %s162, %s176
      %p178 = scmp.eq.s32.totalorder %s26, 0
      %p179 = por %p177, %p178
      %s180 = ssub.s32 %s20, %s27
      %p181 = scmp.eq.s32.totalorder %s180, 0
      %s183 = sadd.s32 %s182, 1
      %s184 = scalar_select %p181, %s182, %s183
      %p187 = pneg %p181
      %p188 = scmp.eq.s32.totalorder %s20, 1
      %p189 = por %p187, %p188
      %p190 = scmp.ne.s32.totalorder %s182, %s185
      %p191 = scmp.eq.s32.totalorder %s20, 0
      %p192 = por %p190, %p191
      %p193 = scmp.ne.s32.totalorder %s182, %s185
      %p194 = scmp.eq.s32.totalorder %s25, 1
      %p195 = por %p193, %p194
      %p196 = scmp.ne.s32.totalorder %s185, %s186
      %p197 = scmp.eq.s32.totalorder %s25, 0
      %p198 = por %p196, %p197
      %p199 = scmp.ne.s32.totalorder %s185, %s186
      %p200 = scmp.eq.s32.totalorder %s26, 1
      %p201 = por %p199, %p200
      %p203 = scmp.ne.s32.totalorder %s186, %s202
      %p204 = scmp.eq.s32.totalorder %s26, 0
      %p205 = por %p203, %p204
      %p206 = scmp.le.s32.totalorder 1, %s20
      %p207 = scmp.lt.s32.totalorder %s20, 3
      %p208 = pnand %p206, %p207
      %p209 = pneg %p208
      // Predicated region
      $region9: #{tpu_custom_call.1} parent=5 // pred_check
        _
      $region10: #{tpu_custom_call.1} parent=5 // pred_check_branch
        %211 = sbr.rel (%p208) target = $region12
      $region11: #{tpu_custom_call.1} parent=5 // pred_region
        %s212 = ssub.s32 %s20, 1
        // Predicated region
        $region13: #{tpu_custom_call.1} parent=11 // pred_check
          %p213 = pneg %p67
        $region14: #{tpu_custom_call.1} parent=11 // pred_check_branch
          %215 = sbr.rel (%p213) target = $region16
        $region15: #{tpu_custom_call.1} parent=11 // pred_region
          _
        $region16: #{tpu_custom_call.1} parent=11 // pred_fallthru
          _
        // Predicated region
        $region17: #{tpu_custom_call.1} parent=11 // pred_check
          %p216 = pneg %p88
        $region18: #{tpu_custom_call.1} parent=11 // pred_check_branch
          %218 = sbr.rel (%p216) target = $region20
        $region19: #{tpu_custom_call.1} parent=11 // pred_region
          _
        $region20: #{tpu_custom_call.1} parent=11 // pred_fallthru
          _
        // Predicated region
        $region21: #{tpu_custom_call.1} parent=11 // pred_check
          %p219 = pneg %p109
        $region22: #{tpu_custom_call.1} parent=11 // pred_check_branch
          %221 = sbr.rel (%p219) target = $region24
        $region23: #{tpu_custom_call.1} parent=11 // pred_region
          _
        $region24: #{tpu_custom_call.1} parent=11 // pred_fallthru
          _
        // Predicated region
        $region25: #{tpu_custom_call.1} parent=11 // pred_check
          %p222 = pneg %p130
        $region26: #{tpu_custom_call.1} parent=11 // pred_check_branch
          %224 = sbr.rel (%p222) target = $region28
        $region27: #{tpu_custom_call.1} parent=11 // pred_region
          _
        $region28: #{tpu_custom_call.1} parent=11 // pred_fallthru
          _
        // Predicated region
        $region29: #{tpu_custom_call.1} parent=11 // pred_check
          %p225 = pneg %p151
        $region30: #{tpu_custom_call.1} parent=11 // pred_check_branch
          %227 = sbr.rel (%p225) target = $region32
        $region31: #{tpu_custom_call.1} parent=11 // pred_region
          _
        $region32: #{tpu_custom_call.1} parent=11 // pred_fallthru
          _
        // Predicated region
        $region33: #{tpu_custom_call.1} parent=11 // pred_check
          %p228 = pneg %p172
        $region34: #{tpu_custom_call.1} parent=11 // pred_check_branch
          %230 = sbr.rel (%p228) target = $region36
        $region35: #{tpu_custom_call.1} parent=11 // pred_region
          %s232 = ssub.s32 512, 512
          %233 = vsyncadd [#allocation11], %s232
          %s234 = sshll.u32 [#allocation10], 4
          %s235 = int_to_ptr.vmem [resolvable:$true] %s234
          %240 = dma.hbm_to_vmem [thread:$0]  %s6, 512, %s235, [#allocation11], 256, 256, 16
        $region36: #{tpu_custom_call.1} parent=11 // pred_fallthru
          _
      $region12: #{tpu_custom_call.1} parent=5 // pred_fallthru
        _
      %p241 = scmp.lt.s32.totalorder %s20, 2
      // Predicated region
      $region37: #{tpu_custom_call.1} parent=5 // pred_check
        %p242 = pneg %p241
      $region38: #{tpu_custom_call.1} parent=5 // pred_check_branch
        %244 = sbr.rel (%p242) target = $region40
      $region39: #{tpu_custom_call.1} parent=5 // pred_region
        // Predicated region
        $region41: #{tpu_custom_call.1} parent=39 // pred_check
          %p245 = pneg %p40
        $region42: #{tpu_custom_call.1} parent=39 // pred_check_branch
          %247 = sbr.rel (%p245) target = $region44
        $region43: #{tpu_custom_call.1} parent=39 // pred_region
          %s248 = sand.u32 %s30, 1
          %s249 = scalar_lea.sflag [#allocation8], %s248
          %s250 = sand.u32 %s30, 1
          %s251 = smul.addr %s250, 12
          %s252 = scalar_lea.vmem [#allocation7], %s251
          %s254 = ssub.s32 192, 192
          %255 = vsyncadd %s249, %s254
          %s256 = smul.addr %s20, 64
          %s257 = scalar_lea.hbm %s0, %s256
          %s258 = sshll.u32 %s252, 4
          %s259 = int_to_ptr.vmem [resolvable:$true] %s258
          %264 = dma.hbm_to_vmem [thread:$0]  %s257, 192, %s259, %s249, 128, 64, 4
        $region44: #{tpu_custom_call.1} parent=39 // pred_fallthru
          _
      $region40: #{tpu_custom_call.1} parent=5 // pred_fallthru
        _
      %p265 = scmp.le.s32.totalorder 1, %s20
      %p266 = scmp.lt.s32.totalorder %s20, 3
      %p267 = pnand %p265, %p266
      %p268 = pneg %p267
      // Predicated region
      $region45: #{tpu_custom_call.1} parent=5 // pred_check
        _
      $region46: #{tpu_custom_call.1} parent=5 // pred_check_branch
        %270 = sbr.rel (%p267) target = $region48
      $region47: #{tpu_custom_call.1} parent=5 // pred_region
        %s271 = ssub.s32 %s20, 1
        %s272 = sand.u32 %s33, 1
        %s273 = scalar_lea.sflag [#allocation8], %s272
        %s274 = sand.u32 %s33, 1
        %s275 = smul.addr %s274, 12
        %s276 = scalar_lea.vmem [#allocation7], %s275
        // Predicated region
        $region49: #{tpu_custom_call.1} parent=47 // pred_check
          %p277 = pneg %p46
        $region50: #{tpu_custom_call.1} parent=47 // pred_check_branch
          %279 = sbr.rel (%p277) target = $region52
        $region51: #{tpu_custom_call.1} parent=47 // pred_region
          %280 = dma.done %s273, 192
        $region52: #{tpu_custom_call.1} parent=47 // pred_fallthru
          _
        // Predicated region
        $region53: #{tpu_custom_call.1} parent=47 // pred_check
          %p281 = pneg %p172
        $region54: #{tpu_custom_call.1} parent=47 // pred_check_branch
          %283 = sbr.rel (%p281) target = $region56
        $region55: #{tpu_custom_call.1} parent=47 // pred_region
          %284 = dma.done [#allocation11], 512
        $region56: #{tpu_custom_call.1} parent=47 // pred_fallthru
          _
        %s285 = sand.u32 %s33, 1
        %s286 = scalar_lea.sflag [#allocation8], %s285
        %s287 = sand.u32 %s33, 1
        %s288 = smul.addr %s287, 12
        %s289 = scalar_lea.vmem [#allocation7], %s288
        %p290 = pneg %p46
        %p291 = pneg %p43
        %p292 = pneg %p67
        %p293 = pneg %p64
        %p294 = pneg %p88
        %p295 = pneg %p85
        %p296 = pneg %p109
        %p297 = pneg %p106
        %p298 = pneg %p130
        %p299 = pneg %p127
        %p300 = pneg %p151
        %p301 = pneg %p148
        %p302 = pneg %p172
        %p303 = pneg %p169
        %p304 = pneg %p198
        %p305 = pneg %p195
        %s306 = sand.u32 %s185, 1
        %s307 = scalar_lea.sflag [#allocation9], %s306
        %s308 = sand.u32 %s185, 1
        %s309 = smul.addr %s308, 16
        %s310 = scalar_lea.vmem [#allocation12], %s309
        %v313 = vld [vmem:[%s1] sm:$0xf]
        %v314 = vld [vmem:[%s1 + $0x4] sm:$0xf]
        %v315 = vld [vmem:[%s1 + $0x8] sm:$0xf]
        %v316 = vld [vmem:[%s1 + $0xc] sm:$0xf]
        %v317 = vld [vmem:[%s1 + $0x10] sm:$0xf]
        %v318 = vld [vmem:[%s1 + $0x14] sm:$0xf]
        %v319 = vld [vmem:[%s1 + $0x18] sm:$0xf]
        %v320 = vld [vmem:[%s1 + $0x1c] sm:$0xf]
        %v321 = vld [vmem:[%s1 + $0x20] sm:$0xf]
        %v322 = vld [vmem:[%s1 + $0x24] sm:$0xf]
        %v323 = vld [vmem:[%s1 + $0x28] sm:$0xf]
        %v324 = vld [vmem:[%s1 + $0x2c] sm:$0xf]
        %v325 = vld [vmem:[%s1 + $0x30] sm:$0xf]
        %v326 = vld [vmem:[%s1 + $0x34] sm:$0xf]
        %v327 = vld [vmem:[%s1 + $0x38] sm:$0xf]
        %v328 = vld [vmem:[%s1 + $0x3c] sm:$0xf]
        %v329 = vld [vmem:[%s1 + $0x40] sm:$0xf]
        %v330 = vld [vmem:[%s1 + $0x44] sm:$0xf]
        %v331 = vld [vmem:[%s1 + $0x48] sm:$0xf]
        %v332 = vld [vmem:[%s1 + $0x4c] sm:$0xf]
        %v333 = vld [vmem:[%s1 + $0x50] sm:$0xf]
        %v334 = vld [vmem:[%s1 + $0x54] sm:$0xf]
        %v335 = vld [vmem:[%s1 + $0x58] sm:$0xf]
        %v336 = vld [vmem:[%s1 + $0x5c] sm:$0xf]
        %v337 = vld [vmem:[%s1 + $0x60] sm:$0xf]
        %v338 = vld [vmem:[%s1 + $0x64] sm:$0xf]
        %v339 = vld [vmem:[%s1 + $0x68] sm:$0xf]
        %v340 = vld [vmem:[%s1 + $0x6c] sm:$0xf]
        %v341 = vld [vmem:[%s1 + $0x70] sm:$0xf]
        %v342 = vld [vmem:[%s1 + $0x74] sm:$0xf]
        %v343 = vld [vmem:[%s1 + $0x78] sm:$0xf]
        %v344 = vld [vmem:[%s1 + $0x7c] sm:$0xf]
        %v345 = vld [vmem:[%s1 + $0x80] sm:$0xf]
        %v346 = vld [vmem:[%s1 + $0x84] sm:$0xf]
        %v347 = vld [vmem:[%s1 + $0x88] sm:$0xf]
        %v348 = vld [vmem:[%s1 + $0x8c] sm:$0xf]
        %v349 = vld [vmem:[%s1 + $0x90] sm:$0xf]
        %v350 = vld [vmem:[%s1 + $0x94] sm:$0xf]
        %v351 = vld [vmem:[%s1 + $0x98] sm:$0xf]
        %v352 = vld [vmem:[%s1 + $0x9c] sm:$0xf]
        %v353 = vld [vmem:[%s1 + $0xa0] sm:$0xf]
        %v354 = vld [vmem:[%s1 + $0xa4] sm:$0xf]
        %v355 = vld [vmem:[%s1 + $0xa8] sm:$0xf]
        %v356 = vld [vmem:[%s1 + $0xac] sm:$0xf]
        %v357 = vld [vmem:[%s1 + $0xb0] sm:$0xf]
        %v358 = vld [vmem:[%s1 + $0xb4] sm:$0xf]
        %v359 = vld [vmem:[%s1 + $0xb8] sm:$0xf]
        %v360 = vld [vmem:[%s1 + $0xbc] sm:$0xf]
        %v361 = vld [vmem:[%s1 + $0xc0] sm:$0xf]
        %v362 = vld [vmem:[%s1 + $0xc4] sm:$0xf]
        %v363 = vld [vmem:[%s1 + $0xc8] sm:$0xf]
        %v364 = vld [vmem:[%s1 + $0xcc] sm:$0xf]
        %v365 = vld [vmem:[%s1 + $0xd0] sm:$0xf]
        %v366 = vld [vmem:[%s1 + $0xd4] sm:$0xf]
        %v367 = vld [vmem:[%s276] sm:$0xf]
        %v368 = vld [vmem:[%s276 + $0x4] sm:$0xf]
        %v369 = vld [vmem:[%s276 + $0x8] sm:$0x1]
        %v424 = vunpack.c.l.b16 %v313
        %v425 = vunpack.c.l.b16 %v314
        %v426 = vunpack.c.l.b16 %v315
        %v427 = vunpack.c.l.b16 %v316
        %v428 = vunpack.c.l.b16 %v317
        %v429 = vunpack.c.l.b16 %v318
        %v430 = vunpack.c.l.b16 %v319
        %v431 = vunpack.c.l.b16 %v320
        %v432 = vunpack.c.l.b16 %v321
        %v433 = vunpack.c.l.b16 %v322
        %v434 = vunpack.c.l.b16 %v323
        %v435 = vunpack.c.l.b16 %v324
        %v436 = vunpack.c.l.b16 %v325
        %v437 = vunpack.c.l.b16 %v326
        %v438 = vunpack.c.l.b16 %v327
        %v439 = vunpack.c.l.b16 %v328
        %v440 = vunpack.c.l.b16 %v329
        %v441 = vunpack.c.l.b16 %v330
        %v442 = vunpack.c.l.b16 %v331
        %v443 = vunpack.c.l.b16 %v332
        %v444 = vunpack.c.l.b16 %v333
        %v445 = vunpack.c.l.b16 %v334
        %v446 = vunpack.c.l.b16 %v335
        %v447 = vunpack.c.l.b16 %v336
        %v448 = vunpack.c.l.b16 %v337
        %v449 = vunpack.c.l.b16 %v338
        %v450 = vunpack.c.l.b16 %v339
        %v451 = vunpack.c.l.b16 %v340
        %v452 = vunpack.c.l.b16 %v341
        %v453 = vunpack.c.l.b16 %v342
        %v454 = vunpack.c.l.b16 %v343
        %v455 = vunpack.c.l.b16 %v344
        %v456 = vunpack.c.l.b16 %v345
        %v457 = vunpack.c.l.b16 %v346
        %v458 = vunpack.c.l.b16 %v347
        %v459 = vunpack.c.l.b16 %v348
        %v460 = vunpack.c.l.b16 %v349
        %v461 = vunpack.c.l.b16 %v350
        %v462 = vunpack.c.l.b16 %v351
        %v463 = vunpack.c.l.b16 %v352
        %v464 = vunpack.c.l.b16 %v353
        %v465 = vunpack.c.l.b16 %v354
        %v466 = vunpack.c.l.b16 %v355
        %v467 = vunpack.c.l.b16 %v356
        %v468 = vunpack.c.l.b16 %v357
        %v469 = vunpack.c.l.b16 %v358
        %v470 = vunpack.c.l.b16 %v359
        %v471 = vunpack.c.l.b16 %v360
        %v472 = vunpack.c.l.b16 %v361
        %v473 = vunpack.c.l.b16 %v362
        %v474 = vunpack.c.l.b16 %v363
        %v475 = vunpack.c.l.b16 %v364
        %v476 = vunpack.c.l.b16 %v365
        %v477 = vunpack.c.l.b16 %v366
        %v478 = vpack.c.b16 %v425, %v424
        %v479 = vpack.c.b16 %v427, %v426
        %v480 = vpack.c.b16 %v429, %v428
        %v481 = vpack.c.b16 %v431, %v430
        %v482 = vpack.c.b16 %v433, %v432
        %v483 = vpack.c.b16 %v435, %v434
        %v484 = vpack.c.b16 %v437, %v436
        %v485 = vpack.c.b16 %v439, %v438
        %v486 = vpack.c.b16 %v441, %v440
        %v487 = vpack.c.b16 %v443, %v442
        %v488 = vpack.c.b16 %v445, %v444
        %v489 = vpack.c.b16 %v447, %v446
        %v490 = vpack.c.b16 %v449, %v448
        %v491 = vpack.c.b16 %v451, %v450
        %v492 = vpack.c.b16 %v453, %v452
        %v493 = vpack.c.b16 %v455, %v454
        %v494 = vpack.c.b16 %v457, %v456
        %v495 = vpack.c.b16 %v459, %v458
        %v496 = vpack.c.b16 %v461, %v460
        %v497 = vpack.c.b16 %v463, %v462
        %v498 = vpack.c.b16 %v465, %v464
        %v499 = vpack.c.b16 %v467, %v466
        %v500 = vpack.c.b16 %v469, %v468
        %v501 = vpack.c.b16 %v471, %v470
        %v502 = vpack.c.b16 %v473, %v472
        %v503 = vpack.c.b16 %v475, %v474
        %v504 = vpack.c.b16 %v477, %v476
        %v508 = vunpack.c.l.b16 %v367
        %v509 = vunpack.c.l.b16 %v368
        %v510 = vunpack.c.l.b16 %v369
        %v511 = vpack.c.b16 %v509, %v508
        %v512 = vpack.c.b16 %v510, %v510
        %vm514 = vcmask 138240
        %v516 = vsel %vm514, %v478, 0
        %v519 = vsel %vm514, %v479, 0
        %v522 = vsel %vm514, %v480, 0
        %v525 = vsel %vm514, %v481, 0
        %v528 = vsel %vm514, %v482, 0
        %v531 = vsel %vm514, %v483, 0
        %v534 = vsel %vm514, %v484, 0
        %v537 = vsel %vm514, %v485, 0
        %v540 = vsel %vm514, %v486, 0
        %v543 = vsel %vm514, %v487, 0
        %v546 = vsel %vm514, %v488, 0
        %v549 = vsel %vm514, %v489, 0
        %v552 = vsel %vm514, %v490, 0
        %v555 = vsel %vm514, %v491, 0
        %v558 = vsel %vm514, %v492, 0
        %v561 = vsel %vm514, %v493, 0
        %v564 = vsel %vm514, %v494, 0
        %v567 = vsel %vm514, %v495, 0
        %v570 = vsel %vm514, %v496, 0
        %v573 = vsel %vm514, %v497, 0
        %v576 = vsel %vm514, %v498, 0
        %v579 = vsel %vm514, %v499, 0
        %v582 = vsel %vm514, %v500, 0
        %v585 = vsel %vm514, %v501, 0
        %v588 = vsel %vm514, %v502, 0
        %v591 = vsel %vm514, %v503, 0
        %v594 = vsel %vm514, %v504, 0
        %vm596 = vcmask 1040384
        %v597 = vsel 0, 4294967295, 65535
        %v598 = vsel %vm596, %v597, 0
        %v600 = vand.u32 %v512, %v598
        %602 = vmatprep.subr.bf16.mxu0 0
        %603 = vmatpush1.bf16.msra.mxu0 %v511
        %604 = vmatprep.subr.bf16.mxu0 0
        %605 = vmatpush1.bf16.msra.mxu0 %v600
        %606 = vmatprep.subr.bf16.mxu0 0
        %607 = vmatpush1.bf16.msra.mxu0 0
        %608 = vmatprep.subr.bf16.mxu0 0
        %609 = vmatpush1.bf16.msra.mxu0 0
        %610 = vmatprep.subr.bf16.mxu0 0
        %611 = vmatpush1.bf16.msra.mxu0 0
        %612 = vmatprep.subr.bf16.mxu0 0
        %613 = vmatpush1.bf16.msra.mxu0 0
        %614 = vmatprep.subr.bf16.mxu0 0
        %615 = vmatpush1.bf16.msra.mxu0 0
        %616 = vmatprep.subr.bf16.mxu0 0
        %617 = vmatpush1.bf16.msra.mxu0 0
        %618 = vmatprep.subr.bf16.mxu0 0
        %619 = vmatpush1.bf16.msra.mxu0 0
        %620 = vmatprep.subr.bf16.mxu0 0
        %621 = vmatpush1.bf16.msra.mxu0 0
        %622 = vmatprep.subr.bf16.mxu0 0
        %623 = vmatpush1.bf16.msra.mxu0 0
        %624 = vmatprep.subr.bf16.mxu0 0
        %625 = vmatpush1.bf16.msra.mxu0 0
        %626 = vmatprep.subr.bf16.mxu0 0
        %627 = vmatpush1.bf16.msra.mxu0 0
        %628 = vmatprep.subr.bf16.mxu0 0
        %629 = vmatpush1.bf16.msra.mxu0 0
        %630 = vmatprep.subr.bf16.mxu0 0
        %631 = vmatpush1.bf16.msra.mxu0 0
        %632 = vmatprep.subr.bf16.mxu0 0
        %633 = vmatpush1.bf16.msra.mxu0 0
        %634 = vmatprep.mubr.bf16.mxu0 0
        %635 = vmatmul.mubr.bf16.gmra.mrb[0].mxu0 %v516
        %v636 = vpop.f32.mrb[0].mxu0
        %v637 = vadd.f32 0.0, %v636
        %v638 = vpop.f32.mrb[0].mxu0
        %v639 = vpop.f32.mrb[0].mxu0
        %v640 = vadd.f32 0.0, %v639
        %v641 = vpop.f32.mrb[0].mxu0
        %642 = vmatprep.mubr.bf16.mxu0 0
        %643 = vmatmul.mubr.bf16.gmra.mrb[0].mxu0 %v519
        %v644 = vpop.f32.mrb[0].mxu0
        %v645 = vadd.f32 0.0, %v644
        %v646 = vpop.f32.mrb[0].mxu0
        %v647 = vpop.f32.mrb[0].mxu0
        %v648 = vadd.f32 0.0, %v647
        %v649 = vpop.f32.mrb[0].mxu0
        %650 = vmatprep.mubr.bf16.mxu0 0
        %651 = vmatmul.mubr.bf16.gmra.mrb[0].mxu0 %v522
        %v652 = vpop.f32.mrb[0].mxu0
        %v653 = vadd.f32 0.0, %v652
        %v654 = vpop.f32.mrb[0].mxu0
        %v655 = vpop.f32.mrb[0].mxu0
        %v656 = vadd.f32 0.0, %v655
        %v657 = vpop.f32.mrb[0].mxu0
        %658 = vmatprep.mubr.bf16.mxu0 0
        %659 = vmatmul.mubr.bf16.gmra.mrb[0].mxu0 %v525
        %v660 = vpop.f32.mrb[0].mxu0
        %v661 = vadd.f32 0.0, %v660
        %v662 = vpop.f32.mrb[0].mxu0
        %v663 = vpop.f32.mrb[0].mxu0
        %v664 = vadd.f32 0.0, %v663
        %v665 = vpop.f32.mrb[0].mxu0
        %666 = vmatprep.mubr.bf16.mxu0 0
        %667 = vmatmul.mubr.bf16.gmra.mrb[0].mxu0 %v528
        %v668 = vpop.f32.mrb[0].mxu0
        %v669 = vadd.f32 0.0, %v668
        %v670 = vpop.f32.mrb[0].mxu0
        %v671 = vpop.f32.mrb[0].mxu0
        %v672 = vadd.f32 0.0, %v671
        %v673 = vpop.f32.mrb[0].mxu0
        %674 = vmatprep.mubr.bf16.mxu0 0
        %675 = vmatmul.mubr.bf16.gmra.mrb[0].mxu0 %v531
        %v676 = vpop.f32.mrb[0].mxu0
        %v677 = vadd.f32 0.0, %v676
        %v678 = vpop.f32.mrb[0].mxu0
        %v679 = vpop.f32.mrb[0].mxu0
        %v680 = vadd.f32 0.0, %v679
        %v681 = vpop.f32.mrb[0].mxu0
        %682 = vmatprep.mubr.bf16.mxu0 0
        %683 = vmatmul.mubr.bf16.gmra.mrb[0].mxu0 %v534
        %v684 = vpop.f32.mrb[0].mxu0
        %v685 = vadd.f32 0.0, %v684
        %v686 = vpop.f32.mrb[0].mxu0
        %v687 = vpop.f32.mrb[0].mxu0
        %v688 = vadd.f32 0.0, %v687
        %v689 = vpop.f32.mrb[0].mxu0
        %690 = vmatprep.mubr.bf16.mxu0 0
        %691 = vmatmul.mubr.bf16.gmra.mrb[0].mxu0 %v537
        %v692 = vpop.f32.mrb[0].mxu0
        %v693 = vadd.f32 0.0, %v692
        %v694 = vpop.f32.mrb[0].mxu0
        %v695 = vpop.f32.mrb[0].mxu0
        %v696 = vadd.f32 0.0, %v695
        %v697 = vpop.f32.mrb[0].mxu0
        %698 = vmatprep.mubr.bf16.mxu0 0
        %699 = vmatmul.mubr.bf16.gmra.mrb[0].mxu0 %v540
        %v700 = vpop.f32.mrb[0].mxu0
        %v701 = vadd.f32 0.0, %v700
        %v702 = vpop.f32.mrb[0].mxu0
        %v703 = vpop.f32.mrb[0].mxu0
        %v704 = vadd.f32 0.0, %v703
        %v705 = vpop.f32.mrb[0].mxu0
        %706 = vmatprep.mubr.bf16.mxu0 0
        %707 = vmatmul.mubr.bf16.gmra.mrb[0].mxu0 %v543
        %v708 = vpop.f32.mrb[0].mxu0
        %v709 = vadd.f32 0.0, %v708
        %v710 = vpop.f32.mrb[0].mxu0
        %v711 = vpop.f32.mrb[0].mxu0
        %v712 = vadd.f32 0.0, %v711
        %v713 = vpop.f32.mrb[0].mxu0
        %714 = vmatprep.mubr.bf16.mxu0 0
        %715 = vmatmul.mubr.bf16.gmra.mrb[0].mxu0 %v546
        %v716 = vpop.f32.mrb[0].mxu0
        %v717 = vadd.f32 0.0, %v716
        %v718 = vpop.f32.mrb[0].mxu0
        %v719 = vpop.f32.mrb[0].mxu0
        %v720 = vadd.f32 0.0, %v719
        %v721 = vpop.f32.mrb[0].mxu0
        %722 = vmatprep.mubr.bf16.mxu0 0
        %723 = vmatmul.mubr.bf16.gmra.mrb[0].mxu0 %v549
        %v724 = vpop.f32.mrb[0].mxu0
        %v725 = vadd.f32 0.0, %v724
        %v726 = vpop.f32.mrb[0].mxu0
        %v727 = vpop.f32.mrb[0].mxu0
        %v728 = vadd.f32 0.0, %v727
        %v729 = vpop.f32.mrb[0].mxu0
        %730 = vmatprep.mubr.bf16.mxu0 0
        %731 = vmatmul.mubr.bf16.gmra.mrb[0].mxu0 %v552
        %v732 = vpop.f32.mrb[0].mxu0
        %v733 = vadd.f32 0.0, %v732
        %v734 = vpop.f32.mrb[0].mxu0
        %v735 = vpop.f32.mrb[0].mxu0
        %v736 = vadd.f32 0.0, %v735
        %v737 = vpop.f32.mrb[0].mxu0
        %738 = vmatprep.mubr.bf16.mxu0 0
        %739 = vmatmul.mubr.bf16.gmra.mrb[0].mxu0 %v555
        %v740 = vpop.f32.mrb[0].mxu0
        %v741 = vadd.f32 0.0, %v740
        %v742 = vpop.f32.mrb[0].mxu0
        %v743 = vpop.f32.mrb[0].mxu0
        %v744 = vadd.f32 0.0, %v743
        %v745 = vpop.f32.mrb[0].mxu0
        %746 = vmatprep.mubr.bf16.mxu0 0
        %747 = vmatmul.mubr.bf16.gmra.mrb[0].mxu0 %v558
        %v748 = vpop.f32.mrb[0].mxu0
        %v749 = vadd.f32 0.0, %v748
        %v750 = vpop.f32.mrb[0].mxu0
        %v751 = vpop.f32.mrb[0].mxu0
        %v752 = vadd.f32 0.0, %v751
        %v753 = vpop.f32.mrb[0].mxu0
        %754 = vmatprep.mubr.bf16.mxu0 0
        %755 = vmatmul.mubr.bf16.gmra.mrb[0].mxu0 %v561
        %v756 = vpop.f32.mrb[0].mxu0
        %v757 = vadd.f32 0.0, %v756
        %v758 = vpop.f32.mrb[0].mxu0
        %v759 = vpop.f32.mrb[0].mxu0
        %v760 = vadd.f32 0.0, %v759
        %v761 = vpop.f32.mrb[0].mxu0
        %762 = vmatprep.mubr.bf16.mxu0 0
        %763 = vmatmul.mubr.bf16.gmra.mrb[0].mxu0 %v564
        %v764 = vpop.f32.mrb[0].mxu0
        %v765 = vadd.f32 0.0, %v764
        %v766 = vpop.f32.mrb[0].mxu0
        %v767 = vpop.f32.mrb[0].mxu0
        %v768 = vadd.f32 0.0, %v767
        %v769 = vpop.f32.mrb[0].mxu0
        %770 = vmatprep.mubr.bf16.mxu0 0
        %771 = vmatmul.mubr.bf16.gmra.mrb[0].mxu0 %v567
        %v772 = vpop.f32.mrb[0].mxu0
        %v773 = vadd.f32 0.0, %v772
        %v774 = vpop.f32.mrb[0].mxu0
        %v775 = vpop.f32.mrb[0].mxu0
        %v776 = vadd.f32 0.0, %v775
        %v777 = vpop.f32.mrb[0].mxu0
        %778 = vmatprep.mubr.bf16.mxu0 0
        %779 = vmatmul.mubr.bf16.gmra.mrb[0].mxu0 %v570
        %v780 = vpop.f32.mrb[0].mxu0
        %v781 = vadd.f32 0.0, %v780
        %v782 = vpop.f32.mrb[0].mxu0
        %v783 = vpop.f32.mrb[0].mxu0
        %v784 = vadd.f32 0.0, %v783
        %v785 = vpop.f32.mrb[0].mxu0
        %786 = vmatprep.mubr.bf16.mxu0 0
        %787 = vmatmul.mubr.bf16.gmra.mrb[0].mxu0 %v573
        %v788 = vpop.f32.mrb[0].mxu0
        %v789 = vadd.f32 0.0, %v788
        %v790 = vpop.f32.mrb[0].mxu0
        %v791 = vpop.f32.mrb[0].mxu0
        %v792 = vadd.f32 0.0, %v791
        %v793 = vpop.f32.mrb[0].mxu0
        %794 = vmatprep.mubr.bf16.mxu0 0
        %795 = vmatmul.mubr.bf16.gmra.mrb[0].mxu0 %v576
        %v796 = vpop.f32.mrb[0].mxu0
        %v797 = vadd.f32 0.0, %v796
        %v798 = vpop.f32.mrb[0].mxu0
        %v799 = vpop.f32.mrb[0].mxu0
        %v800 = vadd.f32 0.0, %v799
        %v801 = vpop.f32.mrb[0].mxu0
        %802 = vmatprep.mubr.bf16.mxu0 0
        %803 = vmatmul.mubr.bf16.gmra.mrb[0].mxu0 %v579
        %v804 = vpop.f32.mrb[0].mxu0
        %v805 = vadd.f32 0.0, %v804
        %v806 = vpop.f32.mrb[0].mxu0
        %v807 = vpop.f32.mrb[0].mxu0
        %v808 = vadd.f32 0.0, %v807
        %v809 = vpop.f32.mrb[0].mxu0
        %810 = vmatprep.mubr.bf16.mxu0 0
        %811 = vmatmul.mubr.bf16.gmra.mrb[0].mxu0 %v582
        %v812 = vpop.f32.mrb[0].mxu0
        %v813 = vadd.f32 0.0, %v812
        %v814 = vpop.f32.mrb[0].mxu0
        %v815 = vpop.f32.mrb[0].mxu0
        %v816 = vadd.f32 0.0, %v815
        %v817 = vpop.f32.mrb[0].mxu0
        %818 = vmatprep.mubr.bf16.mxu0 0
        %819 = vmatmul.mubr.bf16.gmra.mrb[0].mxu0 %v585
        %v820 = vpop.f32.mrb[0].mxu0
        %v821 = vadd.f32 0.0, %v820
        %v822 = vpop.f32.mrb[0].mxu0
        %v823 = vpop.f32.mrb[0].mxu0
        %v824 = vadd.f32 0.0, %v823
        %v825 = vpop.f32.mrb[0].mxu0
        %826 = vmatprep.mubr.bf16.mxu0 0
        %827 = vmatmul.mubr.bf16.gmra.mrb[0].mxu0 %v588
        %v828 = vpop.f32.mrb[0].mxu0
        %v829 = vadd.f32 0.0, %v828
        %v830 = vpop.f32.mrb[0].mxu0
        %v831 = vpop.f32.mrb[0].mxu0
        %v832 = vadd.f32 0.0, %v831
        %v833 = vpop.f32.mrb[0].mxu0
        %834 = vmatprep.mubr.bf16.mxu0 0
        %835 = vmatmul.mubr.bf16.gmra.mrb[0].mxu0 %v591
        %v836 = vpop.f32.mrb[0].mxu0
        %v837 = vadd.f32 0.0, %v836
        %v838 = vpop.f32.mrb[0].mxu0
        %v839 = vpop.f32.mrb[0].mxu0
        %v840 = vadd.f32 0.0, %v839
        %v841 = vpop.f32.mrb[0].mxu0
        %842 = vmatprep.mubr.bf16.mxu0 0
        %843 = vmatmul.mubr.bf16.gmra.mrb[0].mxu0 %v594
        %v844 = vpop.f32.mrb[0].mxu0
        %v845 = vadd.f32 0.0, %v844
        %v846 = vpop.f32.mrb[0].mxu0
        %v847 = vpop.f32.mrb[0].mxu0
        %v848 = vadd.f32 0.0, %v847
        %v849 = vpop.f32.mrb[0].mxu0
        %850 = vdwg.mxu0
        %vm851 = vcmask 146432
        %852 = vst.msk [vmem:[#allocation2] sm:$0xff] %vm851, 0.0
        %853 = vst.msk [vmem:[#allocation2 + $0x10] sm:$0xff] %vm851, 0.0
        %vm854 = vcmask 294032
        %855 = vst.msk [vmem:[#allocation2 + $0x8] sm:$0xff] %vm854, 0.0
        %856 = vst.msk [vmem:[#allocation2 + $0x18] sm:$0xff] %vm854, 0.0
        %857 = vst.msk [vmem:[#allocation3] sm:$0xff] %vm851, 0.0
        %858 = vst.msk [vmem:[#allocation3 + $0x10] sm:$0xff] %vm851, 0.0
        %859 = vst.msk [vmem:[#allocation3 + $0x8] sm:$0xff] %vm854, 0.0
        %860 = vst.msk [vmem:[#allocation3 + $0x18] sm:$0xff] %vm854, 0.0
        %863 = vrot.lane.b32.xlu0 %v837, 18
        %v864 = vpop.permute.xlu0 %863
        %865 = vrot.lane.b32.xlu0 %v840, 18
        %v866 = vpop.permute.xlu0 %865
        %vm869 = vcmask 1047696
        %870 = vst.msk [vmem:[#allocation2] sm:$0xff] %vm869, %v864
        %871 = vst.msk [vmem:[#allocation2 + $0x8] sm:$0xff] %vm851, %v864
        %872 = vst.msk [vmem:[#allocation2 + $0x10] sm:$0xff] %vm869, %v866
        %873 = vst.msk [vmem:[#allocation2 + $0x18] sm:$0xff] %vm851, %v866
        %876 = vrot.lane.b32.xlu0 %v845, 18
        %v877 = vpop.permute.xlu0 %876
        %878 = vrot.lane.b32.xlu0 %v848, 18
        %v879 = vpop.permute.xlu0 %878
        %882 = vst.msk [vmem:[#allocation3] sm:$0xff] %vm869, %v877
        %883 = vst.msk [vmem:[#allocation3 + $0x8] sm:$0xff] %vm851, %v877
        %884 = vst.msk [vmem:[#allocation3 + $0x10] sm:$0xff] %vm869, %v879
        %885 = vst.msk [vmem:[#allocation3 + $0x18] sm:$0xff] %vm851, %v879
        %vm886 = vcmask 1040384
        %vm887 = vsmask.f32 256
        %vm888 = vmand %vm886, %vm887
        %v889 = vld [vmem:[#allocation4 + $0xc8] sm:$0x1]
        %v890 = vsel %vm888, 1065369472, %v889
        %891 = vst [vmem:[#allocation4 + $0xc8] sm:$0x1] %v890
        %v892 = vld [vmem:[%s5] sm:$0xff]
        %v893 = vld [vmem:[%s5 + $0x8] sm:$0xff]
        %v894 = vld [vmem:[%s5 + $0x10] sm:$0xff]
        %v895 = vld [vmem:[%s5 + $0x18] sm:$0xff]
        %v896 = vld [vmem:[%s5 + $0x20] sm:$0xff]
        %v897 = vld [vmem:[%s5 + $0x28] sm:$0xff]
        %v898 = vld [vmem:[%s5 + $0x30] sm:$0xff]
        %v899 = vld [vmem:[%s5 + $0x38] sm:$0xff]
        %v900 = vld [vmem:[%s5 + $0x40] sm:$0xff]
        %v901 = vld [vmem:[%s5 + $0x48] sm:$0xff]
        %v902 = vld [vmem:[%s5 + $0x50] sm:$0xff]
        %v903 = vld [vmem:[%s5 + $0x58] sm:$0xff]
        %v904 = vld [vmem:[%s5 + $0x60] sm:$0xff]
        %v905 = vld [vmem:[%s5 + $0x68] sm:$0xff]
        %v906 = vld [vmem:[%s5 + $0x70] sm:$0xff]
        %v907 = vld [vmem:[%s5 + $0x78] sm:$0xff]
        %v908 = vld [vmem:[%s5 + $0x80] sm:$0xff]
        %v909 = vld [vmem:[%s5 + $0x88] sm:$0xff]
        %v910 = vld [vmem:[%s5 + $0x90] sm:$0xff]
        %v911 = vld [vmem:[%s5 + $0x98] sm:$0xff]
        %v912 = vld [vmem:[%s5 + $0xa0] sm:$0xff]
        %v913 = vld [vmem:[%s5 + $0xa8] sm:$0xff]
        %v914 = vld [vmem:[%s5 + $0xb0] sm:$0xff]
        %v915 = vld [vmem:[%s5 + $0xb8] sm:$0xff]
        %v916 = vld [vmem:[%s5 + $0xc0] sm:$0xff]
        %v917 = vld [vmem:[%s5 + $0xc8] sm:$0xff]
        %v918 = vld [vmem:[%s5 + $0xd0] sm:$0xff]
        %v919 = vld [vmem:[%s5 + $0xd8] sm:$0xff]
        %v920 = vld [vmem:[%s5 + $0xe0] sm:$0xff]
        %v921 = vld [vmem:[%s5 + $0xe8] sm:$0xff]
        %v922 = vld [vmem:[%s5 + $0xf0] sm:$0xff]
        %v923 = vld [vmem:[%s5 + $0xf8] sm:$0xff]
        %v924 = vld [vmem:[%s5 + $0x100] sm:$0xff]
        %v925 = vld [vmem:[%s5 + $0x108] sm:$0xff]
        %v926 = vld [vmem:[%s5 + $0x110] sm:$0xff]
        %v927 = vld [vmem:[%s5 + $0x118] sm:$0xff]
        %v928 = vld [vmem:[%s5 + $0x120] sm:$0xff]
        %v929 = vld [vmem:[%s5 + $0x128] sm:$0xff]
        %v930 = vld [vmem:[%s5 + $0x130] sm:$0xff]
        %v931 = vld [vmem:[%s5 + $0x138] sm:$0xff]
        %v932 = vld [vmem:[%s5 + $0x140] sm:$0xff]
        %v933 = vld [vmem:[%s5 + $0x148] sm:$0xff]
        %v934 = vld [vmem:[%s5 + $0x150] sm:$0xff]
        %v935 = vld [vmem:[%s5 + $0x158] sm:$0xff]
        %v936 = vld [vmem:[%s5 + $0x160] sm:$0xff]
        %v937 = vld [vmem:[%s5 + $0x168] sm:$0xff]
        %v938 = vld [vmem:[%s5 + $0x170] sm:$0xff]
        %v939 = vld [vmem:[%s5 + $0x178] sm:$0xff]
        %v940 = vld [vmem:[%s5 + $0x180] sm:$0xff]
        %v941 = vld [vmem:[%s5 + $0x188] sm:$0xff]
        %v942 = vmul.f32 %v637, %v892
        %v943 = vmul.f32 %v640, %v893
        %v944 = vmul.f32 %v645, %v894
        %v945 = vmul.f32 %v648, %v895
        %v946 = vmul.f32 %v653, %v896
        %v947 = vmul.f32 %v656, %v897
        %v948 = vmul.f32 %v661, %v898
        %v949 = vmul.f32 %v664, %v899
        %v950 = vmul.f32 %v669, %v900
        %v951 = vmul.f32 %v672, %v901
        %v952 = vmul.f32 %v677, %v902
        %v953 = vmul.f32 %v680, %v903
        %v954 = vmul.f32 %v685, %v904
        %v955 = vmul.f32 %v688, %v905
        %v956 = vmul.f32 %v693, %v906
        %v957 = vmul.f32 %v696, %v907
        %v958 = vmul.f32 %v701, %v908
        %v959 = vmul.f32 %v704, %v909
        %v960 = vmul.f32 %v709, %v910
        %v961 = vmul.f32 %v712, %v911
        %v962 = vmul.f32 %v717, %v912
        %v963 = vmul.f32 %v720, %v913
        %v964 = vmul.f32 %v725, %v914
        %v965 = vmul.f32 %v728, %v915
        %v966 = vmul.f32 %v733, %v916
        %v967 = vmul.f32 %v736, %v917
        %v968 = vmul.f32 %v741, %v918
        %v969 = vmul.f32 %v744, %v919
        %v970 = vmul.f32 %v749, %v920
        %v971 = vmul.f32 %v752, %v921
        %v972 = vmul.f32 %v757, %v922
        %v973 = vmul.f32 %v760, %v923
        %v974 = vmul.f32 %v765, %v924
        %v975 = vmul.f32 %v768, %v925
        %v976 = vmul.f32 %v773, %v926
        %v977 = vmul.f32 %v776, %v927
        %v978 = vmul.f32 %v781, %v928
        %v979 = vmul.f32 %v784, %v929
        %v980 = vmul.f32 %v789, %v930
        %v981 = vmul.f32 %v792, %v931
        %v982 = vmul.f32 %v797, %v932
        %v983 = vmul.f32 %v800, %v933
        %v984 = vmul.f32 %v805, %v934
        %v985 = vmul.f32 %v808, %v935
        %v986 = vmul.f32 %v813, %v936
        %v987 = vmul.f32 %v816, %v937
        %v988 = vmul.f32 %v821, %v938
        %v989 = vmul.f32 %v824, %v939
        %v990 = vmul.f32 %v829, %v940
        %v991 = vmul.f32 %v832, %v941
        %992 = vst [vmem:[#allocation5] sm:$0xff] %v942
        %993 = vst [vmem:[#allocation5 + $0x8] sm:$0xff] %v943
        %994 = vst [vmem:[#allocation5 + $0x10] sm:$0xff] %v944
        %995 = vst [vmem:[#allocation5 + $0x18] sm:$0xff] %v945
        %996 = vst [vmem:[#allocation5 + $0x20] sm:$0xff] %v946
        %997 = vst [vmem:[#allocation5 + $0x28] sm:$0xff] %v947
        %998 = vst [vmem:[#allocation5 + $0x30] sm:$0xff] %v948
        %999 = vst [vmem:[#allocation5 + $0x38] sm:$0xff] %v949
        %1000 = vst [vmem:[#allocation5 + $0x40] sm:$0xff] %v950
        %1001 = vst [vmem:[#allocation5 + $0x48] sm:$0xff] %v951
        %1002 = vst [vmem:[#allocation5 + $0x50] sm:$0xff] %v952
        %1003 = vst [vmem:[#allocation5 + $0x58] sm:$0xff] %v953
        %1004 = vst [vmem:[#allocation5 + $0x60] sm:$0xff] %v954
        %1005 = vst [vmem:[#allocation5 + $0x68] sm:$0xff] %v955
        %1006 = vst [vmem:[#allocation5 + $0x70] sm:$0xff] %v956
        %1007 = vst [vmem:[#allocation5 + $0x78] sm:$0xff] %v957
        %1008 = vst [vmem:[#allocation5 + $0x80] sm:$0xff] %v958
        %1009 = vst [vmem:[#allocation5 + $0x88] sm:$0xff] %v959
        %1010 = vst [vmem:[#allocation5 + $0x90] sm:$0xff] %v960
        %1011 = vst [vmem:[#allocation5 + $0x98] sm:$0xff] %v961
        %1012 = vst [vmem:[#allocation5 + $0xa0] sm:$0xff] %v962
        %1013 = vst [vmem:[#allocation5 + $0xa8] sm:$0xff] %v963
        %1014 = vst [vmem:[#allocation5 + $0xb0] sm:$0xff] %v964
        %1015 = vst [vmem:[#allocation5 + $0xb8] sm:$0xff] %v965
        %1016 = vst [vmem:[#allocation5 + $0xc0] sm:$0xff] %v966
        %1017 = vst [vmem:[#allocation5 + $0xc8] sm:$0xff] %v967
        %1018 = vst [vmem:[#allocation5 + $0xd0] sm:$0xff] %v968
        %1019 = vst [vmem:[#allocation5 + $0xd8] sm:$0xff] %v969
        %1020 = vst [vmem:[#allocation5 + $0xe0] sm:$0xff] %v970
        %1021 = vst [vmem:[#allocation5 + $0xe8] sm:$0xff] %v971
        %1022 = vst [vmem:[#allocation5 + $0xf0] sm:$0xff] %v972
        %1023 = vst [vmem:[#allocation5 + $0xf8] sm:$0xff] %v973
        %1024 = vst [vmem:[#allocation5 + $0x100] sm:$0xff] %v974
        %1025 = vst [vmem:[#allocation5 + $0x108] sm:$0xff] %v975
        %1026 = vst [vmem:[#allocation5 + $0x110] sm:$0xff] %v976
        %1027 = vst [vmem:[#allocation5 + $0x118] sm:$0xff] %v977
        %1028 = vst [vmem:[#allocation5 + $0x120] sm:$0xff] %v978
        %1029 = vst [vmem:[#allocation5 + $0x128] sm:$0xff] %v979
        %1030 = vst [vmem:[#allocation5 + $0x130] sm:$0xff] %v980
        %1031 = vst [vmem:[#allocation5 + $0x138] sm:$0xff] %v981
        %1032 = vst [vmem:[#allocation5 + $0x140] sm:$0xff] %v982
        %1033 = vst [vmem:[#allocation5 + $0x148] sm:$0xff] %v983
        %1034 = vst [vmem:[#allocation5 + $0x150] sm:$0xff] %v984
        %1035 = vst [vmem:[#allocation5 + $0x158] sm:$0xff] %v985
        %1036 = vst [vmem:[#allocation5 + $0x160] sm:$0xff] %v986
        %1037 = vst [vmem:[#allocation5 + $0x168] sm:$0xff] %v987
        %1038 = vst [vmem:[#allocation5 + $0x170] sm:$0xff] %v988
        %1039 = vst [vmem:[#allocation5 + $0x178] sm:$0xff] %v989
        %1040 = vst [vmem:[#allocation5 + $0x180] sm:$0xff] %v990
        %1041 = vst [vmem:[#allocation5 + $0x188] sm:$0xff] %v991
        %v1042 = vld [vmem:[#allocation5] sm:$0xff]
        %v1043 = vld [vmem:[#allocation5 + $0x8] sm:$0xff]
        %v1044 = vld [vmem:[#allocation2] sm:$0xff]
        %v1045 = vld [vmem:[#allocation2 + $0x10] sm:$0xff]
        %v1046 = vmul.f32 %v1042, %v1044
        %v1047 = vmul.f32 %v1043, %v1045
        %v1048 = vpack.c.bf16 %v1047, %v1046
        %v1050 = vunpack.c.l.b16 %v1048
        %v1051 = vunpack.c.h.b16 %v1048
        %v1052 = vpack.c.b16 %v1050, %v1050
        %v1053 = vpack.c.b16 %v1051, %v1051
        %1056 = vst [vmem:[#allocation4] sm:$0xf] %v1052
        %1057 = vst [vmem:[#allocation4 + $0x4] sm:$0xf] %v1053
        %v1058 = vld [vmem:[#allocation5 + $0x10] sm:$0xff]
        %v1059 = vld [vmem:[#allocation5 + $0x18] sm:$0xff]
        %v1060 = vld [vmem:[#allocation2] sm:$0xff]
        %v1061 = vld [vmem:[#allocation2 + $0x8] sm:$0xff]
        %v1062 = vld [vmem:[#allocation2 + $0x10] sm:$0xff]
        %v1063 = vld [vmem:[#allocation2 + $0x18] sm:$0xff]
        %1068 = vrot.lane.b32.xlu0 %v1060, 127
        %v1069 = vpop.permute.xlu0 %1068
        %1070 = vrot.lane.b32.xlu0 %v1061, 127
        %v1071 = vpop.permute.xlu0 %1070
        %1072 = vrot.lane.b32.xlu0 %v1062, 127
        %v1073 = vpop.permute.xlu0 %1072
        %1074 = vrot.lane.b32.xlu0 %v1063, 127
        %v1075 = vpop.permute.xlu0 %1074
        %vm1076 = vcmask 1039360
        %v1077 = vsel %vm1076, %v1069, %v1071
        %v1078 = vsel %vm1076, %v1073, %v1075
        %v1081 = vmul.f32 %v1058, %v1077
        %v1082 = vmul.f32 %v1059, %v1078
        %v1083 = vpack.c.bf16 %v1082, %v1081
        %v1085 = vunpack.c.l.b16 %v1083
        %v1086 = vunpack.c.h.b16 %v1083
        %v1087 = vpack.c.b16 %v1085, %v1085
        %v1088 = vpack.c.b16 %v1086, %v1086
        %1091 = vst [vmem:[#allocation4 + $0x8] sm:$0xf] %v1087
        %1092 = vst [vmem:[#allocation4 + $0xc] sm:$0xf] %v1088
        %v1093 = vld [vmem:[#allocation5 + $0x20] sm:$0xff]
        %v1094 = vld [vmem:[#allocation5 + $0x28] sm:$0xff]
        %v1095 = vld [vmem:[#allocation2] sm:$0xff]
        %v1096 = vld [vmem:[#allocation2 + $0x8] sm:$0xff]
        %v1097 = vld [vmem:[#allocation2 + $0x10] sm:$0xff]
        %v1098 = vld [vmem:[#allocation2 + $0x18] sm:$0xff]
        %1103 = vrot.lane.b32.xlu0 %v1095, 126
        %v1104 = vpop.permute.xlu0 %1103
        %1105 = vrot.lane.b32.xlu0 %v1096, 126
        %v1106 = vpop.permute.xlu0 %1105
        %1107 = vrot.lane.b32.xlu0 %v1097, 126
        %v1108 = vpop.permute.xlu0 %1107
        %1109 = vrot.lane.b32.xlu0 %v1098, 126
        %v1110 = vpop.permute.xlu0 %1109
        %vm1111 = vcmask 1031168
        %v1112 = vsel %vm1111, %v1104, %v1106
        %v1113 = vsel %vm1111, %v1108, %v1110
        %v1116 = vmul.f32 %v1093, %v1112
        %v1117 = vmul.f32 %v1094, %v1113
        %v1118 = vpack.c.bf16 %v1117, %v1116
        %v1120 = vunpack.c.l.b16 %v1118
        %v1121 = vunpack.c.h.b16 %v1118
        %v1122 = vpack.c.b16 %v1120, %v1120
        %v1123 = vpack.c.b16 %v1121, %v1121
        %1126 = vst [vmem:[#allocation4 + $0x10] sm:$0xf] %v1122
        %1127 = vst [vmem:[#allocation4 + $0x14] sm:$0xf] %v1123
        %v1128 = vld [vmem:[#allocation5 + $0x30] sm:$0xff]
        %v1129 = vld [vmem:[#allocation5 + $0x38] sm:$0xff]
        %v1130 = vld [vmem:[#allocation2] sm:$0xff]
        %v1131 = vld [vmem:[#allocation2 + $0x8] sm:$0xff]
        %v1132 = vld [vmem:[#allocation2 + $0x10] sm:$0xff]
        %v1133 = vld [vmem:[#allocation2 + $0x18] sm:$0xff]
        %1138 = vrot.lane.b32.xlu0 %v1130, 125
        %v1139 = vpop.permute.xlu0 %1138
        %1140 = vrot.lane.b32.xlu0 %v1131, 125
        %v1141 = vpop.permute.xlu0 %1140
        %1142 = vrot.lane.b32.xlu0 %v1132, 125
        %v1143 = vpop.permute.xlu0 %1142
        %1144 = vrot.lane.b32.xlu0 %v1133, 125
        %v1145 = vpop.permute.xlu0 %1144
        %vm1146 = vcmask 1022976
        %v1147 = vsel %vm1146, %v1139, %v1141
        %v1148 = vsel %vm1146, %v1143, %v1145
        %v1151 = vmul.f32 %v1128, %v1147
        %v1152 = vmul.f32 %v1129, %v1148
        %v1153 = vpack.c.bf16 %v1152, %v1151
        %v1155 = vunpack.c.l.b16 %v1153
        %v1156 = vunpack.c.h.b16 %v1153
        %v1157 = vpack.c.b16 %v1155, %v1155
        %v1158 = vpack.c.b16 %v1156, %v1156
        %1161 = vst [vmem:[#allocation4 + $0x18] sm:$0xf] %v1157
        %1162 = vst [vmem:[#allocation4 + $0x1c] sm:$0xf] %v1158
        %v1163 = vld [vmem:[#allocation5 + $0x40] sm:$0xff]
        %v1164 = vld [vmem:[#allocation5 + $0x48] sm:$0xff]
        %v1165 = vld [vmem:[#allocation2] sm:$0xff]
        %v1166 = vld [vmem:[#allocation2 + $0x8] sm:$0xff]
        %v1167 = vld [vmem:[#allocation2 + $0x10] sm:$0xff]
        %v1168 = vld [vmem:[#allocation2 + $0x18] sm:$0xff]
        %1173 = vrot.lane.b32.xlu0 %v1165, 124
        %v1174 = vpop.permute.xlu0 %1173
        %1175 = vrot.lane.b32.xlu0 %v1166, 124
        %v1176 = vpop.permute.xlu0 %1175
        %1177 = vrot.lane.b32.xlu0 %v1167, 124
        %v1178 = vpop.permute.xlu0 %1177
        %1179 = vrot.lane.b32.xlu0 %v1168, 124
        %v1180 = vpop.permute.xlu0 %1179
        %vm1181 = vcmask 1014784
        %v1182 = vsel %vm1181, %v1174, %v1176
        %v1183 = vsel %vm1181, %v1178, %v1180
        %v1186 = vmul.f32 %v1163, %v1182
        %v1187 = vmul.f32 %v1164, %v1183
        %v1188 = vpack.c.bf16 %v1187, %v1186
        %v1190 = vunpack.c.l.b16 %v1188
        %v1191 = vunpack.c.h.b16 %v1188
        %v1192 = vpack.c.b16 %v1190, %v1190
        %v1193 = vpack.c.b16 %v1191, %v1191
        %1196 = vst [vmem:[#allocation4 + $0x20] sm:$0xf] %v1192
        %1197 = vst [vmem:[#allocation4 + $0x24] sm:$0xf] %v1193
        %v1198 = vld [vmem:[#allocation5 + $0x50] sm:$0xff]
        %v1199 = vld [vmem:[#allocation5 + $0x58] sm:$0xff]
        %v1200 = vld [vmem:[#allocation2] sm:$0xff]
        %v1201 = vld [vmem:[#allocation2 + $0x8] sm:$0xff]
        %v1202 = vld [vmem:[#allocation2 + $0x10] sm:$0xff]
        %v1203 = vld [vmem:[#allocation2 + $0x18] sm:$0xff]
        %1208 = vrot.lane.b32.xlu0 %v1200, 120
        %v1209 = vpop.permute.xlu0 %1208
        %1210 = vrot.lane.b32.xlu0 %v1201, 120
        %v1211 = vpop.permute.xlu0 %1210
        %1212 = vrot.lane.b32.xlu0 %v1202, 120
        %v1213 = vpop.permute.xlu0 %1212
        %1214 = vrot.lane.b32.xlu0 %v1203, 120
        %v1215 = vpop.permute.xlu0 %1214
        %vm1216 = vcmask 982016
        %v1217 = vsel %vm1216, %v1209, %v1211
        %v1218 = vsel %vm1216, %v1213, %v1215
        %v1221 = vmul.f32 %v1198, %v1217
        %v1222 = vmul.f32 %v1199, %v1218
        %v1223 = vpack.c.bf16 %v1222, %v1221
        %v1225 = vunpack.c.l.b16 %v1223
        %v1226 = vunpack.c.h.b16 %v1223
        %v1227 = vpack.c.b16 %v1225, %v1225
        %v1228 = vpack.c.b16 %v1226, %v1226
        %1231 = vst [vmem:[#allocation4 + $0x28] sm:$0xf] %v1227
        %1232 = vst [vmem:[#allocation4 + $0x2c] sm:$0xf] %v1228
        %v1233 = vld [vmem:[#allocation5 + $0x60] sm:$0xff]
        %v1234 = vld [vmem:[#allocation5 + $0x68] sm:$0xff]
        %v1235 = vld [vmem:[#allocation2] sm:$0xff]
        %v1236 = vld [vmem:[#allocation2 + $0x8] sm:$0xff]
        %v1237 = vld [vmem:[#allocation2 + $0x10] sm:$0xff]
        %v1238 = vld [vmem:[#allocation2 + $0x18] sm:$0xff]
        %1243 = vrot.lane.b32.xlu0 %v1235, 119
        %v1244 = vpop.permute.xlu0 %1243
        %1245 = vrot.lane.b32.xlu0 %v1236, 119
        %v1246 = vpop.permute.xlu0 %1245
        %1247 = vrot.lane.b32.xlu0 %v1237, 119
        %v1248 = vpop.permute.xlu0 %1247
        %1249 = vrot.lane.b32.xlu0 %v1238, 119
        %v1250 = vpop.permute.xlu0 %1249
        %vm1251 = vcmask 973824
        %v1252 = vsel %vm1251, %v1244, %v1246
        %v1253 = vsel %vm1251, %v1248, %v1250
        %v1256 = vmul.f32 %v1233, %v1252
        %v1257 = vmul.f32 %v1234, %v1253
        %v1258 = vpack.c.bf16 %v1257, %v1256
        %v1260 = vunpack.c.l.b16 %v1258
        %v1261 = vunpack.c.h.b16 %v1258
        %v1262 = vpack.c.b16 %v1260, %v1260
        %v1263 = vpack.c.b16 %v1261, %v1261
        %1266 = vst [vmem:[#allocation4 + $0x30] sm:$0xf] %v1262
        %1267 = vst [vmem:[#allocation4 + $0x34] sm:$0xf] %v1263
        %v1268 = vld [vmem:[#allocation5 + $0x70] sm:$0xff]
        %v1269 = vld [vmem:[#allocation5 + $0x78] sm:$0xff]
        %v1270 = vld [vmem:[#allocation2] sm:$0xff]
        %v1271 = vld [vmem:[#allocation2 + $0x8] sm:$0xff]
        %v1272 = vld [vmem:[#allocation2 + $0x10] sm:$0xff]
        %v1273 = vld [vmem:[#allocation2 + $0x18] sm:$0xff]
        %1278 = vrot.lane.b32.xlu0 %v1270, 118
        %v1279 = vpop.permute.xlu0 %1278
        %1280 = vrot.lane.b32.xlu0 %v1271, 118
        %v1281 = vpop.permute.xlu0 %1280
        %1282 = vrot.lane.b32.xlu0 %v1272, 118
        %v1283 = vpop.permute.xlu0 %1282
        %1284 = vrot.lane.b32.xlu0 %v1273, 118
        %v1285 = vpop.permute.xlu0 %1284
        %vm1286 = vcmask 965632
        %v1287 = vsel %vm1286, %v1279, %v1281
        %v1288 = vsel %vm1286, %v1283, %v1285
        %v1291 = vmul.f32 %v1268, %v1287
        %v1292 = vmul.f32 %v1269, %v1288
        %v1293 = vpack.c.bf16 %v1292, %v1291
        %v1295 = vunpack.c.l.b16 %v1293
        %v1296 = vunpack.c.h.b16 %v1293
        %v1297 = vpack.c.b16 %v1295, %v1295
        %v1298 = vpack.c.b16 %v1296, %v1296
        %1301 = vst [vmem:[#allocation4 + $0x38] sm:$0xf] %v1297
        %1302 = vst [vmem:[#allocation4 + $0x3c] sm:$0xf] %v1298
        %v1303 = vld [vmem:[#allocation5 + $0x80] sm:$0xff]
        %v1304 = vld [vmem:[#allocation5 + $0x88] sm:$0xff]
        %v1305 = vld [vmem:[#allocation2] sm:$0xff]
        %v1306 = vld [vmem:[#allocation2 + $0x8] sm:$0xff]
        %v1307 = vld [vmem:[#allocation2 + $0x10] sm:$0xff]
        %v1308 = vld [vmem:[#allocation2 + $0x18] sm:$0xff]
        %1313 = vrot.lane.b32.xlu0 %v1305, 117
        %v1314 = vpop.permute.xlu0 %1313
        %1315 = vrot.lane.b32.xlu0 %v1306, 117
        %v1316 = vpop.permute.xlu0 %1315
        %1317 = vrot.lane.b32.xlu0 %v1307, 117
        %v1318 = vpop.permute.xlu0 %1317
        %1319 = vrot.lane.b32.xlu0 %v1308, 117
        %v1320 = vpop.permute.xlu0 %1319
        %vm1321 = vcmask 957440
        %v1322 = vsel %vm1321, %v1314, %v1316
        %v1323 = vsel %vm1321, %v1318, %v1320
        %v1326 = vmul.f32 %v1303, %v1322
        %v1327 = vmul.f32 %v1304, %v1323
        %v1328 = vpack.c.bf16 %v1327, %v1326
        %v1330 = vunpack.c.l.b16 %v1328
        %v1331 = vunpack.c.h.b16 %v1328
        %v1332 = vpack.c.b16 %v1330, %v1330
        %v1333 = vpack.c.b16 %v1331, %v1331
        %1336 = vst [vmem:[#allocation4 + $0x40] sm:$0xf] %v1332
        %1337 = vst [vmem:[#allocation4 + $0x44] sm:$0xf] %v1333
        %v1338 = vld [vmem:[#allocation5 + $0x90] sm:$0xff]
        %v1339 = vld [vmem:[#allocation5 + $0x98] sm:$0xff]
        %v1340 = vld [vmem:[#allocation2] sm:$0xff]
        %v1341 = vld [vmem:[#allocation2 + $0x8] sm:$0xff]
        %v1342 = vld [vmem:[#allocation2 + $0x10] sm:$0xff]
        %v1343 = vld [vmem:[#allocation2 + $0x18] sm:$0xff]
        %1348 = vrot.lane.b32.xlu0 %v1340, 116
        %v1349 = vpop.permute.xlu0 %1348
        %1350 = vrot.lane.b32.xlu0 %v1341, 116
        %v1351 = vpop.permute.xlu0 %1350
        %1352 = vrot.lane.b32.xlu0 %v1342, 116
        %v1353 = vpop.permute.xlu0 %1352
        %1354 = vrot.lane.b32.xlu0 %v1343, 116
        %v1355 = vpop.permute.xlu0 %1354
        %vm1356 = vcmask 949248
        %v1357 = vsel %vm1356, %v1349, %v1351
        %v1358 = vsel %vm1356, %v1353, %v1355
        %v1361 = vmul.f32 %v1338, %v1357
        %v1362 = vmul.f32 %v1339, %v1358
        %v1363 = vpack.c.bf16 %v1362, %v1361
        %v1365 = vunpack.c.l.b16 %v1363
        %v1366 = vunpack.c.h.b16 %v1363
        %v1367 = vpack.c.b16 %v1365, %v1365
        %v1368 = vpack.c.b16 %v1366, %v1366
        %1371 = vst [vmem:[#allocation4 + $0x48] sm:$0xf] %v1367
        %1372 = vst [vmem:[#allocation4 + $0x4c] sm:$0xf] %v1368
        %v1373 = vld [vmem:[#allocation5 + $0xa0] sm:$0xff]
        %v1374 = vld [vmem:[#allocation5 + $0xa8] sm:$0xff]
        %v1375 = vld [vmem:[#allocation2] sm:$0xff]
        %v1376 = vld [vmem:[#allocation2 + $0x8] sm:$0xff]
        %v1377 = vld [vmem:[#allocation2 + $0x10] sm:$0xff]
        %v1378 = vld [vmem:[#allocation2 + $0x18] sm:$0xff]
        %1383 = vrot.lane.b32.xlu0 %v1375, 112
        %v1384 = vpop.permute.xlu0 %1383
        %1385 = vrot.lane.b32.xlu0 %v1376, 112
        %v1386 = vpop.permute.xlu0 %1385
        %1387 = vrot.lane.b32.xlu0 %v1377, 112
        %v1388 = vpop.permute.xlu0 %1387
        %1389 = vrot.lane.b32.xlu0 %v1378, 112
        %v1390 = vpop.permute.xlu0 %1389
        %vm1391 = vcmask 916480
        %v1392 = vsel %vm1391, %v1384, %v1386
        %v1393 = vsel %vm1391, %v1388, %v1390
        %v1396 = vmul.f32 %v1373, %v1392
        %v1397 = vmul.f32 %v1374, %v1393
        %v1398 = vpack.c.bf16 %v1397, %v1396
        %v1400 = vunpack.c.l.b16 %v1398
        %v1401 = vunpack.c.h.b16 %v1398
        %v1402 = vpack.c.b16 %v1400, %v1400
        %v1403 = vpack.c.b16 %v1401, %v1401
        %1406 = vst [vmem:[#allocation4 + $0x50] sm:$0xf] %v1402
        %1407 = vst [vmem:[#allocation4 + $0x54] sm:$0xf] %v1403
        %v1408 = vld [vmem:[#allocation5 + $0xb0] sm:$0xff]
        %v1409 = vld [vmem:[#allocation5 + $0xb8] sm:$0xff]
        %v1410 = vld [vmem:[#allocation2] sm:$0xff]
        %v1411 = vld [vmem:[#allocation2 + $0x8] sm:$0xff]
        %v1412 = vld [vmem:[#allocation2 + $0x10] sm:$0xff]
        %v1413 = vld [vmem:[#allocation2 + $0x18] sm:$0xff]
        %1418 = vrot.lane.b32.xlu0 %v1410, 111
        %v1419 = vpop.permute.xlu0 %1418
        %1420 = vrot.lane.b32.xlu0 %v1411, 111
        %v1421 = vpop.permute.xlu0 %1420
        %1422 = vrot.lane.b32.xlu0 %v1412, 111
        %v1423 = vpop.permute.xlu0 %1422
        %1424 = vrot.lane.b32.xlu0 %v1413, 111
        %v1425 = vpop.permute.xlu0 %1424
        %vm1426 = vcmask 908288
        %v1427 = vsel %vm1426, %v1419, %v1421
        %v1428 = vsel %vm1426, %v1423, %v1425
        %v1431 = vmul.f32 %v1408, %v1427
        %v1432 = vmul.f32 %v1409, %v1428
        %v1433 = vpack.c.bf16 %v1432, %v1431
        %v1435 = vunpack.c.l.b16 %v1433
        %v1436 = vunpack.c.h.b16 %v1433
        %v1437 = vpack.c.b16 %v1435, %v1435
        %v1438 = vpack.c.b16 %v1436, %v1436
        %1441 = vst [vmem:[#allocation4 + $0x58] sm:$0xf] %v1437
        %1442 = vst [vmem:[#allocation4 + $0x5c] sm:$0xf] %v1438
        %v1443 = vld [vmem:[#allocation5 + $0xc0] sm:$0xff]
        %v1444 = vld [vmem:[#allocation5 + $0xc8] sm:$0xff]
        %v1445 = vld [vmem:[#allocation2] sm:$0xff]
        %v1446 = vld [vmem:[#allocation2 + $0x8] sm:$0xff]
        %v1447 = vld [vmem:[#allocation2 + $0x10] sm:$0xff]
        %v1448 = vld [vmem:[#allocation2 + $0x18] sm:$0xff]
        %1453 = vrot.lane.b32.xlu0 %v1445, 110
        %v1454 = vpop.permute.xlu0 %1453
        %1455 = vrot.lane.b32.xlu0 %v1446, 110
        %v1456 = vpop.permute.xlu0 %1455
        %1457 = vrot.lane.b32.xlu0 %v1447, 110
        %v1458 = vpop.permute.xlu0 %1457
        %1459 = vrot.lane.b32.xlu0 %v1448, 110
        %v1460 = vpop.permute.xlu0 %1459
        %vm1461 = vcmask 900096
        %v1462 = vsel %vm1461, %v1454, %v1456
        %v1463 = vsel %vm1461, %v1458, %v1460
        %v1466 = vmul.f32 %v1443, %v1462
        %v1467 = vmul.f32 %v1444, %v1463
        %v1468 = vpack.c.bf16 %v1467, %v1466
        %v1470 = vunpack.c.l.b16 %v1468
        %v1471 = vunpack.c.h.b16 %v1468
        %v1472 = vpack.c.b16 %v1470, %v1470
        %v1473 = vpack.c.b16 %v1471, %v1471
        %1476 = vst [vmem:[#allocation4 + $0x60] sm:$0xf] %v1472
        %1477 = vst [vmem:[#allocation4 + $0x64] sm:$0xf] %v1473
        %v1478 = vld [vmem:[#allocation5 + $0xd0] sm:$0xff]
        %v1479 = vld [vmem:[#allocation5 + $0xd8] sm:$0xff]
        %v1480 = vld [vmem:[#allocation2] sm:$0xff]
        %v1481 = vld [vmem:[#allocation2 + $0x8] sm:$0xff]
        %v1482 = vld [vmem:[#allocation2 + $0x10] sm:$0xff]
        %v1483 = vld [vmem:[#allocation2 + $0x18] sm:$0xff]
        %1488 = vrot.lane.b32.xlu0 %v1480, 109
        %v1489 = vpop.permute.xlu0 %1488
        %1490 = vrot.lane.b32.xlu0 %v1481, 109
        %v1491 = vpop.permute.xlu0 %1490
        %1492 = vrot.lane.b32.xlu0 %v1482, 109
        %v1493 = vpop.permute.xlu0 %1492
        %1494 = vrot.lane.b32.xlu0 %v1483, 109
        %v1495 = vpop.permute.xlu0 %1494
        %vm1496 = vcmask 891904
        %v1497 = vsel %vm1496, %v1489, %v1491
        %v1498 = vsel %vm1496, %v1493, %v1495
        %v1501 = vmul.f32 %v1478, %v1497
        %v1502 = vmul.f32 %v1479, %v1498
        %v1503 = vpack.c.bf16 %v1502, %v1501
        %v1505 = vunpack.c.l.b16 %v1503
        %v1506 = vunpack.c.h.b16 %v1503
        %v1507 = vpack.c.b16 %v1505, %v1505
        %v1508 = vpack.c.b16 %v1506, %v1506
        %1511 = vst [vmem:[#allocation4 + $0x68] sm:$0xf] %v1507
        %1512 = vst [vmem:[#allocation4 + $0x6c] sm:$0xf] %v1508
        %v1513 = vld [vmem:[#allocation5 + $0xe0] sm:$0xff]
        %v1514 = vld [vmem:[#allocation5 + $0xe8] sm:$0xff]
        %v1515 = vld [vmem:[#allocation2] sm:$0xff]
        %v1516 = vld [vmem:[#allocation2 + $0x8] sm:$0xff]
        %v1517 = vld [vmem:[#allocation2 + $0x10] sm:$0xff]
        %v1518 = vld [vmem:[#allocation2 + $0x18] sm:$0xff]
        %1523 = vrot.lane.b32.xlu0 %v1515, 108
        %v1524 = vpop.permute.xlu0 %1523
        %1525 = vrot.lane.b32.xlu0 %v1516, 108
        %v1526 = vpop.permute.xlu0 %1525
        %1527 = vrot.lane.b32.xlu0 %v1517, 108
        %v1528 = vpop.permute.xlu0 %1527
        %1529 = vrot.lane.b32.xlu0 %v1518, 108
        %v1530 = vpop.permute.xlu0 %1529
        %vm1531 = vcmask 883712
        %v1532 = vsel %vm1531, %v1524, %v1526
        %v1533 = vsel %vm1531, %v1528, %v1530
        %v1536 = vmul.f32 %v1513, %v1532
        %v1537 = vmul.f32 %v1514, %v1533
        %v1538 = vpack.c.bf16 %v1537, %v1536
        %v1540 = vunpack.c.l.b16 %v1538
        %v1541 = vunpack.c.h.b16 %v1538
        %v1542 = vpack.c.b16 %v1540, %v1540
        %v1543 = vpack.c.b16 %v1541, %v1541
        %1546 = vst [vmem:[#allocation4 + $0x70] sm:$0xf] %v1542
        %1547 = vst [vmem:[#allocation4 + $0x74] sm:$0xf] %v1543
        %v1548 = vld [vmem:[#allocation5 + $0xf0] sm:$0xff]
        %v1549 = vld [vmem:[#allocation5 + $0xf8] sm:$0xff]
        %v1550 = vld [vmem:[#allocation2] sm:$0xff]
        %v1551 = vld [vmem:[#allocation2 + $0x8] sm:$0xff]
        %v1552 = vld [vmem:[#allocation2 + $0x10] sm:$0xff]
        %v1553 = vld [vmem:[#allocation2 + $0x18] sm:$0xff]
        %1558 = vrot.lane.b32.xlu0 %v1550, 104
        %v1559 = vpop.permute.xlu0 %1558
        %1560 = vrot.lane.b32.xlu0 %v1551, 104
        %v1561 = vpop.permute.xlu0 %1560
        %1562 = vrot.lane.b32.xlu0 %v1552, 104
        %v1563 = vpop.permute.xlu0 %1562
        %1564 = vrot.lane.b32.xlu0 %v1553, 104
        %v1565 = vpop.permute.xlu0 %1564
        %vm1566 = vcmask 850944
        %v1567 = vsel %vm1566, %v1559, %v1561
        %v1568 = vsel %vm1566, %v1563, %v1565
        %v1571 = vmul.f32 %v1548, %v1567
        %v1572 = vmul.f32 %v1549, %v1568
        %v1573 = vpack.c.bf16 %v1572, %v1571
        %v1575 = vunpack.c.l.b16 %v1573
        %v1576 = vunpack.c.h.b16 %v1573
        %v1577 = vpack.c.b16 %v1575, %v1575
        %v1578 = vpack.c.b16 %v1576, %v1576
        %1581 = vst [vmem:[#allocation4 + $0x78] sm:$0xf] %v1577
        %1582 = vst [vmem:[#allocation4 + $0x7c] sm:$0xf] %v1578
        %v1583 = vld [vmem:[#allocation5 + $0x100] sm:$0xff]
        %v1584 = vld [vmem:[#allocation5 + $0x108] sm:$0xff]
        %v1585 = vld [vmem:[#allocation2] sm:$0xff]
        %v1586 = vld [vmem:[#allocation2 + $0x8] sm:$0xff]
        %v1587 = vld [vmem:[#allocation2 + $0x10] sm:$0xff]
        %v1588 = vld [vmem:[#allocation2 + $0x18] sm:$0xff]
        %1593 = vrot.lane.b32.xlu0 %v1585, 103
        %v1594 = vpop.permute.xlu0 %1593
        %1595 = vrot.lane.b32.xlu0 %v1586, 103
        %v1596 = vpop.permute.xlu0 %1595
        %1597 = vrot.lane.b32.xlu0 %v1587, 103
        %v1598 = vpop.permute.xlu0 %1597
        %1599 = vrot.lane.b32.xlu0 %v1588, 103
        %v1600 = vpop.permute.xlu0 %1599
        %vm1601 = vcmask 842752
        %v1602 = vsel %vm1601, %v1594, %v1596
        %v1603 = vsel %vm1601, %v1598, %v1600
        %v1606 = vmul.f32 %v1583, %v1602
        %v1607 = vmul.f32 %v1584, %v1603
        %v1608 = vpack.c.bf16 %v1607, %v1606
        %v1610 = vunpack.c.l.b16 %v1608
        %v1611 = vunpack.c.h.b16 %v1608
        %v1612 = vpack.c.b16 %v1610, %v1610
        %v1613 = vpack.c.b16 %v1611, %v1611
        %1616 = vst [vmem:[#allocation4 + $0x80] sm:$0xf] %v1612
        %1617 = vst [vmem:[#allocation4 + $0x84] sm:$0xf] %v1613
        %v1618 = vld [vmem:[#allocation5 + $0x110] sm:$0xff]
        %v1619 = vld [vmem:[#allocation5 + $0x118] sm:$0xff]
        %v1620 = vld [vmem:[#allocation2] sm:$0xff]
        %v1621 = vld [vmem:[#allocation2 + $0x8] sm:$0xff]
        %v1622 = vld [vmem:[#allocation2 + $0x10] sm:$0xff]
        %v1623 = vld [vmem:[#allocation2 + $0x18] sm:$0xff]
        %1628 = vrot.lane.b32.xlu0 %v1620, 102
        %v1629 = vpop.permute.xlu0 %1628
        %1630 = vrot.lane.b32.xlu0 %v1621, 102
        %v1631 = vpop.permute.xlu0 %1630
        %1632 = vrot.lane.b32.xlu0 %v1622, 102
        %v1633 = vpop.permute.xlu0 %1632
        %1634 = vrot.lane.b32.xlu0 %v1623, 102
        %v1635 = vpop.permute.xlu0 %1634
        %vm1636 = vcmask 834560
        %v1637 = vsel %vm1636, %v1629, %v1631
        %v1638 = vsel %vm1636, %v1633, %v1635
        %v1641 = vmul.f32 %v1618, %v1637
        %v1642 = vmul.f32 %v1619, %v1638
        %v1643 = vpack.c.bf16 %v1642, %v1641
        %v1645 = vunpack.c.l.b16 %v1643
        %v1646 = vunpack.c.h.b16 %v1643
        %v1647 = vpack.c.b16 %v1645, %v1645
        %v1648 = vpack.c.b16 %v1646, %v1646
        %1651 = vst [vmem:[#allocation4 + $0x88] sm:$0xf] %v1647
        %1652 = vst [vmem:[#allocation4 + $0x8c] sm:$0xf] %v1648
        %v1653 = vld [vmem:[#allocation5 + $0x120] sm:$0xff]
        %v1654 = vld [vmem:[#allocation5 + $0x128] sm:$0xff]
        %v1655 = vld [vmem:[#allocation2] sm:$0xff]
        %v1656 = vld [vmem:[#allocation2 + $0x8] sm:$0xff]
        %v1657 = vld [vmem:[#allocation2 + $0x10] sm:$0xff]
        %v1658 = vld [vmem:[#allocation2 + $0x18] sm:$0xff]
        %1663 = vrot.lane.b32.xlu0 %v1655, 101
        %v1664 = vpop.permute.xlu0 %1663
        %1665 = vrot.lane.b32.xlu0 %v1656, 101
        %v1666 = vpop.permute.xlu0 %1665
        %1667 = vrot.lane.b32.xlu0 %v1657, 101
        %v1668 = vpop.permute.xlu0 %1667
        %1669 = vrot.lane.b32.xlu0 %v1658, 101
        %v1670 = vpop.permute.xlu0 %1669
        %vm1671 = vcmask 826368
        %v1672 = vsel %vm1671, %v1664, %v1666
        %v1673 = vsel %vm1671, %v1668, %v1670
        %v1676 = vmul.f32 %v1653, %v1672
        %v1677 = vmul.f32 %v1654, %v1673
        %v1678 = vpack.c.bf16 %v1677, %v1676
        %v1680 = vunpack.c.l.b16 %v1678
        %v1681 = vunpack.c.h.b16 %v1678
        %v1682 = vpack.c.b16 %v1680, %v1680
        %v1683 = vpack.c.b16 %v1681, %v1681
        %1686 = vst [vmem:[#allocation4 + $0x90] sm:$0xf] %v1682
        %1687 = vst [vmem:[#allocation4 + $0x94] sm:$0xf] %v1683
        %v1688 = vld [vmem:[#allocation5 + $0x130] sm:$0xff]
        %v1689 = vld [vmem:[#allocation5 + $0x138] sm:$0xff]
        %v1690 = vld [vmem:[#allocation2] sm:$0xff]
        %v1691 = vld [vmem:[#allocation2 + $0x8] sm:$0xff]
        %v1692 = vld [vmem:[#allocation2 + $0x10] sm:$0xff]
        %v1693 = vld [vmem:[#allocation2 + $0x18] sm:$0xff]
        %1698 = vrot.lane.b32.xlu0 %v1690, 100
        %v1699 = vpop.permute.xlu0 %1698
        %1700 = vrot.lane.b32.xlu0 %v1691, 100
        %v1701 = vpop.permute.xlu0 %1700
        %1702 = vrot.lane.b32.xlu0 %v1692, 100
        %v1703 = vpop.permute.xlu0 %1702
        %1704 = vrot.lane.b32.xlu0 %v1693, 100
        %v1705 = vpop.permute.xlu0 %1704
        %vm1706 = vcmask 818176
        %v1707 = vsel %vm1706, %v1699, %v1701
        %v1708 = vsel %vm1706, %v1703, %v1705
        %v1711 = vmul.f32 %v1688, %v1707
        %v1712 = vmul.f32 %v1689, %v1708
        %v1713 = vpack.c.bf16 %v1712, %v1711
        %v1715 = vunpack.c.l.b16 %v1713
        %v1716 = vunpack.c.h.b16 %v1713
        %v1717 = vpack.c.b16 %v1715, %v1715
        %v1718 = vpack.c.b16 %v1716, %v1716
        %1721 = vst [vmem:[#allocation4 + $0x98] sm:$0xf] %v1717
        %1722 = vst [vmem:[#allocation4 + $0x9c] sm:$0xf] %v1718
        %v1723 = vld [vmem:[#allocation5 + $0x140] sm:$0xff]
        %v1724 = vld [vmem:[#allocation5 + $0x148] sm:$0xff]
        %v1725 = vld [vmem:[#allocation2] sm:$0xff]
        %v1726 = vld [vmem:[#allocation2 + $0x8] sm:$0xff]
        %v1727 = vld [vmem:[#allocation2 + $0x10] sm:$0xff]
        %v1728 = vld [vmem:[#allocation2 + $0x18] sm:$0xff]
        %1733 = vrot.lane.b32.xlu0 %v1725, 96
        %v1734 = vpop.permute.xlu0 %1733
        %1735 = vrot.lane.b32.xlu0 %v1726, 96
        %v1736 = vpop.permute.xlu0 %1735
        %1737 = vrot.lane.b32.xlu0 %v1727, 96
        %v1738 = vpop.permute.xlu0 %1737
        %1739 = vrot.lane.b32.xlu0 %v1728, 96
        %v1740 = vpop.permute.xlu0 %1739
        %vm1741 = vcmask 785408
        %v1742 = vsel %vm1741, %v1734, %v1736
        %v1743 = vsel %vm1741, %v1738, %v1740
        %v1746 = vmul.f32 %v1723, %v1742
        %v1747 = vmul.f32 %v1724, %v1743
        %v1748 = vpack.c.bf16 %v1747, %v1746
        %v1750 = vunpack.c.l.b16 %v1748
        %v1751 = vunpack.c.h.b16 %v1748
        %v1752 = vpack.c.b16 %v1750, %v1750
        %v1753 = vpack.c.b16 %v1751, %v1751
        %1756 = vst [vmem:[#allocation4 + $0xa0] sm:$0xf] %v1752
        %1757 = vst [vmem:[#allocation4 + $0xa4] sm:$0xf] %v1753
        %v1758 = vld [vmem:[#allocation5 + $0x150] sm:$0xff]
        %v1759 = vld [vmem:[#allocation5 + $0x158] sm:$0xff]
        %v1760 = vld [vmem:[#allocation2] sm:$0xff]
        %v1761 = vld [vmem:[#allocation2 + $0x8] sm:$0xff]
        %v1762 = vld [vmem:[#allocation2 + $0x10] sm:$0xff]
        %v1763 = vld [vmem:[#allocation2 + $0x18] sm:$0xff]
        %1768 = vrot.lane.b32.xlu0 %v1760, 95
        %v1769 = vpop.permute.xlu0 %1768
        %1770 = vrot.lane.b32.xlu0 %v1761, 95
        %v1771 = vpop.permute.xlu0 %1770
        %1772 = vrot.lane.b32.xlu0 %v1762, 95
        %v1773 = vpop.permute.xlu0 %1772
        %1774 = vrot.lane.b32.xlu0 %v1763, 95
        %v1775 = vpop.permute.xlu0 %1774
        %vm1776 = vcmask 777216
        %v1777 = vsel %vm1776, %v1769, %v1771
        %v1778 = vsel %vm1776, %v1773, %v1775
        %v1781 = vmul.f32 %v1758, %v1777
        %v1782 = vmul.f32 %v1759, %v1778
        %v1783 = vpack.c.bf16 %v1782, %v1781
        %v1785 = vunpack.c.l.b16 %v1783
        %v1786 = vunpack.c.h.b16 %v1783
        %v1787 = vpack.c.b16 %v1785, %v1785
        %v1788 = vpack.c.b16 %v1786, %v1786
        %1791 = vst [vmem:[#allocation4 + $0xa8] sm:$0xf] %v1787
        %1792 = vst [vmem:[#allocation4 + $0xac] sm:$0xf] %v1788
        %v1793 = vld [vmem:[#allocation5 + $0x160] sm:$0xff]
        %v1794 = vld [vmem:[#allocation5 + $0x168] sm:$0xff]
        %v1795 = vld [vmem:[#allocation2] sm:$0xff]
        %v1796 = vld [vmem:[#allocation2 + $0x8] sm:$0xff]
        %v1797 = vld [vmem:[#allocation2 + $0x10] sm:$0xff]
        %v1798 = vld [vmem:[#allocation2 + $0x18] sm:$0xff]
        %1803 = vrot.lane.b32.xlu0 %v1795, 94
        %v1804 = vpop.permute.xlu0 %1803
        %1805 = vrot.lane.b32.xlu0 %v1796, 94
        %v1806 = vpop.permute.xlu0 %1805
        %1807 = vrot.lane.b32.xlu0 %v1797, 94
        %v1808 = vpop.permute.xlu0 %1807
        %1809 = vrot.lane.b32.xlu0 %v1798, 94
        %v1810 = vpop.permute.xlu0 %1809
        %vm1811 = vcmask 769024
        %v1812 = vsel %vm1811, %v1804, %v1806
        %v1813 = vsel %vm1811, %v1808, %v1810
        %v1816 = vmul.f32 %v1793, %v1812
        %v1817 = vmul.f32 %v1794, %v1813
        %v1818 = vpack.c.bf16 %v1817, %v1816
        %v1820 = vunpack.c.l.b16 %v1818
        %v1821 = vunpack.c.h.b16 %v1818
        %v1822 = vpack.c.b16 %v1820, %v1820
        %v1823 = vpack.c.b16 %v1821, %v1821
        %1826 = vst [vmem:[#allocation4 + $0xb0] sm:$0xf] %v1822
        %1827 = vst [vmem:[#allocation4 + $0xb4] sm:$0xf] %v1823
        %v1828 = vld [vmem:[#allocation5 + $0x170] sm:$0xff]
        %v1829 = vld [vmem:[#allocation5 + $0x178] sm:$0xff]
        %v1830 = vld [vmem:[#allocation2] sm:$0xff]
        %v1831 = vld [vmem:[#allocation2 + $0x8] sm:$0xff]
        %v1832 = vld [vmem:[#allocation2 + $0x10] sm:$0xff]
        %v1833 = vld [vmem:[#allocation2 + $0x18] sm:$0xff]
        %1838 = vrot.lane.b32.xlu0 %v1830, 93
        %v1839 = vpop.permute.xlu0 %1838
        %1840 = vrot.lane.b32.xlu0 %v1831, 93
        %v1841 = vpop.permute.xlu0 %1840
        %1842 = vrot.lane.b32.xlu0 %v1832, 93
        %v1843 = vpop.permute.xlu0 %1842
        %1844 = vrot.lane.b32.xlu0 %v1833, 93
        %v1845 = vpop.permute.xlu0 %1844
        %vm1846 = vcmask 760832
        %v1847 = vsel %vm1846, %v1839, %v1841
        %v1848 = vsel %vm1846, %v1843, %v1845
        %v1851 = vmul.f32 %v1828, %v1847
        %v1852 = vmul.f32 %v1829, %v1848
        %v1853 = vpack.c.bf16 %v1852, %v1851
        %v1855 = vunpack.c.l.b16 %v1853
        %v1856 = vunpack.c.h.b16 %v1853
        %v1857 = vpack.c.b16 %v1855, %v1855
        %v1858 = vpack.c.b16 %v1856, %v1856
        %1861 = vst [vmem:[#allocation4 + $0xb8] sm:$0xf] %v1857
        %1862 = vst [vmem:[#allocation4 + $0xbc] sm:$0xf] %v1858
        %v1863 = vld [vmem:[#allocation5 + $0x180] sm:$0xff]
        %v1864 = vld [vmem:[#allocation5 + $0x188] sm:$0xff]
        %v1865 = vld [vmem:[#allocation2] sm:$0xff]
        %v1866 = vld [vmem:[#allocation2 + $0x8] sm:$0xff]
        %v1867 = vld [vmem:[#allocation2 + $0x10] sm:$0xff]
        %v1868 = vld [vmem:[#allocation2 + $0x18] sm:$0xff]
        %1873 = vrot.lane.b32.xlu0 %v1865, 92
        %v1874 = vpop.permute.xlu0 %1873
        %1875 = vrot.lane.b32.xlu0 %v1866, 92
        %v1876 = vpop.permute.xlu0 %1875
        %1877 = vrot.lane.b32.xlu0 %v1867, 92
        %v1878 = vpop.permute.xlu0 %1877
        %1879 = vrot.lane.b32.xlu0 %v1868, 92
        %v1880 = vpop.permute.xlu0 %1879
        %vm1881 = vcmask 752640
        %v1882 = vsel %vm1881, %v1874, %v1876
        %v1883 = vsel %vm1881, %v1878, %v1880
        %v1886 = vmul.f32 %v1863, %v1882
        %v1887 = vmul.f32 %v1864, %v1883
        %v1888 = vpack.c.bf16 %v1887, %v1886
        %v1890 = vunpack.c.l.b16 %v1888
        %v1891 = vunpack.c.h.b16 %v1888
        %v1892 = vpack.c.b16 %v1890, %v1890
        %v1893 = vpack.c.b16 %v1891, %v1891
        %1896 = vst [vmem:[#allocation4 + $0xc0] sm:$0xf] %v1892
        %1897 = vst [vmem:[#allocation4 + $0xc4] sm:$0xf] %v1893
        %v1898 = vld [vmem:[%s2] sm:$0xff]
        %v1899 = vld [vmem:[%s2 + $0x8] sm:$0xff]
        %v1900 = vld [vmem:[%s2 + $0x10] sm:$0xff]
        %v1901 = vld [vmem:[%s2 + $0x18] sm:$0xff]
        %v1902 = vld [vmem:[%s2 + $0x20] sm:$0xff]
        %v1903 = vld [vmem:[%s2 + $0x28] sm:$0xff]
        %v1904 = vld [vmem:[%s2 + $0x30] sm:$0xff]
        %v1905 = vld [vmem:[%s2 + $0x38] sm:$0xff]
        %v1906 = vld [vmem:[%s2 + $0x40] sm:$0xff]
        %v1907 = vld [vmem:[%s2 + $0x48] sm:$0xff]
        %v1908 = vld [vmem:[%s2 + $0x50] sm:$0xff]
        %v1909 = vld [vmem:[%s2 + $0x58] sm:$0xff]
        %v1910 = vld [vmem:[%s2 + $0x60] sm:$0xff]
        %v1911 = vld [vmem:[%s2 + $0x68] sm:$0xff]
        %v1912 = vld [vmem:[%s2 + $0x70] sm:$0xff]
        %v1913 = vld [vmem:[%s2 + $0x78] sm:$0xff]
        %v1914 = vld [vmem:[%s2 + $0x80] sm:$0xff]
        %v1915 = vld [vmem:[%s2 + $0x88] sm:$0xff]
        %v1916 = vld [vmem:[%s2 + $0x90] sm:$0xff]
        %v1917 = vld [vmem:[%s2 + $0x98] sm:$0xff]
        %v1918 = vld [vmem:[%s2 + $0xa0] sm:$0xff]
        %v1919 = vld [vmem:[%s2 + $0xa8] sm:$0xff]
        %v1920 = vld [vmem:[%s2 + $0xb0] sm:$0xff]
        %v1921 = vld [vmem:[%s2 + $0xb8] sm:$0xff]
        %v1922 = vld [vmem:[%s2 + $0xc0] sm:$0xff]
        %v1923 = vld [vmem:[%s2 + $0xc8] sm:$0xff]
        %v1924 = vld [vmem:[%s2 + $0xd0] sm:$0xff]
        %v1925 = vld [vmem:[%s2 + $0xd8] sm:$0xff]
        %v1926 = vld [vmem:[%s2 + $0xe0] sm:$0xff]
        %v1927 = vld [vmem:[%s2 + $0xe8] sm:$0xff]
        %v1928 = vld [vmem:[%s2 + $0xf0] sm:$0xff]
        %v1929 = vld [vmem:[%s2 + $0xf8] sm:$0xff]
        %v1930 = vld [vmem:[#allocation4] sm:$0xf]
        %v1931 = vld [vmem:[#allocation4 + $0x4] sm:$0xf]
        %v1932 = vld [vmem:[#allocation4 + $0x8] sm:$0xf]
        %v1933 = vld [vmem:[#allocation4 + $0xc] sm:$0xf]
        %v1934 = vld [vmem:[#allocation4 + $0x10] sm:$0xf]
        %v1935 = vld [vmem:[#allocation4 + $0x14] sm:$0xf]
        %v1936 = vld [vmem:[#allocation4 + $0x18] sm:$0xf]
        %v1937 = vld [vmem:[#allocation4 + $0x1c] sm:$0xf]
        %v1938 = vld [vmem:[#allocation4 + $0x20] sm:$0xf]
        %v1939 = vld [vmem:[#allocation4 + $0x24] sm:$0xf]
        %v1940 = vld [vmem:[#allocation4 + $0x28] sm:$0xf]
        %v1941 = vld [vmem:[#allocation4 + $0x2c] sm:$0xf]
        %v1942 = vld [vmem:[#allocation4 + $0x30] sm:$0xf]
        %v1943 = vld [vmem:[#allocation4 + $0x34] sm:$0xf]
        %v1944 = vld [vmem:[#allocation4 + $0x38] sm:$0xf]
        %v1945 = vld [vmem:[#allocation4 + $0x3c] sm:$0xf]
        %v1946 = vld [vmem:[#allocation4 + $0x40] sm:$0xf]
        %v1947 = vld [vmem:[#allocation4 + $0x44] sm:$0xf]
        %v1948 = vld [vmem:[#allocation4 + $0x48] sm:$0xf]
        %v1949 = vld [vmem:[#allocation4 + $0x4c] sm:$0xf]
        %v1950 = vld [vmem:[#allocation4 + $0x50] sm:$0xf]
        %v1951 = vld [vmem:[#allocation4 + $0x54] sm:$0xf]
        %v1952 = vld [vmem:[#allocation4 + $0x58] sm:$0xf]
        %v1953 = vld [vmem:[#allocation4 + $0x5c] sm:$0xf]
        %v1954 = vld [vmem:[#allocation4 + $0x60] sm:$0xf]
        %v1955 = vld [vmem:[#allocation4 + $0x64] sm:$0xf]
        %v1956 = vld [vmem:[#allocation4 + $0x68] sm:$0xf]
        %v1957 = vld [vmem:[#allocation4 + $0x6c] sm:$0xf]
        %v1958 = vld [vmem:[#allocation4 + $0x70] sm:$0xf]
        %v1959 = vld [vmem:[#allocation4 + $0x74] sm:$0xf]
        %v1960 = vld [vmem:[#allocation4 + $0x78] sm:$0xf]
        %v1961 = vld [vmem:[#allocation4 + $0x7c] sm:$0xf]
        %v1962 = vld [vmem:[#allocation4 + $0x80] sm:$0xf]
        %v1963 = vld [vmem:[#allocation4 + $0x84] sm:$0xf]
        %v1964 = vld [vmem:[#allocation4 + $0x88] sm:$0xf]
        %v1965 = vld [vmem:[#allocation4 + $0x8c] sm:$0xf]
        %v1966 = vld [vmem:[#allocation4 + $0x90] sm:$0xf]
        %v1967 = vld [vmem:[#allocation4 + $0x94] sm:$0xf]
        %v1968 = vld [vmem:[#allocation4 + $0x98] sm:$0xf]
        %v1969 = vld [vmem:[#allocation4 + $0x9c] sm:$0xf]
        %v1970 = vld [vmem:[#allocation4 + $0xa0] sm:$0xf]
        %v1971 = vld [vmem:[#allocation4 + $0xa4] sm:$0xf]
        %v1972 = vld [vmem:[#allocation4 + $0xa8] sm:$0xf]
        %v1973 = vld [vmem:[#allocation4 + $0xac] sm:$0xf]
        %v1974 = vld [vmem:[#allocation4 + $0xb0] sm:$0xf]
        %v1975 = vld [vmem:[#allocation4 + $0xb4] sm:$0xf]
        %v1976 = vld [vmem:[#allocation4 + $0xb8] sm:$0xf]
        %v1977 = vld [vmem:[#allocation4 + $0xbc] sm:$0xf]
        %v1978 = vld [vmem:[#allocation4 + $0xc0] sm:$0xf]
        %v1979 = vld [vmem:[#allocation4 + $0xc4] sm:$0xf]
        %v1980 = vld [vmem:[#allocation4 + $0xc8] sm:$0x1]
        %v2013 = vunpack.c.l.b16 %v1898
        %v2014 = vunpack.c.h.b16 %v1898
        %v2015 = vunpack.c.l.b16 %v1899
        %v2016 = vunpack.c.h.b16 %v1899
        %v2017 = vunpack.c.l.b16 %v1900
        %v2018 = vunpack.c.h.b16 %v1900
        %v2019 = vunpack.c.l.b16 %v1901
        %v2020 = vunpack.c.h.b16 %v1901
        %v2021 = vunpack.c.l.b16 %v1902
        %v2022 = vunpack.c.h.b16 %v1902
        %v2023 = vunpack.c.l.b16 %v1903
        %v2024 = vunpack.c.h.b16 %v1903
        %v2025 = vunpack.c.l.b16 %v1904
        %v2026 = vunpack.c.h.b16 %v1904
        %v2027 = vunpack.c.l.b16 %v1905
        %v2028 = vunpack.c.h.b16 %v1905
        %v2029 = vunpack.c.l.b16 %v1906
        %v2030 = vunpack.c.h.b16 %v1906
        %v2031 = vunpack.c.l.b16 %v1907
        %v2032 = vunpack.c.h.b16 %v1907
        %v2033 = vunpack.c.l.b16 %v1908
        %v2034 = vunpack.c.h.b16 %v1908
        %v2035 = vunpack.c.l.b16 %v1909
        %v2036 = vunpack.c.h.b16 %v1909
        %v2037 = vunpack.c.l.b16 %v1910
        %v2038 = vunpack.c.h.b16 %v1910
        %v2039 = vunpack.c.l.b16 %v1911
        %v2040 = vunpack.c.h.b16 %v1911
        %v2041 = vunpack.c.l.b16 %v1912
        %v2042 = vunpack.c.h.b16 %v1912
        %v2043 = vunpack.c.l.b16 %v1913
        %v2044 = vunpack.c.h.b16 %v1913
        %v2045 = vunpack.c.l.b16 %v1914
        %v2046 = vunpack.c.h.b16 %v1914
        %v2047 = vunpack.c.l.b16 %v1915
        %v2048 = vunpack.c.h.b16 %v1915
        %v2049 = vunpack.c.l.b16 %v1916
        %v2050 = vunpack.c.h.b16 %v1916
        %v2051 = vunpack.c.l.b16 %v1917
        %v2052 = vunpack.c.h.b16 %v1917
        %v2053 = vunpack.c.l.b16 %v1918
        %v2054 = vunpack.c.h.b16 %v1918
        %v2055 = vunpack.c.l.b16 %v1919
        %v2056 = vunpack.c.h.b16 %v1919
        %v2057 = vunpack.c.l.b16 %v1920
        %v2058 = vunpack.c.h.b16 %v1920
        %v2059 = vunpack.c.l.b16 %v1921
        %v2060 = vunpack.c.h.b16 %v1921
        %v2061 = vunpack.c.l.b16 %v1922
        %v2062 = vunpack.c.h.b16 %v1922
        %v2063 = vunpack.c.l.b16 %v1923
        %v2064 = vunpack.c.h.b16 %v1923
        %v2065 = vunpack.c.l.b16 %v1924
        %v2066 = vunpack.c.h.b16 %v1924
        %v2067 = vunpack.c.l.b16 %v1925
        %v2068 = vunpack.c.h.b16 %v1925
        %v2069 = vunpack.c.l.b16 %v1926
        %v2070 = vunpack.c.h.b16 %v1926
        %v2071 = vunpack.c.l.b16 %v1927
        %v2072 = vunpack.c.h.b16 %v1927
        %v2073 = vunpack.c.l.b16 %v1928
        %v2074 = vunpack.c.h.b16 %v1928
        %v2075 = vunpack.c.l.b16 %v1929
        %v2076 = vunpack.c.h.b16 %v1929
        %v2077 = vpack.c.b16 %v2017, %v2013
        %v2078 = vpack.c.b16 %v2018, %v2014
        %v2079 = vpack.c.b16 %v2019, %v2015
        %v2080 = vpack.c.b16 %v2020, %v2016
        %v2081 = vpack.c.b16 %v2025, %v2021
        %v2082 = vpack.c.b16 %v2026, %v2022
        %v2083 = vpack.c.b16 %v2027, %v2023
        %v2084 = vpack.c.b16 %v2028, %v2024
        %v2085 = vpack.c.b16 %v2033, %v2029
        %v2086 = vpack.c.b16 %v2034, %v2030
        %v2087 = vpack.c.b16 %v2035, %v2031
        %v2088 = vpack.c.b16 %v2036, %v2032
        %v2089 = vpack.c.b16 %v2041, %v2037
        %v2090 = vpack.c.b16 %v2042, %v2038
        %v2091 = vpack.c.b16 %v2043, %v2039
        %v2092 = vpack.c.b16 %v2044, %v2040
        %v2093 = vpack.c.b16 %v2049, %v2045
        %v2094 = vpack.c.b16 %v2050, %v2046
        %v2095 = vpack.c.b16 %v2051, %v2047
        %v2096 = vpack.c.b16 %v2052, %v2048
        %v2097 = vpack.c.b16 %v2057, %v2053
        %v2098 = vpack.c.b16 %v2058, %v2054
        %v2099 = vpack.c.b16 %v2059, %v2055
        %v2100 = vpack.c.b16 %v2060, %v2056
        %v2101 = vpack.c.b16 %v2065, %v2061
        %v2102 = vpack.c.b16 %v2066, %v2062
        %v2103 = vpack.c.b16 %v2067, %v2063
        %v2104 = vpack.c.b16 %v2068, %v2064
        %v2105 = vpack.c.b16 %v2073, %v2069
        %v2106 = vpack.c.b16 %v2074, %v2070
        %v2107 = vpack.c.b16 %v2075, %v2071
        %v2108 = vpack.c.b16 %v2076, %v2072
        %v2184 = vunpack.c.l.b16 %v1930
        %v2185 = vunpack.c.l.b16 %v1931
        %v2186 = vunpack.c.l.b16 %v1932
        %v2187 = vunpack.c.l.b16 %v1933
        %v2188 = vunpack.c.l.b16 %v1934
        %v2189 = vunpack.c.l.b16 %v1935
        %v2190 = vunpack.c.l.b16 %v1936
        %v2191 = vunpack.c.l.b16 %v1937
        %v2192 = vunpack.c.l.b16 %v1938
        %v2193 = vunpack.c.l.b16 %v1939
        %v2194 = vunpack.c.l.b16 %v1940
        %v2195 = vunpack.c.l.b16 %v1941
        %v2196 = vunpack.c.l.b16 %v1942
        %v2197 = vunpack.c.l.b16 %v1943
        %v2198 = vunpack.c.l.b16 %v1944
        %v2199 = vunpack.c.l.b16 %v1945
        %v2200 = vunpack.c.l.b16 %v1946
        %v2201 = vunpack.c.l.b16 %v1947
        %v2202 = vunpack.c.l.b16 %v1948
        %v2203 = vunpack.c.l.b16 %v1949
        %v2204 = vunpack.c.l.b16 %v1950
        %v2205 = vunpack.c.l.b16 %v1951
        %v2206 = vunpack.c.l.b16 %v1952
        %v2207 = vunpack.c.l.b16 %v1953
        %v2208 = vunpack.c.l.b16 %v1954
        %v2209 = vunpack.c.l.b16 %v1955
        %v2210 = vunpack.c.l.b16 %v1956
        %v2211 = vunpack.c.l.b16 %v1957
        %v2212 = vunpack.c.l.b16 %v1958
        %v2213 = vunpack.c.l.b16 %v1959
        %v2214 = vunpack.c.l.b16 %v1960
        %v2215 = vunpack.c.l.b16 %v1961
        %v2216 = vunpack.c.l.b16 %v1962
        %v2217 = vunpack.c.l.b16 %v1963
        %v2218 = vunpack.c.l.b16 %v1964
        %v2219 = vunpack.c.l.b16 %v1965
        %v2220 = vunpack.c.l.b16 %v1966
        %v2221 = vunpack.c.l.b16 %v1967
        %v2222 = vunpack.c.l.b16 %v1968
        %v2223 = vunpack.c.l.b16 %v1969
        %v2224 = vunpack.c.l.b16 %v1970
        %v2225 = vunpack.c.l.b16 %v1971
        %v2226 = vunpack.c.l.b16 %v1972
        %v2227 = vunpack.c.l.b16 %v1973
        %v2228 = vunpack.c.l.b16 %v1974
        %v2229 = vunpack.c.l.b16 %v1975
        %v2230 = vunpack.c.l.b16 %v1976
        %v2231 = vunpack.c.l.b16 %v1977
        %v2232 = vunpack.c.l.b16 %v1978
        %v2233 = vunpack.c.l.b16 %v1979
        %v2234 = vunpack.c.l.b16 %v1980
        %v2235 = vpack.c.b16 %v2185, %v2184
        %v2236 = vpack.c.b16 %v2187, %v2186
        %v2237 = vpack.c.b16 %v2189, %v2188
        %v2238 = vpack.c.b16 %v2191, %v2190
        %v2239 = vpack.c.b16 %v2193, %v2192
        %v2240 = vpack.c.b16 %v2195, %v2194
        %v2241 = vpack.c.b16 %v2197, %v2196
        %v2242 = vpack.c.b16 %v2199, %v2198
        %v2243 = vpack.c.b16 %v2201, %v2200
        %v2244 = vpack.c.b16 %v2203, %v2202
        %v2245 = vpack.c.b16 %v2205, %v2204
        %v2246 = vpack.c.b16 %v2207, %v2206
        %v2247 = vpack.c.b16 %v2209, %v2208
        %v2248 = vpack.c.b16 %v2211, %v2210
        %v2249 = vpack.c.b16 %v2213, %v2212
        %v2250 = vpack.c.b16 %v2215, %v2214
        %v2251 = vpack.c.b16 %v2217, %v2216
        %v2252 = vpack.c.b16 %v2219, %v2218
        %v2253 = vpack.c.b16 %v2221, %v2220
        %v2254 = vpack.c.b16 %v2223, %v2222
        %v2255 = vpack.c.b16 %v2225, %v2224
        %v2256 = vpack.c.b16 %v2227, %v2226
        %v2257 = vpack.c.b16 %v2229, %v2228
        %v2258 = vpack.c.b16 %v2231, %v2230
        %v2259 = vpack.c.b16 %v2233, %v2232
        %v2260 = vpack.c.b16 %v2234, %v2234
        %v2287 = vsel %vm514, %v2080, 0
        %v2290 = vsel %vm514, %v2084, 0
        %v2293 = vsel %vm514, %v2088, 0
        %v2296 = vsel %vm514, %v2092, 0
        %v2299 = vsel %vm514, %v2096, 0
        %v2302 = vsel %vm514, %v2100, 0
        %v2305 = vsel %vm514, %v2104, 0
        %v2308 = vsel %vm514, %v2108, 0
        %v2311 = vand.u32 %v2260, %v598
        %2313 = vmatprep.subr.bf16.mxu0 0
        %2314 = vmatpush1.bf16.msra.mxu0 %v2235
        %2315 = vmatprep.subr.bf16.mxu0 0
        %2316 = vmatpush1.bf16.msra.mxu0 %v2236
        %2317 = vmatprep.subr.bf16.mxu0 0
        %2318 = vmatpush1.bf16.msra.mxu0 %v2237
        %2319 = vmatprep.subr.bf16.mxu0 0
        %2320 = vmatpush1.bf16.msra.mxu0 %v2238
        %2321 = vmatprep.subr.bf16.mxu0 0
        %2322 = vmatpush1.bf16.msra.mxu0 %v2239
        %2323 = vmatprep.subr.bf16.mxu0 0
        %2324 = vmatpush1.bf16.msra.mxu0 %v2240
        %2325 = vmatprep.subr.bf16.mxu0 0
        %2326 = vmatpush1.bf16.msra.mxu0 %v2241
        %2327 = vmatprep.subr.bf16.mxu0 0
        %2328 = vmatpush1.bf16.msra.mxu0 %v2242
        %2329 = vmatprep.subr.bf16.mxu0 0
        %2330 = vmatpush1.bf16.msra.mxu0 %v2243
        %2331 = vmatprep.subr.bf16.mxu0 0
        %2332 = vmatpush1.bf16.msra.mxu0 %v2244
        %2333 = vmatprep.subr.bf16.mxu0 0
        %2334 = vmatpush1.bf16.msra.mxu0 %v2245
        %2335 = vmatprep.subr.bf16.mxu0 0
        %2336 = vmatpush1.bf16.msra.mxu0 %v2246
        %2337 = vmatprep.subr.bf16.mxu0 0
        %2338 = vmatpush1.bf16.msra.mxu0 %v2247
        %2339 = vmatprep.subr.bf16.mxu0 0
        %2340 = vmatpush1.bf16.msra.mxu0 %v2248
        %2341 = vmatprep.subr.bf16.mxu0 0
        %2342 = vmatpush1.bf16.msra.mxu0 %v2249
        %2343 = vmatprep.subr.bf16.mxu0 0
        %2344 = vmatpush1.bf16.msra.mxu0 %v2250
        %2345 = vmatprep.mubr.bf16.mxu0 %v2078
        %2346 = vmatmul.mubr.bf16.gmra.mrb[0].mxu0 %v2077
        %v2347 = vpop.f32.mrb[0].mxu0
        %v2348 = vadd.f32 0.0, %v2347
        %v2349 = vpop.f32.mrb[0].mxu0
        %v2350 = vpop.f32.mrb[0].mxu0
        %v2351 = vadd.f32 0.0, %v2350
        %v2352 = vpop.f32.mrb[0].mxu0
        %2353 = vmatprep.mubr.bf16.mxu0 %v2082
        %2354 = vmatmul.mubr.bf16.gmra.mrb[0].mxu0 %v2081
        %v2355 = vpop.f32.mrb[0].mxu0
        %v2356 = vadd.f32 0.0, %v2355
        %v2357 = vpop.f32.mrb[0].mxu0
        %v2358 = vpop.f32.mrb[0].mxu0
        %v2359 = vadd.f32 0.0, %v2358
        %v2360 = vpop.f32.mrb[0].mxu0
        %2361 = vmatprep.mubr.bf16.mxu0 %v2086
        %2362 = vmatmul.mubr.bf16.gmra.mrb[0].mxu0 %v2085
        %v2363 = vpop.f32.mrb[0].mxu0
        %v2364 = vadd.f32 0.0, %v2363
        %v2365 = vpop.f32.mrb[0].mxu0
        %v2366 = vpop.f32.mrb[0].mxu0
        %v2367 = vadd.f32 0.0, %v2366
        %v2368 = vpop.f32.mrb[0].mxu0
        %2369 = vmatprep.mubr.bf16.mxu0 %v2090
        %2370 = vmatmul.mubr.bf16.gmra.mrb[0].mxu0 %v2089
        %v2371 = vpop.f32.mrb[0].mxu0
        %v2372 = vadd.f32 0.0, %v2371
        %v2373 = vpop.f32.mrb[0].mxu0
        %v2374 = vpop.f32.mrb[0].mxu0
        %v2375 = vadd.f32 0.0, %v2374
        %v2376 = vpop.f32.mrb[0].mxu0
        %2377 = vmatprep.mubr.bf16.mxu0 %v2094
        %2378 = vmatmul.mubr.bf16.gmra.mrb[0].mxu0 %v2093
        %v2379 = vpop.f32.mrb[0].mxu0
        %v2380 = vadd.f32 0.0, %v2379
        %v2381 = vpop.f32.mrb[0].mxu0
        %v2382 = vpop.f32.mrb[0].mxu0
        %v2383 = vadd.f32 0.0, %v2382
        %v2384 = vpop.f32.mrb[0].mxu0
        %2385 = vmatprep.mubr.bf16.mxu0 %v2098
        %2386 = vmatmul.mubr.bf16.gmra.mrb[0].mxu0 %v2097
        %v2387 = vpop.f32.mrb[0].mxu0
        %v2388 = vadd.f32 0.0, %v2387
        %v2389 = vpop.f32.mrb[0].mxu0
        %v2390 = vpop.f32.mrb[0].mxu0
        %v2391 = vadd.f32 0.0, %v2390
        %v2392 = vpop.f32.mrb[0].mxu0
        %2393 = vmatprep.mubr.bf16.mxu0 %v2102
        %2394 = vmatmul.mubr.bf16.gmra.mrb[0].mxu0 %v2101
        %v2395 = vpop.f32.mrb[0].mxu0
        %v2396 = vadd.f32 0.0, %v2395
        %v2397 = vpop.f32.mrb[0].mxu0
        %v2398 = vpop.f32.mrb[0].mxu0
        %v2399 = vadd.f32 0.0, %v2398
        %v2400 = vpop.f32.mrb[0].mxu0
        %2401 = vmatprep.mubr.bf16.mxu0 %v2106
        %2402 = vmatmul.mubr.bf16.gmra.mrb[0].mxu0 %v2105
        %v2403 = vpop.f32.mrb[0].mxu0
        %v2404 = vadd.f32 0.0, %v2403
        %v2405 = vpop.f32.mrb[0].mxu0
        %v2406 = vpop.f32.mrb[0].mxu0
        %v2407 = vadd.f32 0.0, %v2406
        %v2408 = vpop.f32.mrb[0].mxu0
        %2409 = vdwg.mxu0
        %2410 = vmatprep.subr.bf16.mxu0 0
        %2411 = vmatpush1.bf16.msra.mxu0 %v2251
        %2412 = vmatprep.subr.bf16.mxu0 0
        %2413 = vmatpush1.bf16.msra.mxu0 %v2252
        %2414 = vmatprep.subr.bf16.mxu0 0
        %2415 = vmatpush1.bf16.msra.mxu0 %v2253
        %2416 = vmatprep.subr.bf16.mxu0 0
        %2417 = vmatpush1.bf16.msra.mxu0 %v2254
        %2418 = vmatprep.subr.bf16.mxu0 0
        %2419 = vmatpush1.bf16.msra.mxu0 %v2255
        %2420 = vmatprep.subr.bf16.mxu0 0
        %2421 = vmatpush1.bf16.msra.mxu0 %v2256
        %2422 = vmatprep.subr.bf16.mxu0 0
        %2423 = vmatpush1.bf16.msra.mxu0 %v2257
        %2424 = vmatprep.subr.bf16.mxu0 0
        %2425 = vmatpush1.bf16.msra.mxu0 %v2258
        %2426 = vmatprep.subr.bf16.mxu0 0
        %2427 = vmatpush1.bf16.msra.mxu0 %v2259
        %2428 = vmatprep.subr.bf16.mxu0 0
        %2429 = vmatpush1.bf16.msra.mxu0 %v2311
        %2430 = vmatprep.subr.bf16.mxu0 0
        %2431 = vmatpush1.bf16.msra.mxu0 0
        %2432 = vmatprep.subr.bf16.mxu0 0
        %2433 = vmatpush1.bf16.msra.mxu0 0
        %2434 = vmatprep.subr.bf16.mxu0 0
        %2435 = vmatpush1.bf16.msra.mxu0 0
        %2436 = vmatprep.subr.bf16.mxu0 0
        %2437 = vmatpush1.bf16.msra.mxu0 0
        %2438 = vmatprep.subr.bf16.mxu0 0
        %2439 = vmatpush1.bf16.msra.mxu0 0
        %2440 = vmatprep.subr.bf16.mxu0 0
        %2441 = vmatpush1.bf16.msra.mxu0 0
        %2442 = vmatprep.mubr.bf16.mxu0 %v2287
        %2443 = vmatmul.mubr.bf16.gmra.mrb[0].mxu0 %v2079
        %v2444 = vpop.f32.mrb[0].mxu0
        %v2445 = vadd.f32 %v2348, %v2444
        %v2446 = vpop.f32.mrb[0].mxu0
        %v2447 = vpop.f32.mrb[0].mxu0
        %v2448 = vadd.f32 %v2351, %v2447
        %v2449 = vpop.f32.mrb[0].mxu0
        %2450 = vmatprep.mubr.bf16.mxu0 %v2290
        %2451 = vmatmul.mubr.bf16.gmra.mrb[0].mxu0 %v2083
        %v2452 = vpop.f32.mrb[0].mxu0
        %v2453 = vadd.f32 %v2356, %v2452
        %v2454 = vpop.f32.mrb[0].mxu0
        %v2455 = vpop.f32.mrb[0].mxu0
        %v2456 = vadd.f32 %v2359, %v2455
        %v2457 = vpop.f32.mrb[0].mxu0
        %2458 = vmatprep.mubr.bf16.mxu0 %v2293
        %2459 = vmatmul.mubr.bf16.gmra.mrb[0].mxu0 %v2087
        %v2460 = vpop.f32.mrb[0].mxu0
        %v2461 = vadd.f32 %v2364, %v2460
        %v2462 = vpop.f32.mrb[0].mxu0
        %v2463 = vpop.f32.mrb[0].mxu0
        %v2464 = vadd.f32 %v2367, %v2463
        %v2465 = vpop.f32.mrb[0].mxu0
        %2466 = vmatprep.mubr.bf16.mxu0 %v2296
        %2467 = vmatmul.mubr.bf16.gmra.mrb[0].mxu0 %v2091
        %v2468 = vpop.f32.mrb[0].mxu0
        %v2469 = vadd.f32 %v2372, %v2468
        %v2470 = vpop.f32.mrb[0].mxu0
        %v2471 = vpop.f32.mrb[0].mxu0
        %v2472 = vadd.f32 %v2375, %v2471
        %v2473 = vpop.f32.mrb[0].mxu0
        %2474 = vmatprep.mubr.bf16.mxu0 %v2299
        %2475 = vmatmul.mubr.bf16.gmra.mrb[0].mxu0 %v2095
        %v2476 = vpop.f32.mrb[0].mxu0
        %v2477 = vadd.f32 %v2380, %v2476
        %v2478 = vpop.f32.mrb[0].mxu0
        %v2479 = vpop.f32.mrb[0].mxu0
        %v2480 = vadd.f32 %v2383, %v2479
        %v2481 = vpop.f32.mrb[0].mxu0
        %2482 = vmatprep.mubr.bf16.mxu0 %v2302
        %2483 = vmatmul.mubr.bf16.gmra.mrb[0].mxu0 %v2099
        %v2484 = vpop.f32.mrb[0].mxu0
        %v2485 = vadd.f32 %v2388, %v2484
        %v2486 = vpop.f32.mrb[0].mxu0
        %v2487 = vpop.f32.mrb[0].mxu0
        %v2488 = vadd.f32 %v2391, %v2487
        %v2489 = vpop.f32.mrb[0].mxu0
        %2490 = vmatprep.mubr.bf16.mxu0 %v2305
        %2491 = vmatmul.mubr.bf16.gmra.mrb[0].mxu0 %v2103
        %v2492 = vpop.f32.mrb[0].mxu0
        %v2493 = vadd.f32 %v2396, %v2492
        %v2494 = vpop.f32.mrb[0].mxu0
        %v2495 = vpop.f32.mrb[0].mxu0
        %v2496 = vadd.f32 %v2399, %v2495
        %v2497 = vpop.f32.mrb[0].mxu0
        %2498 = vmatprep.mubr.bf16.mxu0 %v2308
        %2499 = vmatmul.mubr.bf16.gmra.mrb[0].mxu0 %v2107
        %v2500 = vpop.f32.mrb[0].mxu0
        %v2501 = vadd.f32 %v2404, %v2500
        %v2502 = vpop.f32.mrb[0].mxu0
        %v2503 = vpop.f32.mrb[0].mxu0
        %v2504 = vadd.f32 %v2407, %v2503
        %v2505 = vpop.f32.mrb[0].mxu0
        %2506 = vdwg.mxu0
        %v2507 = vmax.f32 %v2445, %v2448
        %v2508 = vmax.f32 %v2453, %v2456
        %v2509 = vmax.f32 %v2507, %v2508
        %v2510 = vrot.slane %v2509, 4
        %v2511 = vmax.f32 %v2509, %v2510
        %v2512 = vrot.slane %v2511, 2
        %v2513 = vmax.f32 %v2511, %v2512
        %v2514 = vrot.slane %v2513, 1
        %v2515 = vmax.f32 %v2513, %v2514
        %v2516 = vsub.f32 %v2445, %v2515
        %v2517 = vsub.f32 %v2448, %v2515
        %v2518 = vsub.f32 %v2453, %v2515
        %v2519 = vsub.f32 %v2456, %v2515
        %v2520 = vmul.f32 %v2516, 1.442695
        %v2521 = vpow.pop %v2520
        %v2522 = vmul.f32 %v2517, 1.442695
        %v2523 = vpow.pop %v2522
        %v2524 = vmul.f32 %v2518, 1.442695
        %v2525 = vpow.pop %v2524
        %v2526 = vmul.f32 %v2519, 1.442695
        %v2527 = vpow.pop %v2526
        %v2528 = vadd.f32 %v2521, %v2523
        %v2529 = vadd.f32 %v2528, %v2525
        %v2530 = vadd.f32 %v2529, %v2527
        %v2531 = vrot.slane %v2530, 4
        %v2532 = vadd.f32 %v2530, %v2531
        %v2533 = vrot.slane %v2532, 2
        %v2534 = vadd.f32 %v2532, %v2533
        %v2535 = vrot.slane %v2534, 1
        %v2536 = vadd.f32 %v2534, %v2535
        %v2537 = vrcp.pop %v2536
        %v2538 = vmul.f32 %v2521, %v2537
        %v2539 = vmul.f32 %v2523, %v2537
        %v2540 = vmul.f32 %v2525, %v2537
        %v2541 = vmul.f32 %v2527, %v2537
        %v2542 = vld [vmem:[%s4] sm:$0xff]
        %v2543 = vld [vmem:[%s4 + $0x8] sm:$0xff]
        %v2544 = vld [vmem:[%s4 + $0x10] sm:$0xff]
        %v2545 = vld [vmem:[%s4 + $0x18] sm:$0xff]
        %v2546 = vmul.f32 %v2538, %v2542
        %v2547 = vmul.f32 %v2539, %v2543
        %v2548 = vmul.f32 %v2540, %v2544
        %v2549 = vmul.f32 %v2541, %v2545
        %v2550 = vpack.c.bf16 %v2547, %v2546
        %v2551 = vpack.c.bf16 %v2549, %v2548
        %2552 = vst [vmem:[#allocation6] sm:$0xff] %v2550
        %2553 = vst [vmem:[#allocation6 + $0x8] sm:$0xff] %v2551
        %v2554 = vmax.f32 %v2461, %v2464
        %v2555 = vmax.f32 %v2469, %v2472
        %v2556 = vmax.f32 %v2554, %v2555
        %v2557 = vrot.slane %v2556, 4
        %v2558 = vmax.f32 %v2556, %v2557
        %v2559 = vrot.slane %v2558, 2
        %v2560 = vmax.f32 %v2558, %v2559
        %v2561 = vrot.slane %v2560, 1
        %v2562 = vmax.f32 %v2560, %v2561
        %v2563 = vsub.f32 %v2461, %v2562
        %v2564 = vsub.f32 %v2464, %v2562
        %v2565 = vsub.f32 %v2469, %v2562
        %v2566 = vsub.f32 %v2472, %v2562
        %v2567 = vmul.f32 %v2563, 1.442695
        %v2568 = vpow.pop %v2567
        %v2569 = vmul.f32 %v2564, 1.442695
        %v2570 = vpow.pop %v2569
        %v2571 = vmul.f32 %v2565, 1.442695
        %v2572 = vpow.pop %v2571
        %v2573 = vmul.f32 %v2566, 1.442695
        %v2574 = vpow.pop %v2573
        %v2575 = vadd.f32 %v2568, %v2570
        %v2576 = vadd.f32 %v2575, %v2572
        %v2577 = vadd.f32 %v2576, %v2574
        %v2578 = vrot.slane %v2577, 4
        %v2579 = vadd.f32 %v2577, %v2578
        %v2580 = vrot.slane %v2579, 2
        %v2581 = vadd.f32 %v2579, %v2580
        %v2582 = vrot.slane %v2581, 1
        %v2583 = vadd.f32 %v2581, %v2582
        %v2584 = vrcp.pop %v2583
        %v2585 = vmul.f32 %v2568, %v2584
        %v2586 = vmul.f32 %v2570, %v2584
        %v2587 = vmul.f32 %v2572, %v2584
        %v2588 = vmul.f32 %v2574, %v2584
        %v2589 = vld [vmem:[%s4 + $0x20] sm:$0xff]
        %v2590 = vld [vmem:[%s4 + $0x28] sm:$0xff]
        %v2591 = vld [vmem:[%s4 + $0x30] sm:$0xff]
        %v2592 = vld [vmem:[%s4 + $0x38] sm:$0xff]
        %v2593 = vmul.f32 %v2585, %v2589
        %v2594 = vmul.f32 %v2586, %v2590
        %v2595 = vmul.f32 %v2587, %v2591
        %v2596 = vmul.f32 %v2588, %v2592
        %v2597 = vpack.c.bf16 %v2594, %v2593
        %v2598 = vpack.c.bf16 %v2596, %v2595
        %2599 = vst [vmem:[#allocation6 + $0x10] sm:$0xff] %v2597
        %2600 = vst [vmem:[#allocation6 + $0x18] sm:$0xff] %v2598
        %v2601 = vmax.f32 %v2477, %v2480
        %v2602 = vmax.f32 %v2485, %v2488
        %v2603 = vmax.f32 %v2601, %v2602
        %v2604 = vrot.slane %v2603, 4
        %v2605 = vmax.f32 %v2603, %v2604
        %v2606 = vrot.slane %v2605, 2
        %v2607 = vmax.f32 %v2605, %v2606
        %v2608 = vrot.slane %v2607, 1
        %v2609 = vmax.f32 %v2607, %v2608
        %v2610 = vsub.f32 %v2477, %v2609
        %v2611 = vsub.f32 %v2480, %v2609
        %v2612 = vsub.f32 %v2485, %v2609
        %v2613 = vsub.f32 %v2488, %v2609
        %v2614 = vmul.f32 %v2610, 1.442695
        %v2615 = vpow.pop %v2614
        %v2616 = vmul.f32 %v2611, 1.442695
        %v2617 = vpow.pop %v2616
        %v2618 = vmul.f32 %v2612, 1.442695
        %v2619 = vpow.pop %v2618
        %v2620 = vmul.f32 %v2613, 1.442695
        %v2621 = vpow.pop %v2620
        %v2622 = vadd.f32 %v2615, %v2617
        %v2623 = vadd.f32 %v2622, %v2619
        %v2624 = vadd.f32 %v2623, %v2621
        %v2625 = vrot.slane %v2624, 4
        %v2626 = vadd.f32 %v2624, %v2625
        %v2627 = vrot.slane %v2626, 2
        %v2628 = vadd.f32 %v2626, %v2627
        %v2629 = vrot.slane %v2628, 1
        %v2630 = vadd.f32 %v2628, %v2629
        %v2631 = vrcp.pop %v2630
        %v2632 = vmul.f32 %v2615, %v2631
        %v2633 = vmul.f32 %v2617, %v2631
        %v2634 = vmul.f32 %v2619, %v2631
        %v2635 = vmul.f32 %v2621, %v2631
        %v2636 = vld [vmem:[%s4 + $0x40] sm:$0xff]
        %v2637 = vld [vmem:[%s4 + $0x48] sm:$0xff]
        %v2638 = vld [vmem:[%s4 + $0x50] sm:$0xff]
        %v2639 = vld [vmem:[%s4 + $0x58] sm:$0xff]
        %v2640 = vmul.f32 %v2632, %v2636
        %v2641 = vmul.f32 %v2633, %v2637
        %v2642 = vmul.f32 %v2634, %v2638
        %v2643 = vmul.f32 %v2635, %v2639
        %v2644 = vpack.c.bf16 %v2641, %v2640
        %v2645 = vpack.c.bf16 %v2643, %v2642
        %2646 = vst [vmem:[#allocation6 + $0x20] sm:$0xff] %v2644
        %2647 = vst [vmem:[#allocation6 + $0x28] sm:$0xff] %v2645
        %v2648 = vmax.f32 %v2493, %v2496
        %v2649 = vmax.f32 %v2501, %v2504
        %v2650 = vmax.f32 %v2648, %v2649
        %v2651 = vrot.slane %v2650, 4
        %v2652 = vmax.f32 %v2650, %v2651
        %v2653 = vrot.slane %v2652, 2
        %v2654 = vmax.f32 %v2652, %v2653
        %v2655 = vrot.slane %v2654, 1
        %v2656 = vmax.f32 %v2654, %v2655
        %v2657 = vsub.f32 %v2493, %v2656
        %v2658 = vsub.f32 %v2496, %v2656
        %v2659 = vsub.f32 %v2501, %v2656
        %v2660 = vsub.f32 %v2504, %v2656
        %v2661 = vmul.f32 %v2657, 1.442695
        %v2662 = vpow.pop %v2661
        %v2663 = vmul.f32 %v2658, 1.442695
        %v2664 = vpow.pop %v2663
        %v2665 = vmul.f32 %v2659, 1.442695
        %v2666 = vpow.pop %v2665
        %v2667 = vmul.f32 %v2660, 1.442695
        %v2668 = vpow.pop %v2667
        %v2669 = vadd.f32 %v2662, %v2664
        %v2670 = vadd.f32 %v2669, %v2666
        %v2671 = vadd.f32 %v2670, %v2668
        %v2672 = vrot.slane %v2671, 4
        %v2673 = vadd.f32 %v2671, %v2672
        %v2674 = vrot.slane %v2673, 2
        %v2675 = vadd.f32 %v2673, %v2674
        %v2676 = vrot.slane %v2675, 1
        %v2677 = vadd.f32 %v2675, %v2676
        %v2678 = vrcp.pop %v2677
        %v2679 = vmul.f32 %v2662, %v2678
        %v2680 = vmul.f32 %v2664, %v2678
        %v2681 = vmul.f32 %v2666, %v2678
        %v2682 = vmul.f32 %v2668, %v2678
        %v2683 = vld [vmem:[%s4 + $0x60] sm:$0xff]
        %v2684 = vld [vmem:[%s4 + $0x68] sm:$0xff]
        %v2685 = vld [vmem:[%s4 + $0x70] sm:$0xff]
        %v2686 = vld [vmem:[%s4 + $0x78] sm:$0xff]
        %v2687 = vmul.f32 %v2679, %v2683
        %v2688 = vmul.f32 %v2680, %v2684
        %v2689 = vmul.f32 %v2681, %v2685
        %v2690 = vmul.f32 %v2682, %v2686
        %v2691 = vpack.c.bf16 %v2688, %v2687
        %v2692 = vpack.c.bf16 %v2690, %v2689
        %2693 = vst [vmem:[#allocation6 + $0x30] sm:$0xff] %v2691
        %2694 = vst [vmem:[#allocation6 + $0x38] sm:$0xff] %v2692
        %v2695 = vld [vmem:[%s3] sm:$0xf]
        %v2696 = vld [vmem:[%s3 + $0x4] sm:$0xf]
        %v2697 = vld [vmem:[%s3 + $0x8] sm:$0xf]
        %v2698 = vld [vmem:[%s3 + $0xc] sm:$0xf]
        %v2699 = vld [vmem:[%s3 + $0x10] sm:$0xf]
        %v2700 = vld [vmem:[%s3 + $0x14] sm:$0xf]
        %v2701 = vld [vmem:[%s3 + $0x18] sm:$0xf]
        %v2702 = vld [vmem:[%s3 + $0x1c] sm:$0xf]
        %v2703 = vld [vmem:[%s3 + $0x20] sm:$0xf]
        %v2704 = vld [vmem:[%s3 + $0x24] sm:$0xf]
        %v2705 = vld [vmem:[%s3 + $0x28] sm:$0xf]
        %v2706 = vld [vmem:[%s3 + $0x2c] sm:$0xf]
        %v2707 = vld [vmem:[%s3 + $0x30] sm:$0xf]
        %v2708 = vld [vmem:[%s3 + $0x34] sm:$0xf]
        %v2709 = vld [vmem:[%s3 + $0x38] sm:$0xf]
        %v2710 = vld [vmem:[%s3 + $0x3c] sm:$0xf]
        %v2711 = vld [vmem:[%s3 + $0x40] sm:$0xf]
        %v2712 = vld [vmem:[%s3 + $0x44] sm:$0xf]
        %v2713 = vld [vmem:[%s3 + $0x48] sm:$0xf]
        %v2714 = vld [vmem:[%s3 + $0x4c] sm:$0xf]
        %v2715 = vld [vmem:[%s3 + $0x50] sm:$0xf]
        %v2716 = vld [vmem:[%s3 + $0x54] sm:$0xf]
        %v2717 = vld [vmem:[%s3 + $0x58] sm:$0xf]
        %v2718 = vld [vmem:[%s3 + $0x5c] sm:$0xf]
        %v2719 = vld [vmem:[%s3 + $0x60] sm:$0xf]
        %v2720 = vld [vmem:[%s3 + $0x64] sm:$0xf]
        %v2721 = vld [vmem:[%s3 + $0x68] sm:$0xf]
        %v2722 = vld [vmem:[%s3 + $0x6c] sm:$0xf]
        %v2723 = vld [vmem:[%s3 + $0x70] sm:$0xf]
        %v2724 = vld [vmem:[%s3 + $0x74] sm:$0xf]
        %v2725 = vld [vmem:[%s3 + $0x78] sm:$0xf]
        %v2726 = vld [vmem:[%s3 + $0x7c] sm:$0xf]
        %v2727 = vld [vmem:[%s3 + $0x80] sm:$0xf]
        %v2728 = vld [vmem:[%s3 + $0x84] sm:$0xf]
        %v2729 = vld [vmem:[%s3 + $0x88] sm:$0xf]
        %v2730 = vld [vmem:[%s3 + $0x8c] sm:$0xf]
        %v2731 = vld [vmem:[%s3 + $0x90] sm:$0xf]
        %v2732 = vld [vmem:[%s3 + $0x94] sm:$0xf]
        %v2733 = vld [vmem:[%s3 + $0x98] sm:$0xf]
        %v2734 = vld [vmem:[%s3 + $0x9c] sm:$0xf]
        %v2735 = vld [vmem:[%s3 + $0xa0] sm:$0xf]
        %v2736 = vld [vmem:[%s3 + $0xa4] sm:$0xf]
        %v2737 = vld [vmem:[%s3 + $0xa8] sm:$0xf]
        %v2738 = vld [vmem:[%s3 + $0xac] sm:$0xf]
        %v2739 = vld [vmem:[%s3 + $0xb0] sm:$0xf]
        %v2740 = vld [vmem:[%s3 + $0xb4] sm:$0xf]
        %v2741 = vld [vmem:[%s3 + $0xb8] sm:$0xf]
        %v2742 = vld [vmem:[%s3 + $0xbc] sm:$0xf]
        %v2743 = vld [vmem:[%s3 + $0xc0] sm:$0xf]
        %v2744 = vld [vmem:[%s3 + $0xc4] sm:$0xf]
        %v2745 = vld [vmem:[#allocation6] sm:$0xff]
        %v2746 = vld [vmem:[#allocation6 + $0x8] sm:$0xff]
        %v2747 = vld [vmem:[#allocation6 + $0x10] sm:$0xff]
        %v2748 = vld [vmem:[#allocation6 + $0x18] sm:$0xff]
        %v2749 = vld [vmem:[#allocation6 + $0x20] sm:$0xff]
        %v2750 = vld [vmem:[#allocation6 + $0x28] sm:$0xff]
        %v2751 = vld [vmem:[#allocation6 + $0x30] sm:$0xff]
        %v2752 = vld [vmem:[#allocation6 + $0x38] sm:$0xff]
        %v2803 = vunpack.c.l.b16 %v2695
        %v2804 = vunpack.c.l.b16 %v2696
        %v2805 = vunpack.c.l.b16 %v2697
        %v2806 = vunpack.c.l.b16 %v2698
        %v2807 = vunpack.c.l.b16 %v2699
        %v2808 = vunpack.c.l.b16 %v2700
        %v2809 = vunpack.c.l.b16 %v2701
        %v2810 = vunpack.c.l.b16 %v2702
        %v2811 = vunpack.c.l.b16 %v2703
        %v2812 = vunpack.c.l.b16 %v2704
        %v2813 = vunpack.c.l.b16 %v2705
        %v2814 = vunpack.c.l.b16 %v2706
        %v2815 = vunpack.c.l.b16 %v2707
        %v2816 = vunpack.c.l.b16 %v2708
        %v2817 = vunpack.c.l.b16 %v2709
        %v2818 = vunpack.c.l.b16 %v2710
        %v2819 = vunpack.c.l.b16 %v2711
        %v2820 = vunpack.c.l.b16 %v2712
        %v2821 = vunpack.c.l.b16 %v2713
        %v2822 = vunpack.c.l.b16 %v2714
        %v2823 = vunpack.c.l.b16 %v2715
        %v2824 = vunpack.c.l.b16 %v2716
        %v2825 = vunpack.c.l.b16 %v2717
        %v2826 = vunpack.c.l.b16 %v2718
        %v2827 = vunpack.c.l.b16 %v2719
        %v2828 = vunpack.c.l.b16 %v2720
        %v2829 = vunpack.c.l.b16 %v2721
        %v2830 = vunpack.c.l.b16 %v2722
        %v2831 = vunpack.c.l.b16 %v2723
        %v2832 = vunpack.c.l.b16 %v2724
        %v2833 = vunpack.c.l.b16 %v2725
        %v2834 = vunpack.c.l.b16 %v2726
        %v2835 = vunpack.c.l.b16 %v2727
        %v2836 = vunpack.c.l.b16 %v2728
        %v2837 = vunpack.c.l.b16 %v2729
        %v2838 = vunpack.c.l.b16 %v2730
        %v2839 = vunpack.c.l.b16 %v2731
        %v2840 = vunpack.c.l.b16 %v2732
        %v2841 = vunpack.c.l.b16 %v2733
        %v2842 = vunpack.c.l.b16 %v2734
        %v2843 = vunpack.c.l.b16 %v2735
        %v2844 = vunpack.c.l.b16 %v2736
        %v2845 = vunpack.c.l.b16 %v2737
        %v2846 = vunpack.c.l.b16 %v2738
        %v2847 = vunpack.c.l.b16 %v2739
        %v2848 = vunpack.c.l.b16 %v2740
        %v2849 = vunpack.c.l.b16 %v2741
        %v2850 = vunpack.c.l.b16 %v2742
        %v2851 = vunpack.c.l.b16 %v2743
        %v2852 = vunpack.c.l.b16 %v2744
        %v2853 = vpack.c.b16 %v2804, %v2803
        %v2854 = vpack.c.b16 %v2806, %v2805
        %v2855 = vpack.c.b16 %v2808, %v2807
        %v2856 = vpack.c.b16 %v2810, %v2809
        %v2857 = vpack.c.b16 %v2812, %v2811
        %v2858 = vpack.c.b16 %v2814, %v2813
        %v2859 = vpack.c.b16 %v2816, %v2815
        %v2860 = vpack.c.b16 %v2818, %v2817
        %v2861 = vpack.c.b16 %v2820, %v2819
        %v2862 = vpack.c.b16 %v2822, %v2821
        %v2863 = vpack.c.b16 %v2824, %v2823
        %v2864 = vpack.c.b16 %v2826, %v2825
        %v2865 = vpack.c.b16 %v2828, %v2827
        %v2866 = vpack.c.b16 %v2830, %v2829
        %v2867 = vpack.c.b16 %v2832, %v2831
        %v2868 = vpack.c.b16 %v2834, %v2833
        %v2869 = vpack.c.b16 %v2836, %v2835
        %v2870 = vpack.c.b16 %v2838, %v2837
        %v2871 = vpack.c.b16 %v2840, %v2839
        %v2872 = vpack.c.b16 %v2842, %v2841
        %v2873 = vpack.c.b16 %v2844, %v2843
        %v2874 = vpack.c.b16 %v2846, %v2845
        %v2875 = vpack.c.b16 %v2848, %v2847
        %v2876 = vpack.c.b16 %v2850, %v2849
        %v2877 = vpack.c.b16 %v2852, %v2851
        %2903 = vmatprep.subr.bf16.mxu0 0
        %2904 = vmatpush1.bf16.msra.mxu0 %v2745
        %2905 = vmatprep.subr.bf16.mxu0 0
        %2906 = vmatpush1.bf16.msra.mxu0 %v2746
        %2907 = vmatprep.subr.bf16.mxu0 0
        %2908 = vmatpush1.bf16.msra.mxu0 %v2747
        %2909 = vmatprep.subr.bf16.mxu0 0
        %2910 = vmatpush1.bf16.msra.mxu0 %v2748
        %2911 = vmatprep.subr.bf16.mxu0 0
        %2912 = vmatpush1.bf16.msra.mxu0 %v2749
        %2913 = vmatprep.subr.bf16.mxu0 0
        %2914 = vmatpush1.bf16.msra.mxu0 %v2750
        %2915 = vmatprep.subr.bf16.mxu0 0
        %2916 = vmatpush1.bf16.msra.mxu0 %v2751
        %2917 = vmatprep.subr.bf16.mxu0 0
        %2918 = vmatpush1.bf16.msra.mxu0 %v2752
        %2919 = vmatprep.subr.bf16.mxu0 0
        %2920 = vmatpush1.bf16.msra.mxu0 0
        %2921 = vmatprep.subr.bf16.mxu0 0
        %2922 = vmatpush1.bf16.msra.mxu0 0
        %2923 = vmatprep.subr.bf16.mxu0 0
        %2924 = vmatpush1.bf16.msra.mxu0 0
        %2925 = vmatprep.subr.bf16.mxu0 0
        %2926 = vmatpush1.bf16.msra.mxu0 0
        %2927 = vmatprep.subr.bf16.mxu0 0
        %2928 = vmatpush1.bf16.msra.mxu0 0
        %2929 = vmatprep.subr.bf16.mxu0 0
        %2930 = vmatpush1.bf16.msra.mxu0 0
        %2931 = vmatprep.subr.bf16.mxu0 0
        %2932 = vmatpush1.bf16.msra.mxu0 0
        %2933 = vmatprep.subr.bf16.mxu0 0
        %2934 = vmatpush1.bf16.msra.mxu0 0
        %2935 = vmatprep.mubr.bf16.mxu0 0
        %2936 = vmatmul.mubr.bf16.gmra.mrb[0].mxu0 %v2853
        %v2937 = vpop.f32.mrb[0].mxu0
        %v2938 = vadd.f32 0.0, %v2937
        %v2939 = vpop.f32.mrb[0].mxu0
        %v2940 = vpop.f32.mrb[0].mxu0
        %v2941 = vadd.f32 0.0, %v2940
        %v2942 = vpop.f32.mrb[0].mxu0
        %2943 = vmatprep.mubr.bf16.mxu0 0
        %2944 = vmatmul.mubr.bf16.gmra.mrb[0].mxu0 %v2854
        %v2945 = vpop.f32.mrb[0].mxu0
        %v2946 = vadd.f32 0.0, %v2945
        %v2947 = vpop.f32.mrb[0].mxu0
        %v2948 = vpop.f32.mrb[0].mxu0
        %v2949 = vadd.f32 0.0, %v2948
        %v2950 = vpop.f32.mrb[0].mxu0
        %2951 = vmatprep.mubr.bf16.mxu0 0
        %2952 = vmatmul.mubr.bf16.gmra.mrb[0].mxu0 %v2855
        %v2953 = vpop.f32.mrb[0].mxu0
        %v2954 = vadd.f32 0.0, %v2953
        %v2955 = vpop.f32.mrb[0].mxu0
        %v2956 = vpop.f32.mrb[0].mxu0
        %v2957 = vadd.f32 0.0, %v2956
        %v2958 = vpop.f32.mrb[0].mxu0
        %2959 = vmatprep.mubr.bf16.mxu0 0
        %2960 = vmatmul.mubr.bf16.gmra.mrb[0].mxu0 %v2856
        %v2961 = vpop.f32.mrb[0].mxu0
        %v2962 = vadd.f32 0.0, %v2961
        %v2963 = vpop.f32.mrb[0].mxu0
        %v2964 = vpop.f32.mrb[0].mxu0
        %v2965 = vadd.f32 0.0, %v2964
        %v2966 = vpop.f32.mrb[0].mxu0
        %2967 = vmatprep.mubr.bf16.mxu0 0
        %2968 = vmatmul.mubr.bf16.gmra.mrb[0].mxu0 %v2857
        %v2969 = vpop.f32.mrb[0].mxu0
        %v2970 = vadd.f32 0.0, %v2969
        %v2971 = vpop.f32.mrb[0].mxu0
        %v2972 = vpop.f32.mrb[0].mxu0
        %v2973 = vadd.f32 0.0, %v2972
        %v2974 = vpop.f32.mrb[0].mxu0
        %2975 = vmatprep.mubr.bf16.mxu0 0
        %2976 = vmatmul.mubr.bf16.gmra.mrb[0].mxu0 %v2858
        %v2977 = vpop.f32.mrb[0].mxu0
        %v2978 = vadd.f32 0.0, %v2977
        %v2979 = vpop.f32.mrb[0].mxu0
        %v2980 = vpop.f32.mrb[0].mxu0
        %v2981 = vadd.f32 0.0, %v2980
        %v2982 = vpop.f32.mrb[0].mxu0
        %2983 = vmatprep.mubr.bf16.mxu0 0
        %2984 = vmatmul.mubr.bf16.gmra.mrb[0].mxu0 %v2859
        %v2985 = vpop.f32.mrb[0].mxu0
        %v2986 = vadd.f32 0.0, %v2985
        %v2987 = vpop.f32.mrb[0].mxu0
        %v2988 = vpop.f32.mrb[0].mxu0
        %v2989 = vadd.f32 0.0, %v2988
        %v2990 = vpop.f32.mrb[0].mxu0
        %2991 = vmatprep.mubr.bf16.mxu0 0
        %2992 = vmatmul.mubr.bf16.gmra.mrb[0].mxu0 %v2860
        %v2993 = vpop.f32.mrb[0].mxu0
        %v2994 = vadd.f32 0.0, %v2993
        %v2995 = vpop.f32.mrb[0].mxu0
        %v2996 = vpop.f32.mrb[0].mxu0
        %v2997 = vadd.f32 0.0, %v2996
        %v2998 = vpop.f32.mrb[0].mxu0
        %2999 = vmatprep.mubr.bf16.mxu0 0
        %3000 = vmatmul.mubr.bf16.gmra.mrb[0].mxu0 %v2861
        %v3001 = vpop.f32.mrb[0].mxu0
        %v3002 = vadd.f32 0.0, %v3001
        %v3003 = vpop.f32.mrb[0].mxu0
        %v3004 = vpop.f32.mrb[0].mxu0
        %v3005 = vadd.f32 0.0, %v3004
        %v3006 = vpop.f32.mrb[0].mxu0
        %3007 = vmatprep.mubr.bf16.mxu0 0
        %3008 = vmatmul.mubr.bf16.gmra.mrb[0].mxu0 %v2862
        %v3009 = vpop.f32.mrb[0].mxu0
        %v3010 = vadd.f32 0.0, %v3009
        %v3011 = vpop.f32.mrb[0].mxu0
        %v3012 = vpop.f32.mrb[0].mxu0
        %v3013 = vadd.f32 0.0, %v3012
        %v3014 = vpop.f32.mrb[0].mxu0
        %3015 = vmatprep.mubr.bf16.mxu0 0
        %3016 = vmatmul.mubr.bf16.gmra.mrb[0].mxu0 %v2863
        %v3017 = vpop.f32.mrb[0].mxu0
        %v3018 = vadd.f32 0.0, %v3017
        %v3019 = vpop.f32.mrb[0].mxu0
        %v3020 = vpop.f32.mrb[0].mxu0
        %v3021 = vadd.f32 0.0, %v3020
        %v3022 = vpop.f32.mrb[0].mxu0
        %3023 = vmatprep.mubr.bf16.mxu0 0
        %3024 = vmatmul.mubr.bf16.gmra.mrb[0].mxu0 %v2864
        %v3025 = vpop.f32.mrb[0].mxu0
        %v3026 = vadd.f32 0.0, %v3025
        %v3027 = vpop.f32.mrb[0].mxu0
        %v3028 = vpop.f32.mrb[0].mxu0
        %v3029 = vadd.f32 0.0, %v3028
        %v3030 = vpop.f32.mrb[0].mxu0
        %3031 = vmatprep.mubr.bf16.mxu0 0
        %3032 = vmatmul.mubr.bf16.gmra.mrb[0].mxu0 %v2865
        %v3033 = vpop.f32.mrb[0].mxu0
        %v3034 = vadd.f32 0.0, %v3033
        %v3035 = vpop.f32.mrb[0].mxu0
        %v3036 = vpop.f32.mrb[0].mxu0
        %v3037 = vadd.f32 0.0, %v3036
        %v3038 = vpop.f32.mrb[0].mxu0
        %3039 = vmatprep.mubr.bf16.mxu0 0
        %3040 = vmatmul.mubr.bf16.gmra.mrb[0].mxu0 %v2866
        %v3041 = vpop.f32.mrb[0].mxu0
        %v3042 = vadd.f32 0.0, %v3041
        %v3043 = vpop.f32.mrb[0].mxu0
        %v3044 = vpop.f32.mrb[0].mxu0
        %v3045 = vadd.f32 0.0, %v3044
        %v3046 = vpop.f32.mrb[0].mxu0
        %3047 = vmatprep.mubr.bf16.mxu0 0
        %3048 = vmatmul.mubr.bf16.gmra.mrb[0].mxu0 %v2867
        %v3049 = vpop.f32.mrb[0].mxu0
        %v3050 = vadd.f32 0.0, %v3049
        %v3051 = vpop.f32.mrb[0].mxu0
        %v3052 = vpop.f32.mrb[0].mxu0
        %v3053 = vadd.f32 0.0, %v3052
        %v3054 = vpop.f32.mrb[0].mxu0
        %3055 = vmatprep.mubr.bf16.mxu0 0
        %3056 = vmatmul.mubr.bf16.gmra.mrb[0].mxu0 %v2868
        %v3057 = vpop.f32.mrb[0].mxu0
        %v3058 = vadd.f32 0.0, %v3057
        %v3059 = vpop.f32.mrb[0].mxu0
        %v3060 = vpop.f32.mrb[0].mxu0
        %v3061 = vadd.f32 0.0, %v3060
        %v3062 = vpop.f32.mrb[0].mxu0
        %3063 = vmatprep.mubr.bf16.mxu0 0
        %3064 = vmatmul.mubr.bf16.gmra.mrb[0].mxu0 %v2869
        %v3065 = vpop.f32.mrb[0].mxu0
        %v3066 = vadd.f32 0.0, %v3065
        %v3067 = vpop.f32.mrb[0].mxu0
        %v3068 = vpop.f32.mrb[0].mxu0
        %v3069 = vadd.f32 0.0, %v3068
        %v3070 = vpop.f32.mrb[0].mxu0
        %3071 = vmatprep.mubr.bf16.mxu0 0
        %3072 = vmatmul.mubr.bf16.gmra.mrb[0].mxu0 %v2870
        %v3073 = vpop.f32.mrb[0].mxu0
        %v3074 = vadd.f32 0.0, %v3073
        %v3075 = vpop.f32.mrb[0].mxu0
        %v3076 = vpop.f32.mrb[0].mxu0
        %v3077 = vadd.f32 0.0, %v3076
        %v3078 = vpop.f32.mrb[0].mxu0
        %3079 = vmatprep.mubr.bf16.mxu0 0
        %3080 = vmatmul.mubr.bf16.gmra.mrb[0].mxu0 %v2871
        %v3081 = vpop.f32.mrb[0].mxu0
        %v3082 = vadd.f32 0.0, %v3081
        %v3083 = vpop.f32.mrb[0].mxu0
        %v3084 = vpop.f32.mrb[0].mxu0
        %v3085 = vadd.f32 0.0, %v3084
        %v3086 = vpop.f32.mrb[0].mxu0
        %3087 = vmatprep.mubr.bf16.mxu0 0
        %3088 = vmatmul.mubr.bf16.gmra.mrb[0].mxu0 %v2872
        %v3089 = vpop.f32.mrb[0].mxu0
        %v3090 = vadd.f32 0.0, %v3089
        %v3091 = vpop.f32.mrb[0].mxu0
        %v3092 = vpop.f32.mrb[0].mxu0
        %v3093 = vadd.f32 0.0, %v3092
        %v3094 = vpop.f32.mrb[0].mxu0
        %3095 = vmatprep.mubr.bf16.mxu0 0
        %3096 = vmatmul.mubr.bf16.gmra.mrb[0].mxu0 %v2873
        %v3097 = vpop.f32.mrb[0].mxu0
        %v3098 = vadd.f32 0.0, %v3097
        %v3099 = vpop.f32.mrb[0].mxu0
        %v3100 = vpop.f32.mrb[0].mxu0
        %v3101 = vadd.f32 0.0, %v3100
        %v3102 = vpop.f32.mrb[0].mxu0
        %3103 = vmatprep.mubr.bf16.mxu0 0
        %3104 = vmatmul.mubr.bf16.gmra.mrb[0].mxu0 %v2874
        %v3105 = vpop.f32.mrb[0].mxu0
        %v3106 = vadd.f32 0.0, %v3105
        %v3107 = vpop.f32.mrb[0].mxu0
        %v3108 = vpop.f32.mrb[0].mxu0
        %v3109 = vadd.f32 0.0, %v3108
        %v3110 = vpop.f32.mrb[0].mxu0
        %3111 = vmatprep.mubr.bf16.mxu0 0
        %3112 = vmatmul.mubr.bf16.gmra.mrb[0].mxu0 %v2875
        %v3113 = vpop.f32.mrb[0].mxu0
        %v3114 = vadd.f32 0.0, %v3113
        %v3115 = vpop.f32.mrb[0].mxu0
        %v3116 = vpop.f32.mrb[0].mxu0
        %v3117 = vadd.f32 0.0, %v3116
        %v3118 = vpop.f32.mrb[0].mxu0
        %3119 = vmatprep.mubr.bf16.mxu0 0
        %3120 = vmatmul.mubr.bf16.gmra.mrb[0].mxu0 %v2876
        %v3121 = vpop.f32.mrb[0].mxu0
        %v3122 = vadd.f32 0.0, %v3121
        %v3123 = vpop.f32.mrb[0].mxu0
        %v3124 = vpop.f32.mrb[0].mxu0
        %v3125 = vadd.f32 0.0, %v3124
        %v3126 = vpop.f32.mrb[0].mxu0
        %3127 = vmatprep.mubr.bf16.mxu0 0
        %3128 = vmatmul.mubr.bf16.gmra.mrb[0].mxu0 %v2877
        %v3129 = vpop.f32.mrb[0].mxu0
        %v3130 = vadd.f32 0.0, %v3129
        %v3131 = vpop.f32.mrb[0].mxu0
        %v3132 = vpop.f32.mrb[0].mxu0
        %v3133 = vadd.f32 0.0, %v3132
        %v3134 = vpop.f32.mrb[0].mxu0
        %3135 = vdwg.mxu0
        %v3136 = vld [vmem:[%s5] sm:$0xff]
        %v3137 = vld [vmem:[%s5 + $0x8] sm:$0xff]
        %v3138 = vld [vmem:[%s5 + $0x10] sm:$0xff]
        %v3139 = vld [vmem:[%s5 + $0x18] sm:$0xff]
        %v3140 = vld [vmem:[%s5 + $0x20] sm:$0xff]
        %v3141 = vld [vmem:[%s5 + $0x28] sm:$0xff]
        %v3142 = vld [vmem:[%s5 + $0x30] sm:$0xff]
        %v3143 = vld [vmem:[%s5 + $0x38] sm:$0xff]
        %v3144 = vld [vmem:[%s5 + $0x40] sm:$0xff]
        %v3145 = vld [vmem:[%s5 + $0x48] sm:$0xff]
        %v3146 = vld [vmem:[%s5 + $0x50] sm:$0xff]
        %v3147 = vld [vmem:[%s5 + $0x58] sm:$0xff]
        %v3148 = vld [vmem:[%s5 + $0x60] sm:$0xff]
        %v3149 = vld [vmem:[%s5 + $0x68] sm:$0xff]
        %v3150 = vld [vmem:[%s5 + $0x70] sm:$0xff]
        %v3151 = vld [vmem:[%s5 + $0x78] sm:$0xff]
        %v3152 = vld [vmem:[%s5 + $0x80] sm:$0xff]
        %v3153 = vld [vmem:[%s5 + $0x88] sm:$0xff]
        %v3154 = vld [vmem:[%s5 + $0x90] sm:$0xff]
        %v3155 = vld [vmem:[%s5 + $0x98] sm:$0xff]
        %v3156 = vld [vmem:[%s5 + $0xa0] sm:$0xff]
        %v3157 = vld [vmem:[%s5 + $0xa8] sm:$0xff]
        %v3158 = vld [vmem:[%s5 + $0xb0] sm:$0xff]
        %v3159 = vld [vmem:[%s5 + $0xb8] sm:$0xff]
        %v3160 = vld [vmem:[%s5 + $0xc0] sm:$0xff]
        %v3161 = vld [vmem:[%s5 + $0xc8] sm:$0xff]
        %v3162 = vld [vmem:[%s5 + $0xd0] sm:$0xff]
        %v3163 = vld [vmem:[%s5 + $0xd8] sm:$0xff]
        %v3164 = vld [vmem:[%s5 + $0xe0] sm:$0xff]
        %v3165 = vld [vmem:[%s5 + $0xe8] sm:$0xff]
        %v3166 = vld [vmem:[%s5 + $0xf0] sm:$0xff]
        %v3167 = vld [vmem:[%s5 + $0xf8] sm:$0xff]
        %v3168 = vld [vmem:[%s5 + $0x100] sm:$0xff]
        %v3169 = vld [vmem:[%s5 + $0x108] sm:$0xff]
        %v3170 = vld [vmem:[%s5 + $0x110] sm:$0xff]
        %v3171 = vld [vmem:[%s5 + $0x118] sm:$0xff]
        %v3172 = vld [vmem:[%s5 + $0x120] sm:$0xff]
        %v3173 = vld [vmem:[%s5 + $0x128] sm:$0xff]
        %v3174 = vld [vmem:[%s5 + $0x130] sm:$0xff]
        %v3175 = vld [vmem:[%s5 + $0x138] sm:$0xff]
        %v3176 = vld [vmem:[%s5 + $0x140] sm:$0xff]
        %v3177 = vld [vmem:[%s5 + $0x148] sm:$0xff]
        %v3178 = vld [vmem:[%s5 + $0x150] sm:$0xff]
        %v3179 = vld [vmem:[%s5 + $0x158] sm:$0xff]
        %v3180 = vld [vmem:[%s5 + $0x160] sm:$0xff]
        %v3181 = vld [vmem:[%s5 + $0x168] sm:$0xff]
        %v3182 = vld [vmem:[%s5 + $0x170] sm:$0xff]
        %v3183 = vld [vmem:[%s5 + $0x178] sm:$0xff]
        %v3184 = vld [vmem:[%s5 + $0x180] sm:$0xff]
        %v3185 = vld [vmem:[%s5 + $0x188] sm:$0xff]
        %v3186 = vmul.f32 %v2938, %v3136
        %v3187 = vmul.f32 %v2941, %v3137
        %v3188 = vmul.f32 %v2946, %v3138
        %v3189 = vmul.f32 %v2949, %v3139
        %v3190 = vmul.f32 %v2954, %v3140
        %v3191 = vmul.f32 %v2957, %v3141
        %v3192 = vmul.f32 %v2962, %v3142
        %v3193 = vmul.f32 %v2965, %v3143
        %v3194 = vmul.f32 %v2970, %v3144
        %v3195 = vmul.f32 %v2973, %v3145
        %v3196 = vmul.f32 %v2978, %v3146
        %v3197 = vmul.f32 %v2981, %v3147
        %v3198 = vmul.f32 %v2986, %v3148
        %v3199 = vmul.f32 %v2989, %v3149
        %v3200 = vmul.f32 %v2994, %v3150
        %v3201 = vmul.f32 %v2997, %v3151
        %v3202 = vmul.f32 %v3002, %v3152
        %v3203 = vmul.f32 %v3005, %v3153
        %v3204 = vmul.f32 %v3010, %v3154
        %v3205 = vmul.f32 %v3013, %v3155
        %v3206 = vmul.f32 %v3018, %v3156
        %v3207 = vmul.f32 %v3021, %v3157
        %v3208 = vmul.f32 %v3026, %v3158
        %v3209 = vmul.f32 %v3029, %v3159
        %v3210 = vmul.f32 %v3034, %v3160
        %v3211 = vmul.f32 %v3037, %v3161
        %v3212 = vmul.f32 %v3042, %v3162
        %v3213 = vmul.f32 %v3045, %v3163
        %v3214 = vmul.f32 %v3050, %v3164
        %v3215 = vmul.f32 %v3053, %v3165
        %v3216 = vmul.f32 %v3058, %v3166
        %v3217 = vmul.f32 %v3061, %v3167
        %v3218 = vmul.f32 %v3066, %v3168
        %v3219 = vmul.f32 %v3069, %v3169
        %v3220 = vmul.f32 %v3074, %v3170
        %v3221 = vmul.f32 %v3077, %v3171
        %v3222 = vmul.f32 %v3082, %v3172
        %v3223 = vmul.f32 %v3085, %v3173
        %v3224 = vmul.f32 %v3090, %v3174
        %v3225 = vmul.f32 %v3093, %v3175
        %v3226 = vmul.f32 %v3098, %v3176
        %v3227 = vmul.f32 %v3101, %v3177
        %v3228 = vmul.f32 %v3106, %v3178
        %v3229 = vmul.f32 %v3109, %v3179
        %v3230 = vmul.f32 %v3114, %v3180
        %v3231 = vmul.f32 %v3117, %v3181
        %v3232 = vmul.f32 %v3122, %v3182
        %v3233 = vmul.f32 %v3125, %v3183
        %v3234 = vmul.f32 %v3130, %v3184
        %v3235 = vmul.f32 %v3133, %v3185
        %3236 = vst [vmem:[#allocation5] sm:$0xff] %v3186
        %3237 = vst [vmem:[#allocation5 + $0x8] sm:$0xff] %v3187
        %3238 = vst [vmem:[#allocation5 + $0x10] sm:$0xff] %v3188
        %3239 = vst [vmem:[#allocation5 + $0x18] sm:$0xff] %v3189
        %3240 = vst [vmem:[#allocation5 + $0x20] sm:$0xff] %v3190
        %3241 = vst [vmem:[#allocation5 + $0x28] sm:$0xff] %v3191
        %3242 = vst [vmem:[#allocation5 + $0x30] sm:$0xff] %v3192
        %3243 = vst [vmem:[#allocation5 + $0x38] sm:$0xff] %v3193
        %3244 = vst [vmem:[#allocation5 + $0x40] sm:$0xff] %v3194
        %3245 = vst [vmem:[#allocation5 + $0x48] sm:$0xff] %v3195
        %3246 = vst [vmem:[#allocation5 + $0x50] sm:$0xff] %v3196
        %3247 = vst [vmem:[#allocation5 + $0x58] sm:$0xff] %v3197
        %3248 = vst [vmem:[#allocation5 + $0x60] sm:$0xff] %v3198
        %3249 = vst [vmem:[#allocation5 + $0x68] sm:$0xff] %v3199
        %3250 = vst [vmem:[#allocation5 + $0x70] sm:$0xff] %v3200
        %3251 = vst [vmem:[#allocation5 + $0x78] sm:$0xff] %v3201
        %3252 = vst [vmem:[#allocation5 + $0x80] sm:$0xff] %v3202
        %3253 = vst [vmem:[#allocation5 + $0x88] sm:$0xff] %v3203
        %3254 = vst [vmem:[#allocation5 + $0x90] sm:$0xff] %v3204
        %3255 = vst [vmem:[#allocation5 + $0x98] sm:$0xff] %v3205
        %3256 = vst [vmem:[#allocation5 + $0xa0] sm:$0xff] %v3206
        %3257 = vst [vmem:[#allocation5 + $0xa8] sm:$0xff] %v3207
        %3258 = vst [vmem:[#allocation5 + $0xb0] sm:$0xff] %v3208
        %3259 = vst [vmem:[#allocation5 + $0xb8] sm:$0xff] %v3209
        %3260 = vst [vmem:[#allocation5 + $0xc0] sm:$0xff] %v3210
        %3261 = vst [vmem:[#allocation5 + $0xc8] sm:$0xff] %v3211
        %3262 = vst [vmem:[#allocation5 + $0xd0] sm:$0xff] %v3212
        %3263 = vst [vmem:[#allocation5 + $0xd8] sm:$0xff] %v3213
        %3264 = vst [vmem:[#allocation5 + $0xe0] sm:$0xff] %v3214
        %3265 = vst [vmem:[#allocation5 + $0xe8] sm:$0xff] %v3215
        %3266 = vst [vmem:[#allocation5 + $0xf0] sm:$0xff] %v3216
        %3267 = vst [vmem:[#allocation5 + $0xf8] sm:$0xff] %v3217
        %3268 = vst [vmem:[#allocation5 + $0x100] sm:$0xff] %v3218
        %3269 = vst [vmem:[#allocation5 + $0x108] sm:$0xff] %v3219
        %3270 = vst [vmem:[#allocation5 + $0x110] sm:$0xff] %v3220
        %3271 = vst [vmem:[#allocation5 + $0x118] sm:$0xff] %v3221
        %3272 = vst [vmem:[#allocation5 + $0x120] sm:$0xff] %v3222
        %3273 = vst [vmem:[#allocation5 + $0x128] sm:$0xff] %v3223
        %3274 = vst [vmem:[#allocation5 + $0x130] sm:$0xff] %v3224
        %3275 = vst [vmem:[#allocation5 + $0x138] sm:$0xff] %v3225
        %3276 = vst [vmem:[#allocation5 + $0x140] sm:$0xff] %v3226
        %3277 = vst [vmem:[#allocation5 + $0x148] sm:$0xff] %v3227
        %3278 = vst [vmem:[#allocation5 + $0x150] sm:$0xff] %v3228
        %3279 = vst [vmem:[#allocation5 + $0x158] sm:$0xff] %v3229
        %3280 = vst [vmem:[#allocation5 + $0x160] sm:$0xff] %v3230
        %3281 = vst [vmem:[#allocation5 + $0x168] sm:$0xff] %v3231
        %3282 = vst [vmem:[#allocation5 + $0x170] sm:$0xff] %v3232
        %3283 = vst [vmem:[#allocation5 + $0x178] sm:$0xff] %v3233
        %3284 = vst [vmem:[#allocation5 + $0x180] sm:$0xff] %v3234
        %3285 = vst [vmem:[#allocation5 + $0x188] sm:$0xff] %v3235
        %v3286 = vld [vmem:[#allocation5] sm:$0xff]
        %v3287 = vld [vmem:[#allocation5 + $0x8] sm:$0xff]
        %v3288 = vld [vmem:[#allocation3] sm:$0xff]
        %v3289 = vld [vmem:[#allocation3 + $0x10] sm:$0xff]
        %v3290 = vmul.f32 %v3286, %v3288
        %v3291 = vmul.f32 %v3287, %v3289
        %v3292 = vpack.c.bf16 %v3291, %v3290
        %v3294 = vunpack.c.l.b16 %v3292
        %v3295 = vunpack.c.h.b16 %v3292
        %v3296 = vpack.c.b16 %v3294, %v3294
        %v3297 = vpack.c.b16 %v3295, %v3295
        %3300 = vst [vmem:[#allocation4] sm:$0xf] %v3296
        %3301 = vst [vmem:[#allocation4 + $0x4] sm:$0xf] %v3297
        %v3302 = vld [vmem:[#allocation5 + $0x10] sm:$0xff]
        %v3303 = vld [vmem:[#allocation5 + $0x18] sm:$0xff]
        %v3304 = vld [vmem:[#allocation3] sm:$0xff]
        %v3305 = vld [vmem:[#allocation3 + $0x8] sm:$0xff]
        %v3306 = vld [vmem:[#allocation3 + $0x10] sm:$0xff]
        %v3307 = vld [vmem:[#allocation3 + $0x18] sm:$0xff]
        %3312 = vrot.lane.b32.xlu0 %v3304, 127
        %v3313 = vpop.permute.xlu0 %3312
        %3314 = vrot.lane.b32.xlu0 %v3305, 127
        %v3315 = vpop.permute.xlu0 %3314
        %3316 = vrot.lane.b32.xlu0 %v3306, 127
        %v3317 = vpop.permute.xlu0 %3316
        %3318 = vrot.lane.b32.xlu0 %v3307, 127
        %v3319 = vpop.permute.xlu0 %3318
        %v3320 = vsel %vm1076, %v3313, %v3315
        %v3321 = vsel %vm1076, %v3317, %v3319
        %v3324 = vmul.f32 %v3302, %v3320
        %v3325 = vmul.f32 %v3303, %v3321
        %v3326 = vpack.c.bf16 %v3325, %v3324
        %v3328 = vunpack.c.l.b16 %v3326
        %v3329 = vunpack.c.h.b16 %v3326
        %v3330 = vpack.c.b16 %v3328, %v3328
        %v3331 = vpack.c.b16 %v3329, %v3329
        %3334 = vst [vmem:[#allocation4 + $0x8] sm:$0xf] %v3330
        %3335 = vst [vmem:[#allocation4 + $0xc] sm:$0xf] %v3331
        %v3336 = vld [vmem:[#allocation5 + $0x20] sm:$0xff]
        %v3337 = vld [vmem:[#allocation5 + $0x28] sm:$0xff]
        %v3338 = vld [vmem:[#allocation3] sm:$0xff]
        %v3339 = vld [vmem:[#allocation3 + $0x8] sm:$0xff]
        %v3340 = vld [vmem:[#allocation3 + $0x10] sm:$0xff]
        %v3341 = vld [vmem:[#allocation3 + $0x18] sm:$0xff]
        %3346 = vrot.lane.b32.xlu0 %v3338, 126
        %v3347 = vpop.permute.xlu0 %3346
        %3348 = vrot.lane.b32.xlu0 %v3339, 126
        %v3349 = vpop.permute.xlu0 %3348
        %3350 = vrot.lane.b32.xlu0 %v3340, 126
        %v3351 = vpop.permute.xlu0 %3350
        %3352 = vrot.lane.b32.xlu0 %v3341, 126
        %v3353 = vpop.permute.xlu0 %3352
        %v3354 = vsel %vm1111, %v3347, %v3349
        %v3355 = vsel %vm1111, %v3351, %v3353
        %v3358 = vmul.f32 %v3336, %v3354
        %v3359 = vmul.f32 %v3337, %v3355
        %v3360 = vpack.c.bf16 %v3359, %v3358
        %v3362 = vunpack.c.l.b16 %v3360
        %v3363 = vunpack.c.h.b16 %v3360
        %v3364 = vpack.c.b16 %v3362, %v3362
        %v3365 = vpack.c.b16 %v3363, %v3363
        %3368 = vst [vmem:[#allocation4 + $0x10] sm:$0xf] %v3364
        %3369 = vst [vmem:[#allocation4 + $0x14] sm:$0xf] %v3365
        %v3370 = vld [vmem:[#allocation5 + $0x30] sm:$0xff]
        %v3371 = vld [vmem:[#allocation5 + $0x38] sm:$0xff]
        %v3372 = vld [vmem:[#allocation3] sm:$0xff]
        %v3373 = vld [vmem:[#allocation3 + $0x8] sm:$0xff]
        %v3374 = vld [vmem:[#allocation3 + $0x10] sm:$0xff]
        %v3375 = vld [vmem:[#allocation3 + $0x18] sm:$0xff]
        %3380 = vrot.lane.b32.xlu0 %v3372, 125
        %v3381 = vpop.permute.xlu0 %3380
        %3382 = vrot.lane.b32.xlu0 %v3373, 125
        %v3383 = vpop.permute.xlu0 %3382
        %3384 = vrot.lane.b32.xlu0 %v3374, 125
        %v3385 = vpop.permute.xlu0 %3384
        %3386 = vrot.lane.b32.xlu0 %v3375, 125
        %v3387 = vpop.permute.xlu0 %3386
        %v3388 = vsel %vm1146, %v3381, %v3383
        %v3389 = vsel %vm1146, %v3385, %v3387
        %v3392 = vmul.f32 %v3370, %v3388
        %v3393 = vmul.f32 %v3371, %v3389
        %v3394 = vpack.c.bf16 %v3393, %v3392
        %v3396 = vunpack.c.l.b16 %v3394
        %v3397 = vunpack.c.h.b16 %v3394
        %v3398 = vpack.c.b16 %v3396, %v3396
        %v3399 = vpack.c.b16 %v3397, %v3397
        %3402 = vst [vmem:[#allocation4 + $0x18] sm:$0xf] %v3398
        %3403 = vst [vmem:[#allocation4 + $0x1c] sm:$0xf] %v3399
        %v3404 = vld [vmem:[#allocation5 + $0x40] sm:$0xff]
        %v3405 = vld [vmem:[#allocation5 + $0x48] sm:$0xff]
        %v3406 = vld [vmem:[#allocation3] sm:$0xff]
        %v3407 = vld [vmem:[#allocation3 + $0x8] sm:$0xff]
        %v3408 = vld [vmem:[#allocation3 + $0x10] sm:$0xff]
        %v3409 = vld [vmem:[#allocation3 + $0x18] sm:$0xff]
        %3414 = vrot.lane.b32.xlu0 %v3406, 124
        %v3415 = vpop.permute.xlu0 %3414
        %3416 = vrot.lane.b32.xlu0 %v3407, 124
        %v3417 = vpop.permute.xlu0 %3416
        %3418 = vrot.lane.b32.xlu0 %v3408, 124
        %v3419 = vpop.permute.xlu0 %3418
        %3420 = vrot.lane.b32.xlu0 %v3409, 124
        %v3421 = vpop.permute.xlu0 %3420
        %v3422 = vsel %vm1181, %v3415, %v3417
        %v3423 = vsel %vm1181, %v3419, %v3421
        %v3426 = vmul.f32 %v3404, %v3422
        %v3427 = vmul.f32 %v3405, %v3423
        %v3428 = vpack.c.bf16 %v3427, %v3426
        %v3430 = vunpack.c.l.b16 %v3428
        %v3431 = vunpack.c.h.b16 %v3428
        %v3432 = vpack.c.b16 %v3430, %v3430
        %v3433 = vpack.c.b16 %v3431, %v3431
        %3436 = vst [vmem:[#allocation4 + $0x20] sm:$0xf] %v3432
        %3437 = vst [vmem:[#allocation4 + $0x24] sm:$0xf] %v3433
        %v3438 = vld [vmem:[#allocation5 + $0x50] sm:$0xff]
        %v3439 = vld [vmem:[#allocation5 + $0x58] sm:$0xff]
        %v3440 = vld [vmem:[#allocation3] sm:$0xff]
        %v3441 = vld [vmem:[#allocation3 + $0x8] sm:$0xff]
        %v3442 = vld [vmem:[#allocation3 + $0x10] sm:$0xff]
        %v3443 = vld [vmem:[#allocation3 + $0x18] sm:$0xff]
        %3448 = vrot.lane.b32.xlu0 %v3440, 120
        %v3449 = vpop.permute.xlu0 %3448
        %3450 = vrot.lane.b32.xlu0 %v3441, 120
        %v3451 = vpop.permute.xlu0 %3450
        %3452 = vrot.lane.b32.xlu0 %v3442, 120
        %v3453 = vpop.permute.xlu0 %3452
        %3454 = vrot.lane.b32.xlu0 %v3443, 120
        %v3455 = vpop.permute.xlu0 %3454
        %v3456 = vsel %vm1216, %v3449, %v3451
        %v3457 = vsel %vm1216, %v3453, %v3455
        %v3460 = vmul.f32 %v3438, %v3456
        %v3461 = vmul.f32 %v3439, %v3457
        %v3462 = vpack.c.bf16 %v3461, %v3460
        %v3464 = vunpack.c.l.b16 %v3462
        %v3465 = vunpack.c.h.b16 %v3462
        %v3466 = vpack.c.b16 %v3464, %v3464
        %v3467 = vpack.c.b16 %v3465, %v3465
        %3470 = vst [vmem:[#allocation4 + $0x28] sm:$0xf] %v3466
        %3471 = vst [vmem:[#allocation4 + $0x2c] sm:$0xf] %v3467
        %v3472 = vld [vmem:[#allocation5 + $0x60] sm:$0xff]
        %v3473 = vld [vmem:[#allocation5 + $0x68] sm:$0xff]
        %v3474 = vld [vmem:[#allocation3] sm:$0xff]
        %v3475 = vld [vmem:[#allocation3 + $0x8] sm:$0xff]
        %v3476 = vld [vmem:[#allocation3 + $0x10] sm:$0xff]
        %v3477 = vld [vmem:[#allocation3 + $0x18] sm:$0xff]
        %3482 = vrot.lane.b32.xlu0 %v3474, 119
        %v3483 = vpop.permute.xlu0 %3482
        %3484 = vrot.lane.b32.xlu0 %v3475, 119
        %v3485 = vpop.permute.xlu0 %3484
        %3486 = vrot.lane.b32.xlu0 %v3476, 119
        %v3487 = vpop.permute.xlu0 %3486
        %3488 = vrot.lane.b32.xlu0 %v3477, 119
        %v3489 = vpop.permute.xlu0 %3488
        %v3490 = vsel %vm1251, %v3483, %v3485
        %v3491 = vsel %vm1251, %v3487, %v3489
        %v3494 = vmul.f32 %v3472, %v3490
        %v3495 = vmul.f32 %v3473, %v3491
        %v3496 = vpack.c.bf16 %v3495, %v3494
        %v3498 = vunpack.c.l.b16 %v3496
        %v3499 = vunpack.c.h.b16 %v3496
        %v3500 = vpack.c.b16 %v3498, %v3498
        %v3501 = vpack.c.b16 %v3499, %v3499
        %3504 = vst [vmem:[#allocation4 + $0x30] sm:$0xf] %v3500
        %3505 = vst [vmem:[#allocation4 + $0x34] sm:$0xf] %v3501
        %v3506 = vld [vmem:[#allocation5 + $0x70] sm:$0xff]
        %v3507 = vld [vmem:[#allocation5 + $0x78] sm:$0xff]
        %v3508 = vld [vmem:[#allocation3] sm:$0xff]
        %v3509 = vld [vmem:[#allocation3 + $0x8] sm:$0xff]
        %v3510 = vld [vmem:[#allocation3 + $0x10] sm:$0xff]
        %v3511 = vld [vmem:[#allocation3 + $0x18] sm:$0xff]
        %3516 = vrot.lane.b32.xlu0 %v3508, 118
        %v3517 = vpop.permute.xlu0 %3516
        %3518 = vrot.lane.b32.xlu0 %v3509, 118
        %v3519 = vpop.permute.xlu0 %3518
        %3520 = vrot.lane.b32.xlu0 %v3510, 118
        %v3521 = vpop.permute.xlu0 %3520
        %3522 = vrot.lane.b32.xlu0 %v3511, 118
        %v3523 = vpop.permute.xlu0 %3522
        %v3524 = vsel %vm1286, %v3517, %v3519
        %v3525 = vsel %vm1286, %v3521, %v3523
        %v3528 = vmul.f32 %v3506, %v3524
        %v3529 = vmul.f32 %v3507, %v3525
        %v3530 = vpack.c.bf16 %v3529, %v3528
        %v3532 = vunpack.c.l.b16 %v3530
        %v3533 = vunpack.c.h.b16 %v3530
        %v3534 = vpack.c.b16 %v3532, %v3532
        %v3535 = vpack.c.b16 %v3533, %v3533
        %3538 = vst [vmem:[#allocation4 + $0x38] sm:$0xf] %v3534
        %3539 = vst [vmem:[#allocation4 + $0x3c] sm:$0xf] %v3535
        %v3540 = vld [vmem:[#allocation5 + $0x80] sm:$0xff]
        %v3541 = vld [vmem:[#allocation5 + $0x88] sm:$0xff]
        %v3542 = vld [vmem:[#allocation3] sm:$0xff]
        %v3543 = vld [vmem:[#allocation3 + $0x8] sm:$0xff]
        %v3544 = vld [vmem:[#allocation3 + $0x10] sm:$0xff]
        %v3545 = vld [vmem:[#allocation3 + $0x18] sm:$0xff]
        %3550 = vrot.lane.b32.xlu0 %v3542, 117
        %v3551 = vpop.permute.xlu0 %3550
        %3552 = vrot.lane.b32.xlu0 %v3543, 117
        %v3553 = vpop.permute.xlu0 %3552
        %3554 = vrot.lane.b32.xlu0 %v3544, 117
        %v3555 = vpop.permute.xlu0 %3554
        %3556 = vrot.lane.b32.xlu0 %v3545, 117
        %v3557 = vpop.permute.xlu0 %3556
        %v3558 = vsel %vm1321, %v3551, %v3553
        %v3559 = vsel %vm1321, %v3555, %v3557
        %v3562 = vmul.f32 %v3540, %v3558
        %v3563 = vmul.f32 %v3541, %v3559
        %v3564 = vpack.c.bf16 %v3563, %v3562
        %v3566 = vunpack.c.l.b16 %v3564
        %v3567 = vunpack.c.h.b16 %v3564
        %v3568 = vpack.c.b16 %v3566, %v3566
        %v3569 = vpack.c.b16 %v3567, %v3567
        %3572 = vst [vmem:[#allocation4 + $0x40] sm:$0xf] %v3568
        %3573 = vst [vmem:[#allocation4 + $0x44] sm:$0xf] %v3569
        %v3574 = vld [vmem:[#allocation5 + $0x90] sm:$0xff]
        %v3575 = vld [vmem:[#allocation5 + $0x98] sm:$0xff]
        %v3576 = vld [vmem:[#allocation3] sm:$0xff]
        %v3577 = vld [vmem:[#allocation3 + $0x8] sm:$0xff]
        %v3578 = vld [vmem:[#allocation3 + $0x10] sm:$0xff]
        %v3579 = vld [vmem:[#allocation3 + $0x18] sm:$0xff]
        %3584 = vrot.lane.b32.xlu0 %v3576, 116
        %v3585 = vpop.permute.xlu0 %3584
        %3586 = vrot.lane.b32.xlu0 %v3577, 116
        %v3587 = vpop.permute.xlu0 %3586
        %3588 = vrot.lane.b32.xlu0 %v3578, 116
        %v3589 = vpop.permute.xlu0 %3588
        %3590 = vrot.lane.b32.xlu0 %v3579, 116
        %v3591 = vpop.permute.xlu0 %3590
        %v3592 = vsel %vm1356, %v3585, %v3587
        %v3593 = vsel %vm1356, %v3589, %v3591
        %v3596 = vmul.f32 %v3574, %v3592
        %v3597 = vmul.f32 %v3575, %v3593
        %v3598 = vpack.c.bf16 %v3597, %v3596
        %v3600 = vunpack.c.l.b16 %v3598
        %v3601 = vunpack.c.h.b16 %v3598
        %v3602 = vpack.c.b16 %v3600, %v3600
        %v3603 = vpack.c.b16 %v3601, %v3601
        %3606 = vst [vmem:[#allocation4 + $0x48] sm:$0xf] %v3602
        %3607 = vst [vmem:[#allocation4 + $0x4c] sm:$0xf] %v3603
        %v3608 = vld [vmem:[#allocation5 + $0xa0] sm:$0xff]
        %v3609 = vld [vmem:[#allocation5 + $0xa8] sm:$0xff]
        %v3610 = vld [vmem:[#allocation3] sm:$0xff]
        %v3611 = vld [vmem:[#allocation3 + $0x8] sm:$0xff]
        %v3612 = vld [vmem:[#allocation3 + $0x10] sm:$0xff]
        %v3613 = vld [vmem:[#allocation3 + $0x18] sm:$0xff]
        %3618 = vrot.lane.b32.xlu0 %v3610, 112
        %v3619 = vpop.permute.xlu0 %3618
        %3620 = vrot.lane.b32.xlu0 %v3611, 112
        %v3621 = vpop.permute.xlu0 %3620
        %3622 = vrot.lane.b32.xlu0 %v3612, 112
        %v3623 = vpop.permute.xlu0 %3622
        %3624 = vrot.lane.b32.xlu0 %v3613, 112
        %v3625 = vpop.permute.xlu0 %3624
        %v3626 = vsel %vm1391, %v3619, %v3621
        %v3627 = vsel %vm1391, %v3623, %v3625
        %v3630 = vmul.f32 %v3608, %v3626
        %v3631 = vmul.f32 %v3609, %v3627
        %v3632 = vpack.c.bf16 %v3631, %v3630
        %v3634 = vunpack.c.l.b16 %v3632
        %v3635 = vunpack.c.h.b16 %v3632
        %v3636 = vpack.c.b16 %v3634, %v3634
        %v3637 = vpack.c.b16 %v3635, %v3635
        %3640 = vst [vmem:[#allocation4 + $0x50] sm:$0xf] %v3636
        %3641 = vst [vmem:[#allocation4 + $0x54] sm:$0xf] %v3637
        %v3642 = vld [vmem:[#allocation5 + $0xb0] sm:$0xff]
        %v3643 = vld [vmem:[#allocation5 + $0xb8] sm:$0xff]
        %v3644 = vld [vmem:[#allocation3] sm:$0xff]
        %v3645 = vld [vmem:[#allocation3 + $0x8] sm:$0xff]
        %v3646 = vld [vmem:[#allocation3 + $0x10] sm:$0xff]
        %v3647 = vld [vmem:[#allocation3 + $0x18] sm:$0xff]
        %3652 = vrot.lane.b32.xlu0 %v3644, 111
        %v3653 = vpop.permute.xlu0 %3652
        %3654 = vrot.lane.b32.xlu0 %v3645, 111
        %v3655 = vpop.permute.xlu0 %3654
        %3656 = vrot.lane.b32.xlu0 %v3646, 111
        %v3657 = vpop.permute.xlu0 %3656
        %3658 = vrot.lane.b32.xlu0 %v3647, 111
        %v3659 = vpop.permute.xlu0 %3658
        %v3660 = vsel %vm1426, %v3653, %v3655
        %v3661 = vsel %vm1426, %v3657, %v3659
        %v3664 = vmul.f32 %v3642, %v3660
        %v3665 = vmul.f32 %v3643, %v3661
        %v3666 = vpack.c.bf16 %v3665, %v3664
        %v3668 = vunpack.c.l.b16 %v3666
        %v3669 = vunpack.c.h.b16 %v3666
        %v3670 = vpack.c.b16 %v3668, %v3668
        %v3671 = vpack.c.b16 %v3669, %v3669
        %3674 = vst [vmem:[#allocation4 + $0x58] sm:$0xf] %v3670
        %3675 = vst [vmem:[#allocation4 + $0x5c] sm:$0xf] %v3671
        %v3676 = vld [vmem:[#allocation5 + $0xc0] sm:$0xff]
        %v3677 = vld [vmem:[#allocation5 + $0xc8] sm:$0xff]
        %v3678 = vld [vmem:[#allocation3] sm:$0xff]
        %v3679 = vld [vmem:[#allocation3 + $0x8] sm:$0xff]
        %v3680 = vld [vmem:[#allocation3 + $0x10] sm:$0xff]
        %v3681 = vld [vmem:[#allocation3 + $0x18] sm:$0xff]
        %3686 = vrot.lane.b32.xlu0 %v3678, 110
        %v3687 = vpop.permute.xlu0 %3686
        %3688 = vrot.lane.b32.xlu0 %v3679, 110
        %v3689 = vpop.permute.xlu0 %3688
        %3690 = vrot.lane.b32.xlu0 %v3680, 110
        %v3691 = vpop.permute.xlu0 %3690
        %3692 = vrot.lane.b32.xlu0 %v3681, 110
        %v3693 = vpop.permute.xlu0 %3692
        %v3694 = vsel %vm1461, %v3687, %v3689
        %v3695 = vsel %vm1461, %v3691, %v3693
        %v3698 = vmul.f32 %v3676, %v3694
        %v3699 = vmul.f32 %v3677, %v3695
        %v3700 = vpack.c.bf16 %v3699, %v3698
        %v3702 = vunpack.c.l.b16 %v3700
        %v3703 = vunpack.c.h.b16 %v3700
        %v3704 = vpack.c.b16 %v3702, %v3702
        %v3705 = vpack.c.b16 %v3703, %v3703
        %3708 = vst [vmem:[#allocation4 + $0x60] sm:$0xf] %v3704
        %3709 = vst [vmem:[#allocation4 + $0x64] sm:$0xf] %v3705
        %v3710 = vld [vmem:[#allocation5 + $0xd0] sm:$0xff]
        %v3711 = vld [vmem:[#allocation5 + $0xd8] sm:$0xff]
        %v3712 = vld [vmem:[#allocation3] sm:$0xff]
        %v3713 = vld [vmem:[#allocation3 + $0x8] sm:$0xff]
        %v3714 = vld [vmem:[#allocation3 + $0x10] sm:$0xff]
        %v3715 = vld [vmem:[#allocation3 + $0x18] sm:$0xff]
        %3720 = vrot.lane.b32.xlu0 %v3712, 109
        %v3721 = vpop.permute.xlu0 %3720
        %3722 = vrot.lane.b32.xlu0 %v3713, 109
        %v3723 = vpop.permute.xlu0 %3722
        %3724 = vrot.lane.b32.xlu0 %v3714, 109
        %v3725 = vpop.permute.xlu0 %3724
        %3726 = vrot.lane.b32.xlu0 %v3715, 109
        %v3727 = vpop.permute.xlu0 %3726
        %v3728 = vsel %vm1496, %v3721, %v3723
        %v3729 = vsel %vm1496, %v3725, %v3727
        %v3732 = vmul.f32 %v3710, %v3728
        %v3733 = vmul.f32 %v3711, %v3729
        %v3734 = vpack.c.bf16 %v3733, %v3732
        %v3736 = vunpack.c.l.b16 %v3734
        %v3737 = vunpack.c.h.b16 %v3734
        %v3738 = vpack.c.b16 %v3736, %v3736
        %v3739 = vpack.c.b16 %v3737, %v3737
        %3742 = vst [vmem:[#allocation4 + $0x68] sm:$0xf] %v3738
        %3743 = vst [vmem:[#allocation4 + $0x6c] sm:$0xf] %v3739
        %v3744 = vld [vmem:[#allocation5 + $0xe0] sm:$0xff]
        %v3745 = vld [vmem:[#allocation5 + $0xe8] sm:$0xff]
        %v3746 = vld [vmem:[#allocation3] sm:$0xff]
        %v3747 = vld [vmem:[#allocation3 + $0x8] sm:$0xff]
        %v3748 = vld [vmem:[#allocation3 + $0x10] sm:$0xff]
        %v3749 = vld [vmem:[#allocation3 + $0x18] sm:$0xff]
        %3754 = vrot.lane.b32.xlu0 %v3746, 108
        %v3755 = vpop.permute.xlu0 %3754
        %3756 = vrot.lane.b32.xlu0 %v3747, 108
        %v3757 = vpop.permute.xlu0 %3756
        %3758 = vrot.lane.b32.xlu0 %v3748, 108
        %v3759 = vpop.permute.xlu0 %3758
        %3760 = vrot.lane.b32.xlu0 %v3749, 108
        %v3761 = vpop.permute.xlu0 %3760
        %v3762 = vsel %vm1531, %v3755, %v3757
        %v3763 = vsel %vm1531, %v3759, %v3761
        %v3766 = vmul.f32 %v3744, %v3762
        %v3767 = vmul.f32 %v3745, %v3763
        %v3768 = vpack.c.bf16 %v3767, %v3766
        %v3770 = vunpack.c.l.b16 %v3768
        %v3771 = vunpack.c.h.b16 %v3768
        %v3772 = vpack.c.b16 %v3770, %v3770
        %v3773 = vpack.c.b16 %v3771, %v3771
        %3776 = vst [vmem:[#allocation4 + $0x70] sm:$0xf] %v3772
        %3777 = vst [vmem:[#allocation4 + $0x74] sm:$0xf] %v3773
        %v3778 = vld [vmem:[#allocation5 + $0xf0] sm:$0xff]
        %v3779 = vld [vmem:[#allocation5 + $0xf8] sm:$0xff]
        %v3780 = vld [vmem:[#allocation3] sm:$0xff]
        %v3781 = vld [vmem:[#allocation3 + $0x8] sm:$0xff]
        %v3782 = vld [vmem:[#allocation3 + $0x10] sm:$0xff]
        %v3783 = vld [vmem:[#allocation3 + $0x18] sm:$0xff]
        %3788 = vrot.lane.b32.xlu0 %v3780, 104
        %v3789 = vpop.permute.xlu0 %3788
        %3790 = vrot.lane.b32.xlu0 %v3781, 104
        %v3791 = vpop.permute.xlu0 %3790
        %3792 = vrot.lane.b32.xlu0 %v3782, 104
        %v3793 = vpop.permute.xlu0 %3792
        %3794 = vrot.lane.b32.xlu0 %v3783, 104
        %v3795 = vpop.permute.xlu0 %3794
        %v3796 = vsel %vm1566, %v3789, %v3791
        %v3797 = vsel %vm1566, %v3793, %v3795
        %v3800 = vmul.f32 %v3778, %v3796
        %v3801 = vmul.f32 %v3779, %v3797
        %v3802 = vpack.c.bf16 %v3801, %v3800
        %v3804 = vunpack.c.l.b16 %v3802
        %v3805 = vunpack.c.h.b16 %v3802
        %v3806 = vpack.c.b16 %v3804, %v3804
        %v3807 = vpack.c.b16 %v3805, %v3805
        %3810 = vst [vmem:[#allocation4 + $0x78] sm:$0xf] %v3806
        %3811 = vst [vmem:[#allocation4 + $0x7c] sm:$0xf] %v3807
        %v3812 = vld [vmem:[#allocation5 + $0x100] sm:$0xff]
        %v3813 = vld [vmem:[#allocation5 + $0x108] sm:$0xff]
        %v3814 = vld [vmem:[#allocation3] sm:$0xff]
        %v3815 = vld [vmem:[#allocation3 + $0x8] sm:$0xff]
        %v3816 = vld [vmem:[#allocation3 + $0x10] sm:$0xff]
        %v3817 = vld [vmem:[#allocation3 + $0x18] sm:$0xff]
        %3822 = vrot.lane.b32.xlu0 %v3814, 103
        %v3823 = vpop.permute.xlu0 %3822
        %3824 = vrot.lane.b32.xlu0 %v3815, 103
        %v3825 = vpop.permute.xlu0 %3824
        %3826 = vrot.lane.b32.xlu0 %v3816, 103
        %v3827 = vpop.permute.xlu0 %3826
        %3828 = vrot.lane.b32.xlu0 %v3817, 103
        %v3829 = vpop.permute.xlu0 %3828
        %v3830 = vsel %vm1601, %v3823, %v3825
        %v3831 = vsel %vm1601, %v3827, %v3829
        %v3834 = vmul.f32 %v3812, %v3830
        %v3835 = vmul.f32 %v3813, %v3831
        %v3836 = vpack.c.bf16 %v3835, %v3834
        %v3838 = vunpack.c.l.b16 %v3836
        %v3839 = vunpack.c.h.b16 %v3836
        %v3840 = vpack.c.b16 %v3838, %v3838
        %v3841 = vpack.c.b16 %v3839, %v3839
        %3844 = vst [vmem:[#allocation4 + $0x80] sm:$0xf] %v3840
        %3845 = vst [vmem:[#allocation4 + $0x84] sm:$0xf] %v3841
        %v3846 = vld [vmem:[#allocation5 + $0x110] sm:$0xff]
        %v3847 = vld [vmem:[#allocation5 + $0x118] sm:$0xff]
        %v3848 = vld [vmem:[#allocation3] sm:$0xff]
        %v3849 = vld [vmem:[#allocation3 + $0x8] sm:$0xff]
        %v3850 = vld [vmem:[#allocation3 + $0x10] sm:$0xff]
        %v3851 = vld [vmem:[#allocation3 + $0x18] sm:$0xff]
        %3856 = vrot.lane.b32.xlu0 %v3848, 102
        %v3857 = vpop.permute.xlu0 %3856
        %3858 = vrot.lane.b32.xlu0 %v3849, 102
        %v3859 = vpop.permute.xlu0 %3858
        %3860 = vrot.lane.b32.xlu0 %v3850, 102
        %v3861 = vpop.permute.xlu0 %3860
        %3862 = vrot.lane.b32.xlu0 %v3851, 102
        %v3863 = vpop.permute.xlu0 %3862
        %v3864 = vsel %vm1636, %v3857, %v3859
        %v3865 = vsel %vm1636, %v3861, %v3863
        %v3868 = vmul.f32 %v3846, %v3864
        %v3869 = vmul.f32 %v3847, %v3865
        %v3870 = vpack.c.bf16 %v3869, %v3868
        %v3872 = vunpack.c.l.b16 %v3870
        %v3873 = vunpack.c.h.b16 %v3870
        %v3874 = vpack.c.b16 %v3872, %v3872
        %v3875 = vpack.c.b16 %v3873, %v3873
        %3878 = vst [vmem:[#allocation4 + $0x88] sm:$0xf] %v3874
        %3879 = vst [vmem:[#allocation4 + $0x8c] sm:$0xf] %v3875
        %v3880 = vld [vmem:[#allocation5 + $0x120] sm:$0xff]
        %v3881 = vld [vmem:[#allocation5 + $0x128] sm:$0xff]
        %v3882 = vld [vmem:[#allocation3] sm:$0xff]
        %v3883 = vld [vmem:[#allocation3 + $0x8] sm:$0xff]
        %v3884 = vld [vmem:[#allocation3 + $0x10] sm:$0xff]
        %v3885 = vld [vmem:[#allocation3 + $0x18] sm:$0xff]
        %3890 = vrot.lane.b32.xlu0 %v3882, 101
        %v3891 = vpop.permute.xlu0 %3890
        %3892 = vrot.lane.b32.xlu0 %v3883, 101
        %v3893 = vpop.permute.xlu0 %3892
        %3894 = vrot.lane.b32.xlu0 %v3884, 101
        %v3895 = vpop.permute.xlu0 %3894
        %3896 = vrot.lane.b32.xlu0 %v3885, 101
        %v3897 = vpop.permute.xlu0 %3896
        %v3898 = vsel %vm1671, %v3891, %v3893
        %v3899 = vsel %vm1671, %v3895, %v3897
        %v3902 = vmul.f32 %v3880, %v3898
        %v3903 = vmul.f32 %v3881, %v3899
        %v3904 = vpack.c.bf16 %v3903, %v3902
        %v3906 = vunpack.c.l.b16 %v3904
        %v3907 = vunpack.c.h.b16 %v3904
        %v3908 = vpack.c.b16 %v3906, %v3906
        %v3909 = vpack.c.b16 %v3907, %v3907
        %3912 = vst [vmem:[#allocation4 + $0x90] sm:$0xf] %v3908
        %3913 = vst [vmem:[#allocation4 + $0x94] sm:$0xf] %v3909
        %v3914 = vld [vmem:[#allocation5 + $0x130] sm:$0xff]
        %v3915 = vld [vmem:[#allocation5 + $0x138] sm:$0xff]
        %v3916 = vld [vmem:[#allocation3] sm:$0xff]
        %v3917 = vld [vmem:[#allocation3 + $0x8] sm:$0xff]
        %v3918 = vld [vmem:[#allocation3 + $0x10] sm:$0xff]
        %v3919 = vld [vmem:[#allocation3 + $0x18] sm:$0xff]
        %3924 = vrot.lane.b32.xlu0 %v3916, 100
        %v3925 = vpop.permute.xlu0 %3924
        %3926 = vrot.lane.b32.xlu0 %v3917, 100
        %v3927 = vpop.permute.xlu0 %3926
        %3928 = vrot.lane.b32.xlu0 %v3918, 100
        %v3929 = vpop.permute.xlu0 %3928
        %3930 = vrot.lane.b32.xlu0 %v3919, 100
        %v3931 = vpop.permute.xlu0 %3930
        %v3932 = vsel %vm1706, %v3925, %v3927
        %v3933 = vsel %vm1706, %v3929, %v3931
        %v3936 = vmul.f32 %v3914, %v3932
        %v3937 = vmul.f32 %v3915, %v3933
        %v3938 = vpack.c.bf16 %v3937, %v3936
        %v3940 = vunpack.c.l.b16 %v3938
        %v3941 = vunpack.c.h.b16 %v3938
        %v3942 = vpack.c.b16 %v3940, %v3940
        %v3943 = vpack.c.b16 %v3941, %v3941
        %3946 = vst [vmem:[#allocation4 + $0x98] sm:$0xf] %v3942
        %3947 = vst [vmem:[#allocation4 + $0x9c] sm:$0xf] %v3943
        %v3948 = vld [vmem:[#allocation5 + $0x140] sm:$0xff]
        %v3949 = vld [vmem:[#allocation5 + $0x148] sm:$0xff]
        %v3950 = vld [vmem:[#allocation3] sm:$0xff]
        %v3951 = vld [vmem:[#allocation3 + $0x8] sm:$0xff]
        %v3952 = vld [vmem:[#allocation3 + $0x10] sm:$0xff]
        %v3953 = vld [vmem:[#allocation3 + $0x18] sm:$0xff]
        %3958 = vrot.lane.b32.xlu0 %v3950, 96
        %v3959 = vpop.permute.xlu0 %3958
        %3960 = vrot.lane.b32.xlu0 %v3951, 96
        %v3961 = vpop.permute.xlu0 %3960
        %3962 = vrot.lane.b32.xlu0 %v3952, 96
        %v3963 = vpop.permute.xlu0 %3962
        %3964 = vrot.lane.b32.xlu0 %v3953, 96
        %v3965 = vpop.permute.xlu0 %3964
        %v3966 = vsel %vm1741, %v3959, %v3961
        %v3967 = vsel %vm1741, %v3963, %v3965
        %v3970 = vmul.f32 %v3948, %v3966
        %v3971 = vmul.f32 %v3949, %v3967
        %v3972 = vpack.c.bf16 %v3971, %v3970
        %v3974 = vunpack.c.l.b16 %v3972
        %v3975 = vunpack.c.h.b16 %v3972
        %v3976 = vpack.c.b16 %v3974, %v3974
        %v3977 = vpack.c.b16 %v3975, %v3975
        %3980 = vst [vmem:[#allocation4 + $0xa0] sm:$0xf] %v3976
        %3981 = vst [vmem:[#allocation4 + $0xa4] sm:$0xf] %v3977
        %v3982 = vld [vmem:[#allocation5 + $0x150] sm:$0xff]
        %v3983 = vld [vmem:[#allocation5 + $0x158] sm:$0xff]
        %v3984 = vld [vmem:[#allocation3] sm:$0xff]
        %v3985 = vld [vmem:[#allocation3 + $0x8] sm:$0xff]
        %v3986 = vld [vmem:[#allocation3 + $0x10] sm:$0xff]
        %v3987 = vld [vmem:[#allocation3 + $0x18] sm:$0xff]
        %3992 = vrot.lane.b32.xlu0 %v3984, 95
        %v3993 = vpop.permute.xlu0 %3992
        %3994 = vrot.lane.b32.xlu0 %v3985, 95
        %v3995 = vpop.permute.xlu0 %3994
        %3996 = vrot.lane.b32.xlu0 %v3986, 95
        %v3997 = vpop.permute.xlu0 %3996
        %3998 = vrot.lane.b32.xlu0 %v3987, 95
        %v3999 = vpop.permute.xlu0 %3998
        %v4000 = vsel %vm1776, %v3993, %v3995
        %v4001 = vsel %vm1776, %v3997, %v3999
        %v4004 = vmul.f32 %v3982, %v4000
        %v4005 = vmul.f32 %v3983, %v4001
        %v4006 = vpack.c.bf16 %v4005, %v4004
        %v4008 = vunpack.c.l.b16 %v4006
        %v4009 = vunpack.c.h.b16 %v4006
        %v4010 = vpack.c.b16 %v4008, %v4008
        %v4011 = vpack.c.b16 %v4009, %v4009
        %4014 = vst [vmem:[#allocation4 + $0xa8] sm:$0xf] %v4010
        %4015 = vst [vmem:[#allocation4 + $0xac] sm:$0xf] %v4011
        %v4016 = vld [vmem:[#allocation5 + $0x160] sm:$0xff]
        %v4017 = vld [vmem:[#allocation5 + $0x168] sm:$0xff]
        %v4018 = vld [vmem:[#allocation3] sm:$0xff]
        %v4019 = vld [vmem:[#allocation3 + $0x8] sm:$0xff]
        %v4020 = vld [vmem:[#allocation3 + $0x10] sm:$0xff]
        %v4021 = vld [vmem:[#allocation3 + $0x18] sm:$0xff]
        %4026 = vrot.lane.b32.xlu0 %v4018, 94
        %v4027 = vpop.permute.xlu0 %4026
        %4028 = vrot.lane.b32.xlu0 %v4019, 94
        %v4029 = vpop.permute.xlu0 %4028
        %4030 = vrot.lane.b32.xlu0 %v4020, 94
        %v4031 = vpop.permute.xlu0 %4030
        %4032 = vrot.lane.b32.xlu0 %v4021, 94
        %v4033 = vpop.permute.xlu0 %4032
        %v4034 = vsel %vm1811, %v4027, %v4029
        %v4035 = vsel %vm1811, %v4031, %v4033
        %v4038 = vmul.f32 %v4016, %v4034
        %v4039 = vmul.f32 %v4017, %v4035
        %v4040 = vpack.c.bf16 %v4039, %v4038
        %v4042 = vunpack.c.l.b16 %v4040
        %v4043 = vunpack.c.h.b16 %v4040
        %v4044 = vpack.c.b16 %v4042, %v4042
        %v4045 = vpack.c.b16 %v4043, %v4043
        %4048 = vst [vmem:[#allocation4 + $0xb0] sm:$0xf] %v4044
        %4049 = vst [vmem:[#allocation4 + $0xb4] sm:$0xf] %v4045
        %v4050 = vld [vmem:[#allocation5 + $0x170] sm:$0xff]
        %v4051 = vld [vmem:[#allocation5 + $0x178] sm:$0xff]
        %v4052 = vld [vmem:[#allocation3] sm:$0xff]
        %v4053 = vld [vmem:[#allocation3 + $0x8] sm:$0xff]
        %v4054 = vld [vmem:[#allocation3 + $0x10] sm:$0xff]
        %v4055 = vld [vmem:[#allocation3 + $0x18] sm:$0xff]
        %4060 = vrot.lane.b32.xlu0 %v4052, 93
        %v4061 = vpop.permute.xlu0 %4060
        %4062 = vrot.lane.b32.xlu0 %v4053, 93
        %v4063 = vpop.permute.xlu0 %4062
        %4064 = vrot.lane.b32.xlu0 %v4054, 93
        %v4065 = vpop.permute.xlu0 %4064
        %4066 = vrot.lane.b32.xlu0 %v4055, 93
        %v4067 = vpop.permute.xlu0 %4066
        %v4068 = vsel %vm1846, %v4061, %v4063
        %v4069 = vsel %vm1846, %v4065, %v4067
        %v4072 = vmul.f32 %v4050, %v4068
        %v4073 = vmul.f32 %v4051, %v4069
        %v4074 = vpack.c.bf16 %v4073, %v4072
        %v4076 = vunpack.c.l.b16 %v4074
        %v4077 = vunpack.c.h.b16 %v4074
        %v4078 = vpack.c.b16 %v4076, %v4076
        %v4079 = vpack.c.b16 %v4077, %v4077
        %4082 = vst [vmem:[#allocation4 + $0xb8] sm:$0xf] %v4078
        %4083 = vst [vmem:[#allocation4 + $0xbc] sm:$0xf] %v4079
        %v4084 = vld [vmem:[#allocation5 + $0x180] sm:$0xff]
        %v4085 = vld [vmem:[#allocation5 + $0x188] sm:$0xff]
        %v4086 = vld [vmem:[#allocation3] sm:$0xff]
        %v4087 = vld [vmem:[#allocation3 + $0x8] sm:$0xff]
        %v4088 = vld [vmem:[#allocation3 + $0x10] sm:$0xff]
        %v4089 = vld [vmem:[#allocation3 + $0x18] sm:$0xff]
        %4094 = vrot.lane.b32.xlu0 %v4086, 92
        %v4095 = vpop.permute.xlu0 %4094
        %4096 = vrot.lane.b32.xlu0 %v4087, 92
        %v4097 = vpop.permute.xlu0 %4096
        %4098 = vrot.lane.b32.xlu0 %v4088, 92
        %v4099 = vpop.permute.xlu0 %4098
        %4100 = vrot.lane.b32.xlu0 %v4089, 92
        %v4101 = vpop.permute.xlu0 %4100
        %v4102 = vsel %vm1881, %v4095, %v4097
        %v4103 = vsel %vm1881, %v4099, %v4101
        %v4106 = vmul.f32 %v4084, %v4102
        %v4107 = vmul.f32 %v4085, %v4103
        %v4108 = vpack.c.bf16 %v4107, %v4106
        %v4110 = vunpack.c.l.b16 %v4108
        %v4111 = vunpack.c.h.b16 %v4108
        %v4112 = vpack.c.b16 %v4110, %v4110
        %v4113 = vpack.c.b16 %v4111, %v4111
        %4116 = vst [vmem:[#allocation4 + $0xc0] sm:$0xf] %v4112
        %4117 = vst [vmem:[#allocation4 + $0xc4] sm:$0xf] %v4113
        %v4118 = vld [vmem:[#allocation10] sm:$0xff]
        %v4119 = vld [vmem:[#allocation10 + $0x8] sm:$0xff]
        %v4120 = vld [vmem:[#allocation10 + $0x10] sm:$0xff]
        %v4121 = vld [vmem:[#allocation10 + $0x18] sm:$0xff]
        %v4122 = vld [vmem:[#allocation4] sm:$0xf]
        %v4123 = vld [vmem:[#allocation4 + $0x4] sm:$0xf]
        %v4124 = vld [vmem:[#allocation4 + $0x8] sm:$0xf]
        %v4125 = vld [vmem:[#allocation4 + $0xc] sm:$0xf]
        %v4126 = vld [vmem:[#allocation4 + $0x10] sm:$0xf]
        %v4127 = vld [vmem:[#allocation4 + $0x14] sm:$0xf]
        %v4128 = vld [vmem:[#allocation4 + $0x18] sm:$0xf]
        %v4129 = vld [vmem:[#allocation4 + $0x1c] sm:$0xf]
        %v4130 = vld [vmem:[#allocation4 + $0x20] sm:$0xf]
        %v4131 = vld [vmem:[#allocation4 + $0x24] sm:$0xf]
        %v4132 = vld [vmem:[#allocation4 + $0x28] sm:$0xf]
        %v4133 = vld [vmem:[#allocation4 + $0x2c] sm:$0xf]
        %v4134 = vld [vmem:[#allocation4 + $0x30] sm:$0xf]
        %v4135 = vld [vmem:[#allocation4 + $0x34] sm:$0xf]
        %v4136 = vld [vmem:[#allocation4 + $0x38] sm:$0xf]
        %v4137 = vld [vmem:[#allocation4 + $0x3c] sm:$0xf]
        %v4138 = vld [vmem:[#allocation4 + $0x40] sm:$0xf]
        %v4139 = vld [vmem:[#allocation4 + $0x44] sm:$0xf]
        %v4140 = vld [vmem:[#allocation4 + $0x48] sm:$0xf]
        %v4141 = vld [vmem:[#allocation4 + $0x4c] sm:$0xf]
        %v4142 = vld [vmem:[#allocation4 + $0x50] sm:$0xf]
        %v4143 = vld [vmem:[#allocation4 + $0x54] sm:$0xf]
        %v4144 = vld [vmem:[#allocation4 + $0x58] sm:$0xf]
        %v4145 = vld [vmem:[#allocation4 + $0x5c] sm:$0xf]
        %v4146 = vld [vmem:[#allocation4 + $0x60] sm:$0xf]
        %v4147 = vld [vmem:[#allocation4 + $0x64] sm:$0xf]
        %v4148 = vld [vmem:[#allocation4 + $0x68] sm:$0xf]
        %v4149 = vld [vmem:[#allocation4 + $0x6c] sm:$0xf]
        %v4150 = vld [vmem:[#allocation4 + $0x70] sm:$0xf]
        %v4151 = vld [vmem:[#allocation4 + $0x74] sm:$0xf]
        %v4152 = vld [vmem:[#allocation4 + $0x78] sm:$0xf]
        %v4153 = vld [vmem:[#allocation4 + $0x7c] sm:$0xf]
        %v4154 = vld [vmem:[#allocation4 + $0x80] sm:$0xf]
        %v4155 = vld [vmem:[#allocation4 + $0x84] sm:$0xf]
        %v4156 = vld [vmem:[#allocation4 + $0x88] sm:$0xf]
        %v4157 = vld [vmem:[#allocation4 + $0x8c] sm:$0xf]
        %v4158 = vld [vmem:[#allocation4 + $0x90] sm:$0xf]
        %v4159 = vld [vmem:[#allocation4 + $0x94] sm:$0xf]
        %v4160 = vld [vmem:[#allocation4 + $0x98] sm:$0xf]
        %v4161 = vld [vmem:[#allocation4 + $0x9c] sm:$0xf]
        %v4162 = vld [vmem:[#allocation4 + $0xa0] sm:$0xf]
        %v4163 = vld [vmem:[#allocation4 + $0xa4] sm:$0xf]
        %v4164 = vld [vmem:[#allocation4 + $0xa8] sm:$0xf]
        %v4165 = vld [vmem:[#allocation4 + $0xac] sm:$0xf]
        %v4166 = vld [vmem:[#allocation4 + $0xb0] sm:$0xf]
        %v4167 = vld [vmem:[#allocation4 + $0xb4] sm:$0xf]
        %v4168 = vld [vmem:[#allocation4 + $0xb8] sm:$0xf]
        %v4169 = vld [vmem:[#allocation4 + $0xbc] sm:$0xf]
        %v4170 = vld [vmem:[#allocation4 + $0xc0] sm:$0xf]
        %v4171 = vld [vmem:[#allocation4 + $0xc4] sm:$0xf]
        %v4172 = vld [vmem:[#allocation4 + $0xc8] sm:$0x1]
        %v4177 = vunpack.c.l.b16 %v4118
        %v4178 = vunpack.c.h.b16 %v4118
        %v4179 = vunpack.c.l.b16 %v4119
        %v4180 = vunpack.c.h.b16 %v4119
        %v4181 = vunpack.c.l.b16 %v4120
        %v4182 = vunpack.c.h.b16 %v4120
        %v4183 = vunpack.c.l.b16 %v4121
        %v4184 = vunpack.c.h.b16 %v4121
        %v4185 = vpack.c.b16 %v4181, %v4177
        %v4186 = vpack.c.b16 %v4182, %v4178
        %v4187 = vpack.c.b16 %v4183, %v4179
        %v4188 = vpack.c.b16 %v4184, %v4180
        %v4243 = vunpack.c.l.b16 %v4122
        %v4244 = vunpack.c.l.b16 %v4123
        %v4245 = vunpack.c.l.b16 %v4124
        %v4246 = vunpack.c.l.b16 %v4125
        %v4247 = vunpack.c.l.b16 %v4126
        %v4248 = vunpack.c.l.b16 %v4127
        %v4249 = vunpack.c.l.b16 %v4128
        %v4250 = vunpack.c.l.b16 %v4129
        %v4251 = vunpack.c.l.b16 %v4130
        %v4252 = vunpack.c.l.b16 %v4131
        %v4253 = vunpack.c.l.b16 %v4132
        %v4254 = vunpack.c.l.b16 %v4133
        %v4255 = vunpack.c.l.b16 %v4134
        %v4256 = vunpack.c.l.b16 %v4135
        %v4257 = vunpack.c.l.b16 %v4136
        %v4258 = vunpack.c.l.b16 %v4137
        %v4259 = vunpack.c.l.b16 %v4138
        %v4260 = vunpack.c.l.b16 %v4139
        %v4261 = vunpack.c.l.b16 %v4140
        %v4262 = vunpack.c.l.b16 %v4141
        %v4263 = vunpack.c.l.b16 %v4142
        %v4264 = vunpack.c.l.b16 %v4143
        %v4265 = vunpack.c.l.b16 %v4144
        %v4266 = vunpack.c.l.b16 %v4145
        %v4267 = vunpack.c.l.b16 %v4146
        %v4268 = vunpack.c.l.b16 %v4147
        %v4269 = vunpack.c.l.b16 %v4148
        %v4270 = vunpack.c.l.b16 %v4149
        %v4271 = vunpack.c.l.b16 %v4150
        %v4272 = vunpack.c.l.b16 %v4151
        %v4273 = vunpack.c.l.b16 %v4152
        %v4274 = vunpack.c.l.b16 %v4153
        %v4275 = vunpack.c.l.b16 %v4154
        %v4276 = vunpack.c.l.b16 %v4155
        %v4277 = vunpack.c.l.b16 %v4156
        %v4278 = vunpack.c.l.b16 %v4157
        %v4279 = vunpack.c.l.b16 %v4158
        %v4280 = vunpack.c.l.b16 %v4159
        %v4281 = vunpack.c.l.b16 %v4160
        %v4282 = vunpack.c.l.b16 %v4161
        %v4283 = vunpack.c.l.b16 %v4162
        %v4284 = vunpack.c.l.b16 %v4163
        %v4285 = vunpack.c.l.b16 %v4164
        %v4286 = vunpack.c.l.b16 %v4165
        %v4287 = vunpack.c.l.b16 %v4166
        %v4288 = vunpack.c.l.b16 %v4167
        %v4289 = vunpack.c.l.b16 %v4168
        %v4290 = vunpack.c.l.b16 %v4169
        %v4291 = vunpack.c.l.b16 %v4170
        %v4292 = vunpack.c.l.b16 %v4171
        %v4293 = vunpack.c.l.b16 %v4172
        %v4294 = vpack.c.b16 %v4244, %v4243
        %v4295 = vpack.c.b16 %v4246, %v4245
        %v4296 = vpack.c.b16 %v4248, %v4247
        %v4297 = vpack.c.b16 %v4250, %v4249
        %v4298 = vpack.c.b16 %v4252, %v4251
        %v4299 = vpack.c.b16 %v4254, %v4253
        %v4300 = vpack.c.b16 %v4256, %v4255
        %v4301 = vpack.c.b16 %v4258, %v4257
        %v4302 = vpack.c.b16 %v4260, %v4259
        %v4303 = vpack.c.b16 %v4262, %v4261
        %v4304 = vpack.c.b16 %v4264, %v4263
        %v4305 = vpack.c.b16 %v4266, %v4265
        %v4306 = vpack.c.b16 %v4268, %v4267
        %v4307 = vpack.c.b16 %v4270, %v4269
        %v4308 = vpack.c.b16 %v4272, %v4271
        %v4309 = vpack.c.b16 %v4274, %v4273
        %v4310 = vpack.c.b16 %v4276, %v4275
        %v4311 = vpack.c.b16 %v4278, %v4277
        %v4312 = vpack.c.b16 %v4280, %v4279
        %v4313 = vpack.c.b16 %v4282, %v4281
        %v4314 = vpack.c.b16 %v4284, %v4283
        %v4315 = vpack.c.b16 %v4286, %v4285
        %v4316 = vpack.c.b16 %v4288, %v4287
        %v4317 = vpack.c.b16 %v4290, %v4289
        %v4318 = vpack.c.b16 %v4292, %v4291
        %v4319 = vpack.c.b16 %v4293, %v4293
        %v4346 = vsel %vm514, %v4188, 0
        %v4349 = vand.u32 %v4319, %v598
        %4351 = vmatprep.subr.bf16.mxu0 0
        %4352 = vmatpush1.bf16.msra.mxu0 %v4294
        %4353 = vmatprep.subr.bf16.mxu0 0
        %4354 = vmatpush1.bf16.msra.mxu0 %v4295
        %4355 = vmatprep.subr.bf16.mxu0 0
        %4356 = vmatpush1.bf16.msra.mxu0 %v4296
        %4357 = vmatprep.subr.bf16.mxu0 0
        %4358 = vmatpush1.bf16.msra.mxu0 %v4297
        %4359 = vmatprep.subr.bf16.mxu0 0
        %4360 = vmatpush1.bf16.msra.mxu0 %v4298
        %4361 = vmatprep.subr.bf16.mxu0 0
        %4362 = vmatpush1.bf16.msra.mxu0 %v4299
        %4363 = vmatprep.subr.bf16.mxu0 0
        %4364 = vmatpush1.bf16.msra.mxu0 %v4300
        %4365 = vmatprep.subr.bf16.mxu0 0
        %4366 = vmatpush1.bf16.msra.mxu0 %v4301
        %4367 = vmatprep.subr.bf16.mxu0 0
        %4368 = vmatpush1.bf16.msra.mxu0 %v4302
        %4369 = vmatprep.subr.bf16.mxu0 0
        %4370 = vmatpush1.bf16.msra.mxu0 %v4303
        %4371 = vmatprep.subr.bf16.mxu0 0
        %4372 = vmatpush1.bf16.msra.mxu0 %v4304
        %4373 = vmatprep.subr.bf16.mxu0 0
        %4374 = vmatpush1.bf16.msra.mxu0 %v4305
        %4375 = vmatprep.subr.bf16.mxu0 0
        %4376 = vmatpush1.bf16.msra.mxu0 %v4306
        %4377 = vmatprep.subr.bf16.mxu0 0
        %4378 = vmatpush1.bf16.msra.mxu0 %v4307
        %4379 = vmatprep.subr.bf16.mxu0 0
        %4380 = vmatpush1.bf16.msra.mxu0 %v4308
        %4381 = vmatprep.subr.bf16.mxu0 0
        %4382 = vmatpush1.bf16.msra.mxu0 %v4309
        %4383 = vmatprep.mubr.bf16.mxu0 %v4186
        %4384 = vmatmul.mubr.bf16.gmra.mrb[0].mxu0 %v4185
        %v4385 = vpop.f32.mrb[0].mxu0
        %v4386 = vadd.f32 0.0, %v4385
        %v4387 = vpop.f32.mrb[0].mxu0
        %v4388 = vpop.f32.mrb[0].mxu0
        %v4389 = vadd.f32 0.0, %v4388
        %v4390 = vpop.f32.mrb[0].mxu0
        %4391 = vdwg.mxu0
        %4392 = vmatprep.subr.bf16.mxu0 0
        %4393 = vmatpush1.bf16.msra.mxu0 %v4310
        %4394 = vmatprep.subr.bf16.mxu0 0
        %4395 = vmatpush1.bf16.msra.mxu0 %v4311
        %4396 = vmatprep.subr.bf16.mxu0 0
        %4397 = vmatpush1.bf16.msra.mxu0 %v4312
        %4398 = vmatprep.subr.bf16.mxu0 0
        %4399 = vmatpush1.bf16.msra.mxu0 %v4313
        %4400 = vmatprep.subr.bf16.mxu0 0
        %4401 = vmatpush1.bf16.msra.mxu0 %v4314
        %4402 = vmatprep.subr.bf16.mxu0 0
        %4403 = vmatpush1.bf16.msra.mxu0 %v4315
        %4404 = vmatprep.subr.bf16.mxu0 0
        %4405 = vmatpush1.bf16.msra.mxu0 %v4316
        %4406 = vmatprep.subr.bf16.mxu0 0
        %4407 = vmatpush1.bf16.msra.mxu0 %v4317
        %4408 = vmatprep.subr.bf16.mxu0 0
        %4409 = vmatpush1.bf16.msra.mxu0 %v4318
        %4410 = vmatprep.subr.bf16.mxu0 0
        %4411 = vmatpush1.bf16.msra.mxu0 %v4349
        %4412 = vmatprep.subr.bf16.mxu0 0
        %4413 = vmatpush1.bf16.msra.mxu0 0
        %4414 = vmatprep.subr.bf16.mxu0 0
        %4415 = vmatpush1.bf16.msra.mxu0 0
        %4416 = vmatprep.subr.bf16.mxu0 0
        %4417 = vmatpush1.bf16.msra.mxu0 0
        %4418 = vmatprep.subr.bf16.mxu0 0
        %4419 = vmatpush1.bf16.msra.mxu0 0
        %4420 = vmatprep.subr.bf16.mxu0 0
        %4421 = vmatpush1.bf16.msra.mxu0 0
        %4422 = vmatprep.subr.bf16.mxu0 0
        %4423 = vmatpush1.bf16.msra.mxu0 0
        %4424 = vmatprep.mubr.bf16.mxu0 %v4346
        %4425 = vmatmul.mubr.bf16.gmra.mrb[0].mxu0 %v4187
        %v4426 = vpop.f32.mrb[0].mxu0
        %v4427 = vadd.f32 %v4386, %v4426
        %v4428 = vpop.f32.mrb[0].mxu0
        %v4429 = vpop.f32.mrb[0].mxu0
        %v4430 = vadd.f32 %v4389, %v4429
        %v4431 = vpop.f32.mrb[0].mxu0
        %4432 = vdwg.mxu0
        %4433 = vst [vmem:[%s310] sm:$0xff] %v4427
        %4434 = vst [vmem:[%s310 + $0x8] sm:$0xff] %v4430
        %s4435 = sand.u32 %s185, 1
        %s4436 = scalar_lea.sflag [#allocation9], %s4435
        %s4437 = sand.u32 %s185, 1
        %s4438 = smul.addr %s4437, 16
        %s4439 = scalar_lea.vmem [#allocation12], %s4438
        // Predicated region
        $region57: #{tpu_custom_call.1} parent=47 // pred_check
          %p4440 = pneg %p195
        $region58: #{tpu_custom_call.1} parent=47 // pred_check_branch
          %4442 = sbr.rel (%p4440) target = $region60
        $region59: #{tpu_custom_call.1} parent=47 // pred_region
          %s4444 = ssub.s32 256, 256
          %4445 = vsyncadd %s4436, %s4444
          %s4446 = smul.addr %s25, 128
          %s4447 = scalar_lea.hbm %s7, %s4446
          %s4448 = sshll.u32 %s4439, 4
          %s4449 = int_to_ptr.vmem [resolvable:$true] %s4448
          %4454 = dma.vmem_to_hbm [thread:$0]  %s4449, 256, %s4447, %s4436, 128, 256, 8
        $region60: #{tpu_custom_call.1} parent=47 // pred_fallthru
          _
      $region48: #{tpu_custom_call.1} parent=5 // pred_fallthru
        _
      %p4455 = scmp.le.s32.totalorder 2, %s20
      // Predicated region
      $region61: #{tpu_custom_call.1} parent=5 // pred_check
        %p4456 = pneg %p4455
      $region62: #{tpu_custom_call.1} parent=5 // pred_check_branch
        %4458 = sbr.rel (%p4456) target = $region64
      $region63: #{tpu_custom_call.1} parent=5 // pred_region
        %s4459 = ssub.s32 %s20, 2
        // Predicated region
        $region65: #{tpu_custom_call.1} parent=63 // pred_check
          %p4460 = pneg %p201
        $region66: #{tpu_custom_call.1} parent=63 // pred_check_branch
          %4462 = sbr.rel (%p4460) target = $region68
        $region67: #{tpu_custom_call.1} parent=63 // pred_region
          %s4463 = sand.u32 %s186, 1
          %s4464 = scalar_lea.sflag [#allocation9], %s4463
          %s4465 = sand.u32 %s186, 1
          %s4466 = smul.addr %s4465, 16
          %s4467 = scalar_lea.vmem [#allocation12], %s4466
          %4468 = dma.done %s4464, 256
        $region68: #{tpu_custom_call.1} parent=63 // pred_fallthru
          _
      $region64: #{tpu_custom_call.1} parent=5 // pred_fallthru
        _
    $region6: #{tpu_custom_call.1} parent=1 // loop_footer
      %s24 = sadd.s32 1, %s20
    $region7: #{tpu_custom_call.1} parent=1 // loop_footer_branch
      %19 = sbr.rel target = $region3
    $region8: #{tpu_custom_call.1} parent=1 // loop_exit
      _
    %4469 = vsyncpa [#allocation8], 1
    %s4470 = scalar_lea.sflag [#allocation8], 1
    %4471 = vsyncpa %s4470, 1
    %4472 = vsyncpa [#allocation11], 1
    %4473 = vsyncpa [#allocation9], 1
    %s4474 = scalar_lea.sflag [#allocation9], 1
    %4475 = vsyncpa %s4474, 1

</llo_original>
